<compile_context>
chip_gen: v7x
topology: tpu7x:2x2x1
jax: 0.10.0
libtpu: 0.0.40
codegen_flags: <defaults>
</compile_context>

<pallas_src>
import functools

import jax
import jax.numpy as jnp
import numpy as np
from jax.experimental import pallas as pl
from jax.experimental.pallas import tpu as pltpu


EMBED = 32
NUM_HEAD = 4
HEAD_DIM = EMBED // NUM_HEAD
NUM_LAYER = 2
VOCAB = 64
VOCAB_PAD = 128          # pad the vocab projection to one full 128-lane tile
MAX_LEN = 16
FFN_HIDDEN = 4 * EMBED
LN_EPS = 1e-5
NEG_INF = -1e9


# ----------------------------- fused Pallas kernels ------------------------------

def _mha_ln_kernel(xq_ref, xkv_ref, bias_ref, wqkv_ref, bqkv_ref, wo_ref, bo_ref,
                   g_ref, bln_ref, o_ref, *, num_head, cross, eps):
    """One whole MHA sublayer for one batch element:
       LN(x_q + O(softmax(QK^T/sqrt(dh) + bias) V)).  Scale pre-folded into W_q/b_q."""
    xq = xq_ref[0]                                            # (Sq, D) bf16
    d = xq.shape[-1]

    if cross:
        xkv = xkv_ref[0]                                      # (Sk, D) bf16
        w = wqkv_ref[...]                                     # (D, 3D) bf16
        bqkv = bqkv_ref[...]                                  # (1, 3D) f32
        q = jnp.dot(xq, w[:, :d], preferred_element_type=jnp.float32) + bqkv[:, :d]
        kv = jnp.dot(xkv, w[:, d:], preferred_element_type=jnp.float32) + bqkv[:, d:]
        k, v = kv[:, :d], kv[:, d:]
    else:
        # fused Q|K|V projection: one (Sq,D) @ (D,3D) MXU pass
        qkv = jnp.dot(xq, wqkv_ref[...], preferred_element_type=jnp.float32) + bqkv_ref[...]
        q, k, v = qkv[:, :d], qkv[:, d:2 * d], qkv[:, 2 * d:]

    bias = bias_ref[0]                                        # (1 or Sq, Sk) f32 additive

    dh = d // num_head
    heads = []
    for h in range(num_head):                                 # static unroll, tiny (8x8) dots
        qh = q[:, h * dh:(h + 1) * dh]
        kh = k[:, h * dh:(h + 1) * dh]
        vh = v[:, h * dh:(h + 1) * dh]
        s = jnp.dot(qh, kh.T, preferred_element_type=jnp.float32) + bias
        m = jnp.max(s, axis=-1, keepdims=True)
        p = jnp.exp(s - m)
        p = p * pl.reciprocal(jnp.sum(p, axis=-1, keepdims=True), approx=True)
        heads.append(jnp.dot(p, vh, preferred_element_type=jnp.float32))
    attn = jnp.concatenate(heads, axis=-1)                    # (Sq, D) f32

    out = jnp.dot(attn.astype(jnp.bfloat16), wo_ref[...],
                  preferred_element_type=jnp.float32) + bo_ref[...]

    # residual add + LayerNorm (stats in f32)
    y = xq.astype(jnp.float32) + out
    mean = jnp.mean(y, axis=-1, keepdims=True)
    yc = y - mean
    var = jnp.mean(yc * yc, axis=-1, keepdims=True)
    yn = yc * jax.lax.rsqrt(var + eps)
    o_ref[0] = (yn * g_ref[...] + bln_ref[...]).astype(o_ref.dtype)


def mha_ln(x_q, x_kv, bias, p, *, cross):
    """x_q: (B,Sq,D) bf16, x_kv: (B,Sk,D) bf16, bias: (B, 1|Sq, Sk) f32 additive."""
    B, Sq, D = x_q.shape
    Sk = x_kv.shape[1]
    Sb = bias.shape[1]
    return pl.pallas_call(
        functools.partial(_mha_ln_kernel, num_head=NUM_HEAD, cross=cross, eps=LN_EPS),
        out_shape=jax.ShapeDtypeStruct((B, Sq, D), x_q.dtype),
        grid=(B,),
        in_specs=[
            pl.BlockSpec((1, Sq, D), lambda b: (b, 0, 0)),
            pl.BlockSpec((1, Sk, D), lambda b: (b, 0, 0)),
            pl.BlockSpec((1, Sb, Sk), lambda b: (b, 0, 0)),
            pl.BlockSpec((D, 3 * D), lambda b: (0, 0)),
            pl.BlockSpec((1, 3 * D), lambda b: (0, 0)),
            pl.BlockSpec((D, D), lambda b: (0, 0)),
            pl.BlockSpec((1, D), lambda b: (0, 0)),
            pl.BlockSpec((1, D), lambda b: (0, 0)),
            pl.BlockSpec((1, D), lambda b: (0, 0)),
        ],
        out_specs=pl.BlockSpec((1, Sq, D), lambda b: (b, 0, 0)),
        compiler_params=pltpu.CompilerParams(dimension_semantics=("parallel",)),
    )(x_q, x_kv, bias, p["wqkv"], p["bqkv"], p["wo"], p["bo"], p["g"], p["b"])


def _ffn_ln_kernel(x_ref, w1_ref, b1_ref, w2_ref, b2_ref, g_ref, bln_ref, o_ref, *, eps):
    """LN(x + W2 relu(W1 x + b1) + b2) for one batch element; hidden never leaves VMEM."""
    x = x_ref[0]                                              # (S, D) bf16
    h = jnp.dot(x, w1_ref[...], preferred_element_type=jnp.float32) + b1_ref[...]
    h = jnp.maximum(h, 0.0).astype(jnp.bfloat16)
    y = jnp.dot(h, w2_ref[...], preferred_element_type=jnp.float32) + b2_ref[...]
    y = x.astype(jnp.float32) + y
    mean = jnp.mean(y, axis=-1, keepdims=True)
    yc = y - mean
    var = jnp.mean(yc * yc, axis=-1, keepdims=True)
    yn = yc * jax.lax.rsqrt(var + eps)
    o_ref[0] = (yn * g_ref[...] + bln_ref[...]).astype(o_ref.dtype)


def ffn_ln(x, p):
    B, S, D = x.shape
    F = p["w1"].shape[1]
    return pl.pallas_call(
        functools.partial(_ffn_ln_kernel, eps=LN_EPS),
        out_shape=jax.ShapeDtypeStruct((B, S, D), x.dtype),
        grid=(B,),
        in_specs=[
            pl.BlockSpec((1, S, D), lambda b: (b, 0, 0)),
            pl.BlockSpec((D, F), lambda b: (0, 0)),
            pl.BlockSpec((1, F), lambda b: (0, 0)),
            pl.BlockSpec((F, D), lambda b: (0, 0)),
            pl.BlockSpec((1, D), lambda b: (0, 0)),
            pl.BlockSpec((1, D), lambda b: (0, 0)),
            pl.BlockSpec((1, D), lambda b: (0, 0)),
        ],
        out_specs=pl.BlockSpec((1, S, D), lambda b: (b, 0, 0)),
        compiler_params=pltpu.CompilerParams(dimension_semantics=("parallel",)),
    )(x, p["w1"], p["b1"], p["w2"], p["b2"], p["g"], p["b"])


def _proj_softmax_kernel(x_ref, w_ref, b_ref, o_ref):
    """Final LinearProjection (vocab padded to 128 lanes, pad bias=-1e9) + softmax."""
    logits = jnp.dot(x_ref[0], w_ref[...], preferred_element_type=jnp.float32) + b_ref[...]
    m = jnp.max(logits, axis=-1, keepdims=True)
    e = jnp.exp(logits - m)                                   # padded cols -> exactly 0
    o_ref[0] = (e / jnp.sum(e, axis=-1, keepdims=True)).astype(o_ref.dtype)


def proj_softmax(x, w, b):
    B, S, D = x.shape
    Vp = w.shape[1]
    return pl.pallas_call(
        _proj_softmax_kernel,
        out_shape=jax.ShapeDtypeStruct((B, S, Vp), jnp.float32),
        grid=(B,),
        in_specs=[
            pl.BlockSpec((1, S, D), lambda b: (b, 0, 0)),
            pl.BlockSpec((D, Vp), lambda b: (0, 0)),
            pl.BlockSpec((1, Vp), lambda b: (0, 0)),
        ],
        out_specs=pl.BlockSpec((1, S, Vp), lambda b: (b, 0, 0)),
        compiler_params=pltpu.CompilerParams(dimension_semantics=("parallel",)),
    )(x, w, b)


# ----------------------------- parameters ----------------------------------------

def sinusoidal_pe(max_len, d):
    pos = np.arange(max_len)[:, None].astype(np.float64)
    i = np.arange(d)[None, :].astype(np.float64)
    angle = pos / np.power(10000.0, (2.0 * (i // 2)) / d)
    pe = np.zeros((max_len, d), dtype=np.float32)
    pe[:, 0::2] = np.sin(angle[:, 0::2])
    pe[:, 1::2] = np.cos(angle[:, 1::2])
    return jnp.asarray(pe)


def _dense(key, fan_in, fan_out):
    w = jax.random.normal(key, (fan_in, fan_out), jnp.float32) * 0.02
    b = jnp.zeros((fan_out,), jnp.float32)
    return w, b


def _attn_params(key, d):
    ks = jax.random.split(key, 4)
    scale = 1.0 / float(np.sqrt(d // NUM_HEAD))
    wq, bq = _dense(ks[0], d, d)
    wk, bk = _dense(ks[1], d, d)
    wv, bv = _dense(ks[2], d, d)
    wo, bo = _dense(ks[3], d, d)
    return {
        # 1/sqrt(dh) folded into W_q/b_q; Q|K|V fused into a single (D, 3D) bf16 matmul
        "wqkv": jnp.concatenate([wq * scale, wk, wv], axis=1).astype(jnp.bfloat16),
        "bqkv": jnp.concatenate([bq * scale, bk, bv]).reshape(1, 3 * d),
        "wo": wo.astype(jnp.bfloat16), "bo": bo.reshape(1, d),
        "g": jnp.ones((1, d), jnp.float32), "b": jnp.zeros((1, d), jnp.float32),
    }


def _ffn_params(key, d, f):
    k1, k2 = jax.random.split(key)
    w1, b1 = _dense(k1, d, f)
    w2, b2 = _dense(k2, f, d)
    return {"w1": w1.astype(jnp.bfloat16), "b1": b1.reshape(1, f),
            "w2": w2.astype(jnp.bfloat16), "b2": b2.reshape(1, d),
            "g": jnp.ones((1, d), jnp.float32), "b": jnp.zeros((1, d), jnp.float32)}


def init_params(key):
    ks = jax.random.split(key, 4 + 2 * NUM_LAYER)
    wp, bp = _dense(ks[2], EMBED, VOCAB)
    # vocab projection padded to 128 lanes; padded logits get bias -1e9 -> probability 0
    wp_pad = jnp.zeros((EMBED, VOCAB_PAD), jnp.float32).at[:, :VOCAB].set(wp)
    bp_pad = jnp.full((VOCAB_PAD,), NEG_INF, jnp.float32).at[:VOCAB].set(bp)
    params = {
        "src_emb": jax.random.normal(ks[0], (VOCAB, EMBED), jnp.float32) * 0.02,
        "trg_emb": jax.random.normal(ks[1], (VOCAB, EMBED), jnp.float32) * 0.02,
        "proj_w": wp_pad.astype(jnp.bfloat16),
        "proj_b": bp_pad.reshape(1, VOCAB_PAD),
        "pe": sinusoidal_pe(MAX_LEN, EMBED),
        "enc": [], "dec": [],
    }
    for l in range(NUM_LAYER):
        k = jax.random.split(ks[3 + l], 2)
        params["enc"].append({"attn": _attn_params(k[0], EMBED),
                              "ffn": _ffn_params(k[1], EMBED, FFN_HIDDEN)})
    for l in range(NUM_LAYER):
        k = jax.random.split(ks[3 + NUM_LAYER + l], 3)
        params["dec"].append({"self_attn": _attn_params(k[0], EMBED),
                              "cross_attn": _attn_params(k[1], EMBED),
                              "ffn": _ffn_params(k[2], EMBED, FFN_HIDDEN)})
    return params


# ----------------------------- forward pass ---------------------------------------

@jax.jit
def transformer_forward(params, src_token, trg_token, src_mask, trg_mask):
    """src_token/trg_token: (B, S) int32.
    src_mask: (B, S_src) with 1=keep, 0=pad. trg_mask: (B, S_trg, S_trg) with 1=attend."""
    B, S_src = src_token.shape
    S_trg = trg_token.shape[1]

    # InputEmbedding + PositionalEncoding (gather + add are XLA glue).
    x = (jnp.take(params["src_emb"], src_token, axis=0)
         + params["pe"][None, :S_src, :]).astype(jnp.bfloat16)
    y = (jnp.take(params["trg_emb"], trg_token, axis=0)
         + params["pe"][None, :S_trg, :]).astype(jnp.bfloat16)

    # additive biases; NEVER broadcast over heads (kernel broadcasts internally)
    src_bias = (1.0 - src_mask.astype(jnp.float32))[:, None, :] * NEG_INF   # (B, 1, S_src)
    trg_bias = (1.0 - trg_mask.astype(jnp.float32)) * NEG_INF               # (B, S_trg, S_trg)

    # Encoder: 2 fused kernels per layer
    for p in params["enc"]:
        x = mha_ln(x, x, src_bias, p["attn"], cross=False)
        x = ffn_ln(x, p["ffn"])
    enc_out = x

    # Decoder: 3 fused kernels per layer
    for p in params["dec"]:
        y = mha_ln(y, y, trg_bias, p["self_attn"], cross=False)
        y = mha_ln(y, enc_out, src_bias, p["cross_attn"], cross=True)
        y = ffn_ln(y, p["ffn"])

    out = proj_softmax(y, params["proj_w"], params["proj_b"])               # (B, S_trg, 128) f32
    return out[:, :, :VOCAB]


# ----------------------------- main -----------------------------------------------

if __name__ == "__main__":
    key = jax.random.PRNGKey(0)
    pkey, k_src, k_trg = jax.random.split(key, 3)
    params = init_params(pkey)

    B, S = 2, 8
    src_token = jax.random.randint(k_src, (B, S), 0, VOCAB, dtype=jnp.int32)
    trg_token = jax.random.randint(k_trg, (B, S), 0, VOCAB, dtype=jnp.int32)
    src_mask = jnp.ones((B, S), jnp.float32)                                # no padding
    trg_mask = jnp.broadcast_to(jnp.tril(jnp.ones((S, S), jnp.float32)), (B, S, S))  # causal

    out = transformer_forward(params, src_token, trg_token, src_mask, trg_mask)
    out = jax.block_until_ready(out)

    # sanity: softmax rows sum to 1 (padded vocab columns carry exactly zero mass)
    assert out.shape == (B, S, VOCAB)
    assert np.allclose(np.asarray(jnp.sum(out, axis=-1)), 1.0, atol=1e-4)

    print("KERNEL_OK")
</pallas_src>

<mosaic_0001>
module attributes {stable_mosaic.version = 11 : i64} {
  func.func @_mha_ln_kernel(%arg0: i32, %arg1: memref<1x8x32xbf16, #tpu.memory_space<vmem>>, %arg2: memref<1x8x32xbf16, #tpu.memory_space<vmem>>, %arg3: memref<1x1x8xf32, #tpu.memory_space<vmem>>, %arg4: memref<32x96xbf16, #tpu.memory_space<vmem>>, %arg5: memref<1x96xf32, #tpu.memory_space<vmem>>, %arg6: memref<32x32xbf16, #tpu.memory_space<vmem>>, %arg7: memref<1x32xf32, #tpu.memory_space<vmem>>, %arg8: memref<1x32xf32, #tpu.memory_space<vmem>>, %arg9: memref<1x32xf32, #tpu.memory_space<vmem>>, %arg10: memref<1x8x32xbf16, #tpu.memory_space<vmem>>) attributes {dimension_semantics = [#tpu.dimension_semantics<parallel>], iteration_bounds = array<i64: 2>, scalar_prefetch = 0 : i64, scratch_operands = 0 : i64, tpu.core_type = #tpu.core_type<tc>, window_params = [{transform_indices = @transform_0, window_bounds = array<i64: 1, 8, 32>}, {transform_indices = @transform_1, window_bounds = array<i64: 1, 8, 32>}, {transform_indices = @transform_2, window_bounds = array<i64: 1, 1, 8>}, {pipeline_mode = #tpu.pipeline_mode<synchronous>, transform_indices = @transform_3, window_bounds = array<i64: 32, 96>}, {pipeline_mode = #tpu.pipeline_mode<synchronous>, transform_indices = @transform_4, window_bounds = array<i64: 1, 96>}, {pipeline_mode = #tpu.pipeline_mode<synchronous>, transform_indices = @transform_5, window_bounds = array<i64: 32, 32>}, {pipeline_mode = #tpu.pipeline_mode<synchronous>, transform_indices = @transform_6, window_bounds = array<i64: 1, 32>}, {pipeline_mode = #tpu.pipeline_mode<synchronous>, transform_indices = @transform_7, window_bounds = array<i64: 1, 32>}, {pipeline_mode = #tpu.pipeline_mode<synchronous>, transform_indices = @transform_8, window_bounds = array<i64: 1, 32>}, {transform_indices = @transform_9, window_bounds = array<i64: 1, 8, 32>}]} {
    %c0 = arith.constant 0 : index
    %c0_0 = arith.constant 0 : index
    %c0_1 = arith.constant 0 : index
    %0 = vector.load %arg1[%c0, %c0_0, %c0_1] : memref<1x8x32xbf16, #tpu.memory_space<vmem>>, vector<1x8x32xbf16>
    %1 = vector.shape_cast %0 : vector<1x8x32xbf16> to vector<8x32xbf16>
    %c0_2 = arith.constant 0 : index
    %c0_3 = arith.constant 0 : index
    %2 = vector.load %arg4[%c0_2, %c0_3] : memref<32x96xbf16, #tpu.memory_space<vmem>>, vector<32x96xbf16>
    %cst = arith.constant dense<0.000000e+00> : vector<8x96xf32>
    %3 = tpu.matmul %1, %2, %cst {dimension_numbers = #tpu.dot_dimension_numbers<[1], [0], [0], [1], [0, 0, 1, 1], [], []>} : vector<8x32xbf16>, vector<32x96xbf16>, vector<8x96xf32> -> vector<8x96xf32>
    %c0_4 = arith.constant 0 : index
    %c0_5 = arith.constant 0 : index
    %4 = vector.load %arg5[%c0_4, %c0_5] : memref<1x96xf32, #tpu.memory_space<vmem>>, vector<1x96xf32>
    %5 = vector.broadcast %4 : vector<1x96xf32> to vector<8x96xf32>
    %6 = arith.addf %3, %5 : vector<8x96xf32>
    %7 = vector.extract_strided_slice %6 {offsets = [0, 0], sizes = [8, 32], strides = [1, 1]} : vector<8x96xf32> to vector<8x32xf32>
    %8 = vector.extract_strided_slice %6 {offsets = [0, 32], sizes = [8, 32], strides = [1, 1]} : vector<8x96xf32> to vector<8x32xf32>
    %9 = vector.extract_strided_slice %6 {offsets = [0, 64], sizes = [8, 32], strides = [1, 1]} : vector<8x96xf32> to vector<8x32xf32>
    %c0_6 = arith.constant 0 : index
    %c0_7 = arith.constant 0 : index
    %c0_8 = arith.constant 0 : index
    %10 = vector.load %arg3[%c0_6, %c0_7, %c0_8] : memref<1x1x8xf32, #tpu.memory_space<vmem>>, vector<1x1x8xf32>
    %11 = vector.shape_cast %10 : vector<1x1x8xf32> to vector<1x8xf32>
    %12 = vector.extract_strided_slice %7 {offsets = [0, 0], sizes = [8, 8], strides = [1, 1]} : vector<8x32xf32> to vector<8x8xf32>
    %13 = vector.extract_strided_slice %8 {offsets = [0, 0], sizes = [8, 8], strides = [1, 1]} : vector<8x32xf32> to vector<8x8xf32>
    %14 = vector.extract_strided_slice %9 {offsets = [0, 0], sizes = [8, 8], strides = [1, 1]} : vector<8x32xf32> to vector<8x8xf32>
    %15 = tpu.transpose %13, [1, 0] : vector<8x8xf32> -> vector<8x8xf32>
    %cst_9 = arith.constant dense<0.000000e+00> : vector<8x8xf32>
    %16 = tpu.matmul %12, %15, %cst_9 {dimension_numbers = #tpu.dot_dimension_numbers<[1], [0], [0], [1], [0, 0, 1, 1], [], []>} : vector<8x8xf32>, vector<8x8xf32>, vector<8x8xf32> -> vector<8x8xf32>
    %17 = vector.broadcast %11 : vector<1x8xf32> to vector<8x8xf32>
    %18 = arith.addf %16, %17 : vector<8x8xf32>
    %cst_10 = arith.constant dense<0xFF800000> : vector<8xf32>
    %19 = vector.multi_reduction <maximumf>, %18, %cst_10 [1] : vector<8x8xf32> to vector<8xf32>
    %20 = vector.shape_cast %19 : vector<8xf32> to vector<8x1xf32>
    %21 = vector.broadcast %20 : vector<8x1xf32> to vector<8x8xf32>
    %22 = arith.subf %18, %21 : vector<8x8xf32>
    %23 = math.exp %22 : vector<8x8xf32>
    %cst_11 = arith.constant dense<0.000000e+00> : vector<8xf32>
    %24 = vector.multi_reduction <add>, %23, %cst_11 [1] : vector<8x8xf32> to vector<8xf32>
    %25 = vector.shape_cast %24 : vector<8xf32> to vector<8x1xf32>
    %26 = tpu.reciprocal %25 {approx = true} : vector<8x1xf32> -> vector<8x1xf32>
    %27 = vector.broadcast %26 : vector<8x1xf32> to vector<8x8xf32>
    %28 = arith.mulf %23, %27 : vector<8x8xf32>
    %cst_12 = arith.constant dense<0.000000e+00> : vector<8x8xf32>
    %29 = tpu.matmul %28, %14, %cst_12 {dimension_numbers = #tpu.dot_dimension_numbers<[1], [0], [0], [1], [0, 0, 1, 1], [], []>} : vector<8x8xf32>, vector<8x8xf32>, vector<8x8xf32> -> vector<8x8xf32>
    %30 = vector.extract_strided_slice %7 {offsets = [0, 8], sizes = [8, 8], strides = [1, 1]} : vector<8x32xf32> to vector<8x8xf32>
    %31 = vector.extract_strided_slice %8 {offsets = [0, 8], sizes = [8, 8], strides = [1, 1]} : vector<8x32xf32> to vector<8x8xf32>
    %32 = vector.extract_strided_slice %9 {offsets = [0, 8], sizes = [8, 8], strides = [1, 1]} : vector<8x32xf32> to vector<8x8xf32>
    %33 = tpu.transpose %31, [1, 0] : vector<8x8xf32> -> vector<8x8xf32>
    %cst_13 = arith.constant dense<0.000000e+00> : vector<8x8xf32>
    %34 = tpu.matmul %30, %33, %cst_13 {dimension_numbers = #tpu.dot_dimension_numbers<[1], [0], [0], [1], [0, 0, 1, 1], [], []>} : vector<8x8xf32>, vector<8x8xf32>, vector<8x8xf32> -> vector<8x8xf32>
    %35 = vector.broadcast %11 : vector<1x8xf32> to vector<8x8xf32>
    %36 = arith.addf %34, %35 : vector<8x8xf32>
    %cst_14 = arith.constant dense<0xFF800000> : vector<8xf32>
    %37 = vector.multi_reduction <maximumf>, %36, %cst_14 [1] : vector<8x8xf32> to vector<8xf32>
    %38 = vector.shape_cast %37 : vector<8xf32> to vector<8x1xf32>
    %39 = vector.broadcast %38 : vector<8x1xf32> to vector<8x8xf32>
    %40 = arith.subf %36, %39 : vector<8x8xf32>
    %41 = math.exp %40 : vector<8x8xf32>
    %cst_15 = arith.constant dense<0.000000e+00> : vector<8xf32>
    %42 = vector.multi_reduction <add>, %41, %cst_15 [1] : vector<8x8xf32> to vector<8xf32>
    %43 = vector.shape_cast %42 : vector<8xf32> to vector<8x1xf32>
    %44 = tpu.reciprocal %43 {approx = true} : vector<8x1xf32> -> vector<8x1xf32>
    %45 = vector.broadcast %44 : vector<8x1xf32> to vector<8x8xf32>
    %46 = arith.mulf %41, %45 : vector<8x8xf32>
    %cst_16 = arith.constant dense<0.000000e+00> : vector<8x8xf32>
    %47 = tpu.matmul %46, %32, %cst_16 {dimension_numbers = #tpu.dot_dimension_numbers<[1], [0], [0], [1], [0, 0, 1, 1], [], []>} : vector<8x8xf32>, vector<8x8xf32>, vector<8x8xf32> -> vector<8x8xf32>
    %48 = vector.extract_strided_slice %7 {offsets = [0, 16], sizes = [8, 8], strides = [1, 1]} : vector<8x32xf32> to vector<8x8xf32>
    %49 = vector.extract_strided_slice %8 {offsets = [0, 16], sizes = [8, 8], strides = [1, 1]} : vector<8x32xf32> to vector<8x8xf32>
    %50 = vector.extract_strided_slice %9 {offsets = [0, 16], sizes = [8, 8], strides = [1, 1]} : vector<8x32xf32> to vector<8x8xf32>
    %51 = tpu.transpose %49, [1, 0] : vector<8x8xf32> -> vector<8x8xf32>
    %cst_17 = arith.constant dense<0.000000e+00> : vector<8x8xf32>
    %52 = tpu.matmul %48, %51, %cst_17 {dimension_numbers = #tpu.dot_dimension_numbers<[1], [0], [0], [1], [0, 0, 1, 1], [], []>} : vector<8x8xf32>, vector<8x8xf32>, vector<8x8xf32> -> vector<8x8xf32>
    %53 = vector.broadcast %11 : vector<1x8xf32> to vector<8x8xf32>
    %54 = arith.addf %52, %53 : vector<8x8xf32>
    %cst_18 = arith.constant dense<0xFF800000> : vector<8xf32>
    %55 = vector.multi_reduction <maximumf>, %54, %cst_18 [1] : vector<8x8xf32> to vector<8xf32>
    %56 = vector.shape_cast %55 : vector<8xf32> to vector<8x1xf32>
    %57 = vector.broadcast %56 : vector<8x1xf32> to vector<8x8xf32>
    %58 = arith.subf %54, %57 : vector<8x8xf32>
    %59 = math.exp %58 : vector<8x8xf32>
    %cst_19 = arith.constant dense<0.000000e+00> : vector<8xf32>
    %60 = vector.multi_reduction <add>, %59, %cst_19 [1] : vector<8x8xf32> to vector<8xf32>
    %61 = vector.shape_cast %60 : vector<8xf32> to vector<8x1xf32>
    %62 = tpu.reciprocal %61 {approx = true} : vector<8x1xf32> -> vector<8x1xf32>
    %63 = vector.broadcast %62 : vector<8x1xf32> to vector<8x8xf32>
    %64 = arith.mulf %59, %63 : vector<8x8xf32>
    %cst_20 = arith.constant dense<0.000000e+00> : vector<8x8xf32>
    %65 = tpu.matmul %64, %50, %cst_20 {dimension_numbers = #tpu.dot_dimension_numbers<[1], [0], [0], [1], [0, 0, 1, 1], [], []>} : vector<8x8xf32>, vector<8x8xf32>, vector<8x8xf32> -> vector<8x8xf32>
    %66 = vector.extract_strided_slice %7 {offsets = [0, 24], sizes = [8, 8], strides = [1, 1]} : vector<8x32xf32> to vector<8x8xf32>
    %67 = vector.extract_strided_slice %8 {offsets = [0, 24], sizes = [8, 8], strides = [1, 1]} : vector<8x32xf32> to vector<8x8xf32>
    %68 = vector.extract_strided_slice %9 {offsets = [0, 24], sizes = [8, 8], strides = [1, 1]} : vector<8x32xf32> to vector<8x8xf32>
    %69 = tpu.transpose %67, [1, 0] : vector<8x8xf32> -> vector<8x8xf32>
    %cst_21 = arith.constant dense<0.000000e+00> : vector<8x8xf32>
    %70 = tpu.matmul %66, %69, %cst_21 {dimension_numbers = #tpu.dot_dimension_numbers<[1], [0], [0], [1], [0, 0, 1, 1], [], []>} : vector<8x8xf32>, vector<8x8xf32>, vector<8x8xf32> -> vector<8x8xf32>
    %71 = vector.broadcast %11 : vector<1x8xf32> to vector<8x8xf32>
    %72 = arith.addf %70, %71 : vector<8x8xf32>
    %cst_22 = arith.constant dense<0xFF800000> : vector<8xf32>
    %73 = vector.multi_reduction <maximumf>, %72, %cst_22 [1] : vector<8x8xf32> to vector<8xf32>
    %74 = vector.shape_cast %73 : vector<8xf32> to vector<8x1xf32>
    %75 = vector.broadcast %74 : vector<8x1xf32> to vector<8x8xf32>
    %76 = arith.subf %72, %75 : vector<8x8xf32>
    %77 = math.exp %76 : vector<8x8xf32>
    %cst_23 = arith.constant dense<0.000000e+00> : vector<8xf32>
    %78 = vector.multi_reduction <add>, %77, %cst_23 [1] : vector<8x8xf32> to vector<8xf32>
    %79 = vector.shape_cast %78 : vector<8xf32> to vector<8x1xf32>
    %80 = tpu.reciprocal %79 {approx = true} : vector<8x1xf32> -> vector<8x1xf32>
    %81 = vector.broadcast %80 : vector<8x1xf32> to vector<8x8xf32>
    %82 = arith.mulf %77, %81 : vector<8x8xf32>
    %cst_24 = arith.constant dense<0.000000e+00> : vector<8x8xf32>
    %83 = tpu.matmul %82, %68, %cst_24 {dimension_numbers = #tpu.dot_dimension_numbers<[1], [0], [0], [1], [0, 0, 1, 1], [], []>} : vector<8x8xf32>, vector<8x8xf32>, vector<8x8xf32> -> vector<8x8xf32>
    %84 = tpu.concatenate %29, %47, %65, %83 in 1 : vector<8x8xf32>, vector<8x8xf32>, vector<8x8xf32>, vector<8x8xf32> -> vector<8x32xf32>
    %85 = arith.truncf %84 : vector<8x32xf32> to vector<8x32xbf16>
    %c0_25 = arith.constant 0 : index
    %c0_26 = arith.constant 0 : index
    %86 = vector.load %arg6[%c0_25, %c0_26] : memref<32x32xbf16, #tpu.memory_space<vmem>>, vector<32x32xbf16>
    %cst_27 = arith.constant dense<0.000000e+00> : vector<8x32xf32>
    %87 = tpu.matmul %85, %86, %cst_27 {dimension_numbers = #tpu.dot_dimension_numbers<[1], [0], [0], [1], [0, 0, 1, 1], [], []>} : vector<8x32xbf16>, vector<32x32xbf16>, vector<8x32xf32> -> vector<8x32xf32>
    %c0_28 = arith.constant 0 : index
    %c0_29 = arith.constant 0 : index
    %88 = vector.load %arg7[%c0_28, %c0_29] : memref<1x32xf32, #tpu.memory_space<vmem>>, vector<1x32xf32>
    %89 = vector.broadcast %88 : vector<1x32xf32> to vector<8x32xf32>
    %90 = arith.addf %87, %89 : vector<8x32xf32>
    %91 = arith.extf %1 : vector<8x32xbf16> to vector<8x32xf32>
    %92 = arith.addf %91, %90 : vector<8x32xf32>
    %cst_30 = arith.constant dense<0.000000e+00> : vector<8xf32>
    %93 = vector.multi_reduction <add>, %92, %cst_30 [1] : vector<8x32xf32> to vector<8xf32>
    %94 = vector.shape_cast %93 : vector<8xf32> to vector<8x1xf32>
    %cst_31 = arith.constant 3.200000e+01 : f32
    %95 = vector.broadcast %cst_31 : f32 to vector<8x1xf32>
    %96 = arith.divf %94, %95 : vector<8x1xf32>
    %97 = vector.broadcast %96 : vector<8x1xf32> to vector<8x32xf32>
    %98 = arith.subf %92, %97 : vector<8x32xf32>
    %99 = arith.mulf %98, %98 : vector<8x32xf32>
    %cst_32 = arith.constant dense<0.000000e+00> : vector<8xf32>
    %100 = vector.multi_reduction <add>, %99, %cst_32 [1] : vector<8x32xf32> to vector<8xf32>
    %101 = vector.shape_cast %100 : vector<8xf32> to vector<8x1xf32>
    %cst_33 = arith.constant 3.200000e+01 : f32
    %102 = vector.broadcast %cst_33 : f32 to vector<8x1xf32>
    %103 = arith.divf %101, %102 : vector<8x1xf32>
    %cst_34 = arith.constant 9.99999974E-6 : f32
    %104 = vector.broadcast %cst_34 : f32 to vector<8x1xf32>
    %105 = arith.addf %103, %104 : vector<8x1xf32>
    %106 = math.rsqrt %105 : vector<8x1xf32>
    %107 = vector.broadcast %106 : vector<8x1xf32> to vector<8x32xf32>
    %108 = arith.mulf %98, %107 : vector<8x32xf32>
    %c0_35 = arith.constant 0 : index
    %c0_36 = arith.constant 0 : index
    %109 = vector.load %arg8[%c0_35, %c0_36] : memref<1x32xf32, #tpu.memory_space<vmem>>, vector<1x32xf32>
    %110 = vector.broadcast %109 : vector<1x32xf32> to vector<8x32xf32>
    %111 = arith.mulf %108, %110 : vector<8x32xf32>
    %c0_37 = arith.constant 0 : index
    %c0_38 = arith.constant 0 : index
    %112 = vector.load %arg9[%c0_37, %c0_38] : memref<1x32xf32, #tpu.memory_space<vmem>>, vector<1x32xf32>
    %113 = vector.broadcast %112 : vector<1x32xf32> to vector<8x32xf32>
    %114 = arith.addf %111, %113 : vector<8x32xf32>
    %115 = arith.truncf %114 : vector<8x32xf32> to vector<8x32xbf16>
    %c0_39 = arith.constant 0 : index
    %c0_40 = arith.constant 0 : index
    %c0_41 = arith.constant 0 : index
    %116 = vector.load %arg10[%c0_39, %c0_40, %c0_41] : memref<1x8x32xbf16, #tpu.memory_space<vmem>>, vector<1x8x32xbf16>
    %117 = vector.shape_cast %116 : vector<1x8x32xbf16> to vector<8x32xbf16>
    %118 = vector.shape_cast %115 : vector<8x32xbf16> to vector<1x8x32xbf16>
    tpu.vector_store %arg10[%c0_39, %c0_40, %c0_41], %118 {strides = array<i32>} : memref<1x8x32xbf16, #tpu.memory_space<vmem>>, vector<1x8x32xbf16>,
    return
  }
  func.func @transform_0(%arg0: i32) -> (i32, i32, i32) {
    %c0_i32 = arith.constant 0 : i32
    %c0_i32_0 = arith.constant 0 : i32
    %c0_i32_1 = arith.constant 0 : i32
    return %arg0, %c0_i32, %c0_i32_0 : i32, i32, i32
  }
  func.func @transform_1(%arg0: i32) -> (i32, i32, i32) {
    %c0_i32 = arith.constant 0 : i32
    %c0_i32_0 = arith.constant 0 : i32
    %c0_i32_1 = arith.constant 0 : i32
    return %arg0, %c0_i32, %c0_i32_0 : i32, i32, i32
  }
  func.func @transform_2(%arg0: i32) -> (i32, i32, i32) {
    %c0_i32 = arith.constant 0 : i32
    %c0_i32_0 = arith.constant 0 : i32
    %c0_i32_1 = arith.constant 0 : i32
    return %arg0, %c0_i32, %c0_i32_0 : i32, i32, i32
  }
  func.func @transform_3(%arg0: i32) -> (i32, i32) {
    %c0_i32 = arith.constant 0 : i32
    %c0_i32_0 = arith.constant 0 : i32
    %c0_i32_1 = arith.constant 0 : i32
    return %c0_i32, %c0_i32_0 : i32, i32
  }
  func.func @transform_4(%arg0: i32) -> (i32, i32) {
    %c0_i32 = arith.constant 0 : i32
    %c0_i32_0 = arith.constant 0 : i32
    %c0_i32_1 = arith.constant 0 : i32
    return %c0_i32, %c0_i32_0 : i32, i32
  }
  func.func @transform_5(%arg0: i32) -> (i32, i32) {
    %c0_i32 = arith.constant 0 : i32
    %c0_i32_0 = arith.constant 0 : i32
    %c0_i32_1 = arith.constant 0 : i32
    return %c0_i32, %c0_i32_0 : i32, i32
  }
  func.func @transform_6(%arg0: i32) -> (i32, i32) {
    %c0_i32 = arith.constant 0 : i32
    %c0_i32_0 = arith.constant 0 : i32
    %c0_i32_1 = arith.constant 0 : i32
    return %c0_i32, %c0_i32_0 : i32, i32
  }
  func.func @transform_7(%arg0: i32) -> (i32, i32) {
    %c0_i32 = arith.constant 0 : i32
    %c0_i32_0 = arith.constant 0 : i32
    %c0_i32_1 = arith.constant 0 : i32
    return %c0_i32, %c0_i32_0 : i32, i32
  }
  func.func @transform_8(%arg0: i32) -> (i32, i32) {
    %c0_i32 = arith.constant 0 : i32
    %c0_i32_0 = arith.constant 0 : i32
    %c0_i32_1 = arith.constant 0 : i32
    return %c0_i32, %c0_i32_0 : i32, i32
  }
  func.func @transform_9(%arg0: i32) -> (i32, i32, i32) {
    %c0_i32 = arith.constant 0 : i32
    %c0_i32_0 = arith.constant 0 : i32
    %c0_i32_1 = arith.constant 0 : i32
    return %arg0, %c0_i32, %c0_i32_0 : i32, i32, i32
  }
}

module attributes {stable_mosaic.version = 11 : i64} {
  func.func @_ffn_ln_kernel(%arg0: i32, %arg1: memref<1x8x32xbf16, #tpu.memory_space<vmem>>, %arg2: memref<32x128xbf16, #tpu.memory_space<vmem>>, %arg3: memref<1x128xf32, #tpu.memory_space<vmem>>, %arg4: memref<128x32xbf16, #tpu.memory_space<vmem>>, %arg5: memref<1x32xf32, #tpu.memory_space<vmem>>, %arg6: memref<1x32xf32, #tpu.memory_space<vmem>>, %arg7: memref<1x32xf32, #tpu.memory_space<vmem>>, %arg8: memref<1x8x32xbf16, #tpu.memory_space<vmem>>) attributes {dimension_semantics = [#tpu.dimension_semantics<parallel>], iteration_bounds = array<i64: 2>, scalar_prefetch = 0 : i64, scratch_operands = 0 : i64, tpu.core_type = #tpu.core_type<tc>, window_params = [{transform_indices = @transform_0, window_bounds = array<i64: 1, 8, 32>}, {pipeline_mode = #tpu.pipeline_mode<synchronous>, transform_indices = @transform_1, window_bounds = array<i64: 32, 128>}, {pipeline_mode = #tpu.pipeline_mode<synchronous>, transform_indices = @transform_2, window_bounds = array<i64: 1, 128>}, {pipeline_mode = #tpu.pipeline_mode<synchronous>, transform_indices = @transform_3, window_bounds = array<i64: 128, 32>}, {pipeline_mode = #tpu.pipeline_mode<synchronous>, transform_indices = @transform_4, window_bounds = array<i64: 1, 32>}, {pipeline_mode = #tpu.pipeline_mode<synchronous>, transform_indices = @transform_5, window_bounds = array<i64: 1, 32>}, {pipeline_mode = #tpu.pipeline_mode<synchronous>, transform_indices = @transform_6, window_bounds = array<i64: 1, 32>}, {transform_indices = @transform_7, window_bounds = array<i64: 1, 8, 32>}]} {
    %c0 = arith.constant 0 : index
    %c0_0 = arith.constant 0 : index
    %c0_1 = arith.constant 0 : index
    %0 = vector.load %arg1[%c0, %c0_0, %c0_1] : memref<1x8x32xbf16, #tpu.memory_space<vmem>>, vector<1x8x32xbf16>
    %1 = vector.shape_cast %0 : vector<1x8x32xbf16> to vector<8x32xbf16>
    %c0_2 = arith.constant 0 : index
    %c0_3 = arith.constant 0 : index
    %2 = vector.load %arg2[%c0_2, %c0_3] : memref<32x128xbf16, #tpu.memory_space<vmem>>, vector<32x128xbf16>
    %cst = arith.constant dense<0.000000e+00> : vector<8x128xf32>
    %3 = tpu.matmul %1, %2, %cst {dimension_numbers = #tpu.dot_dimension_numbers<[1], [0], [0], [1], [0, 0, 1, 1], [], []>} : vector<8x32xbf16>, vector<32x128xbf16>, vector<8x128xf32> -> vector<8x128xf32>
    %c0_4 = arith.constant 0 : index
    %c0_5 = arith.constant 0 : index
    %4 = vector.load %arg3[%c0_4, %c0_5] : memref<1x128xf32, #tpu.memory_space<vmem>>, vector<1x128xf32>
    %5 = vector.broadcast %4 : vector<1x128xf32> to vector<8x128xf32>
    %6 = arith.addf %3, %5 : vector<8x128xf32>
    %cst_6 = arith.constant 0.000000e+00 : f32
    %7 = vector.broadcast %cst_6 : f32 to vector<8x128xf32>
    %8 = arith.maximumf %6, %7 : vector<8x128xf32>
    %9 = arith.truncf %8 : vector<8x128xf32> to vector<8x128xbf16>
    %c0_7 = arith.constant 0 : index
    %c0_8 = arith.constant 0 : index
    %10 = vector.load %arg4[%c0_7, %c0_8] : memref<128x32xbf16, #tpu.memory_space<vmem>>, vector<128x32xbf16>
    %cst_9 = arith.constant dense<0.000000e+00> : vector<8x32xf32>
    %11 = tpu.matmul %9, %10, %cst_9 {dimension_numbers = #tpu.dot_dimension_numbers<[1], [0], [0], [1], [0, 0, 1, 1], [], []>} : vector<8x128xbf16>, vector<128x32xbf16>, vector<8x32xf32> -> vector<8x32xf32>
    %c0_10 = arith.constant 0 : index
    %c0_11 = arith.constant 0 : index
    %12 = vector.load %arg5[%c0_10, %c0_11] : memref<1x32xf32, #tpu.memory_space<vmem>>, vector<1x32xf32>
    %13 = vector.broadcast %12 : vector<1x32xf32> to vector<8x32xf32>
    %14 = arith.addf %11, %13 : vector<8x32xf32>
    %15 = arith.extf %1 : vector<8x32xbf16> to vector<8x32xf32>
    %16 = arith.addf %15, %14 : vector<8x32xf32>
    %cst_12 = arith.constant dense<0.000000e+00> : vector<8xf32>
    %17 = vector.multi_reduction <add>, %16, %cst_12 [1] : vector<8x32xf32> to vector<8xf32>
    %18 = vector.shape_cast %17 : vector<8xf32> to vector<8x1xf32>
    %cst_13 = arith.constant 3.200000e+01 : f32
    %19 = vector.broadcast %cst_13 : f32 to vector<8x1xf32>
    %20 = arith.divf %18, %19 : vector<8x1xf32>
    %21 = vector.broadcast %20 : vector<8x1xf32> to vector<8x32xf32>
    %22 = arith.subf %16, %21 : vector<8x32xf32>
    %23 = arith.mulf %22, %22 : vector<8x32xf32>
    %cst_14 = arith.constant dense<0.000000e+00> : vector<8xf32>
    %24 = vector.multi_reduction <add>, %23, %cst_14 [1] : vector<8x32xf32> to vector<8xf32>
    %25 = vector.shape_cast %24 : vector<8xf32> to vector<8x1xf32>
    %cst_15 = arith.constant 3.200000e+01 : f32
    %26 = vector.broadcast %cst_15 : f32 to vector<8x1xf32>
    %27 = arith.divf %25, %26 : vector<8x1xf32>
    %cst_16 = arith.constant 9.99999974E-6 : f32
    %28 = vector.broadcast %cst_16 : f32 to vector<8x1xf32>
    %29 = arith.addf %27, %28 : vector<8x1xf32>
    %30 = math.rsqrt %29 : vector<8x1xf32>
    %31 = vector.broadcast %30 : vector<8x1xf32> to vector<8x32xf32>
    %32 = arith.mulf %22, %31 : vector<8x32xf32>
    %c0_17 = arith.constant 0 : index
    %c0_18 = arith.constant 0 : index
    %33 = vector.load %arg6[%c0_17, %c0_18] : memref<1x32xf32, #tpu.memory_space<vmem>>, vector<1x32xf32>
    %34 = vector.broadcast %33 : vector<1x32xf32> to vector<8x32xf32>
    %35 = arith.mulf %32, %34 : vector<8x32xf32>
    %c0_19 = arith.constant 0 : index
    %c0_20 = arith.constant 0 : index
    %36 = vector.load %arg7[%c0_19, %c0_20] : memref<1x32xf32, #tpu.memory_space<vmem>>, vector<1x32xf32>
    %37 = vector.broadcast %36 : vector<1x32xf32> to vector<8x32xf32>
    %38 = arith.addf %35, %37 : vector<8x32xf32>
    %39 = arith.truncf %38 : vector<8x32xf32> to vector<8x32xbf16>
    %c0_21 = arith.constant 0 : index
    %c0_22 = arith.constant 0 : index
    %c0_23 = arith.constant 0 : index
    %40 = vector.load %arg8[%c0_21, %c0_22, %c0_23] : memref<1x8x32xbf16, #tpu.memory_space<vmem>>, vector<1x8x32xbf16>
    %41 = vector.shape_cast %40 : vector<1x8x32xbf16> to vector<8x32xbf16>
    %42 = vector.shape_cast %39 : vector<8x32xbf16> to vector<1x8x32xbf16>
    tpu.vector_store %arg8[%c0_21, %c0_22, %c0_23], %42 {strides = array<i32>} : memref<1x8x32xbf16, #tpu.memory_space<vmem>>, vector<1x8x32xbf16>,
    return
  }
  func.func @transform_0(%arg0: i32) -> (i32, i32, i32) {
    %c0_i32 = arith.constant 0 : i32
    %c0_i32_0 = arith.constant 0 : i32
    %c0_i32_1 = arith.constant 0 : i32
    return %arg0, %c0_i32, %c0_i32_0 : i32, i32, i32
  }
  func.func @transform_1(%arg0: i32) -> (i32, i32) {
    %c0_i32 = arith.constant 0 : i32
    %c0_i32_0 = arith.constant 0 : i32
    %c0_i32_1 = arith.constant 0 : i32
    return %c0_i32, %c0_i32_0 : i32, i32
  }
  func.func @transform_2(%arg0: i32) -> (i32, i32) {
    %c0_i32 = arith.constant 0 : i32
    %c0_i32_0 = arith.constant 0 : i32
    %c0_i32_1 = arith.constant 0 : i32
    return %c0_i32, %c0_i32_0 : i32, i32
  }
  func.func @transform_3(%arg0: i32) -> (i32, i32) {
    %c0_i32 = arith.constant 0 : i32
    %c0_i32_0 = arith.constant 0 : i32
    %c0_i32_1 = arith.constant 0 : i32
    return %c0_i32, %c0_i32_0 : i32, i32
  }
  func.func @transform_4(%arg0: i32) -> (i32, i32) {
    %c0_i32 = arith.constant 0 : i32
    %c0_i32_0 = arith.constant 0 : i32
    %c0_i32_1 = arith.constant 0 : i32
    return %c0_i32, %c0_i32_0 : i32, i32
  }
  func.func @transform_5(%arg0: i32) -> (i32, i32) {
    %c0_i32 = arith.constant 0 : i32
    %c0_i32_0 = arith.constant 0 : i32
    %c0_i32_1 = arith.constant 0 : i32
    return %c0_i32, %c0_i32_0 : i32, i32
  }
  func.func @transform_6(%arg0: i32) -> (i32, i32) {
    %c0_i32 = arith.constant 0 : i32
    %c0_i32_0 = arith.constant 0 : i32
    %c0_i32_1 = arith.constant 0 : i32
    return %c0_i32, %c0_i32_0 : i32, i32
  }
  func.func @transform_7(%arg0: i32) -> (i32, i32, i32) {
    %c0_i32 = arith.constant 0 : i32
    %c0_i32_0 = arith.constant 0 : i32
    %c0_i32_1 = arith.constant 0 : i32
    return %arg0, %c0_i32, %c0_i32_0 : i32, i32, i32
  }
}

module attributes {stable_mosaic.version = 11 : i64} {
  func.func @_mha_ln_kernel(%arg0: i32, %arg1: memref<1x8x32xbf16, #tpu.memory_space<vmem>>, %arg2: memref<1x8x32xbf16, #tpu.memory_space<vmem>>, %arg3: memref<1x1x8xf32, #tpu.memory_space<vmem>>, %arg4: memref<32x96xbf16, #tpu.memory_space<vmem>>, %arg5: memref<1x96xf32, #tpu.memory_space<vmem>>, %arg6: memref<32x32xbf16, #tpu.memory_space<vmem>>, %arg7: memref<1x32xf32, #tpu.memory_space<vmem>>, %arg8: memref<1x32xf32, #tpu.memory_space<vmem>>, %arg9: memref<1x32xf32, #tpu.memory_space<vmem>>, %arg10: memref<1x8x32xbf16, #tpu.memory_space<vmem>>) attributes {dimension_semantics = [#tpu.dimension_semantics<parallel>], iteration_bounds = array<i64: 2>, scalar_prefetch = 0 : i64, scratch_operands = 0 : i64, tpu.core_type = #tpu.core_type<tc>, window_params = [{transform_indices = @transform_0, window_bounds = array<i64: 1, 8, 32>}, {transform_indices = @transform_1, window_bounds = array<i64: 1, 8, 32>}, {transform_indices = @transform_2, window_bounds = array<i64: 1, 1, 8>}, {pipeline_mode = #tpu.pipeline_mode<synchronous>, transform_indices = @transform_3, window_bounds = array<i64: 32, 96>}, {pipeline_mode = #tpu.pipeline_mode<synchronous>, transform_indices = @transform_4, window_bounds = array<i64: 1, 96>}, {pipeline_mode = #tpu.pipeline_mode<synchronous>, transform_indices = @transform_5, window_bounds = array<i64: 32, 32>}, {pipeline_mode = #tpu.pipeline_mode<synchronous>, transform_indices = @transform_6, window_bounds = array<i64: 1, 32>}, {pipeline_mode = #tpu.pipeline_mode<synchronous>, transform_indices = @transform_7, window_bounds = array<i64: 1, 32>}, {pipeline_mode = #tpu.pipeline_mode<synchronous>, transform_indices = @transform_8, window_bounds = array<i64: 1, 32>}, {transform_indices = @transform_9, window_bounds = array<i64: 1, 8, 32>}]} {
    %c0 = arith.constant 0 : index
    %c0_0 = arith.constant 0 : index
    %c0_1 = arith.constant 0 : index
    %0 = vector.load %arg1[%c0, %c0_0, %c0_1] : memref<1x8x32xbf16, #tpu.memory_space<vmem>>, vector<1x8x32xbf16>
    %1 = vector.shape_cast %0 : vector<1x8x32xbf16> to vector<8x32xbf16>
    %c0_2 = arith.constant 0 : index
    %c0_3 = arith.constant 0 : index
    %c0_4 = arith.constant 0 : index
    %2 = vector.load %arg2[%c0_2, %c0_3, %c0_4] : memref<1x8x32xbf16, #tpu.memory_space<vmem>>, vector<1x8x32xbf16>
    %3 = vector.shape_cast %2 : vector<1x8x32xbf16> to vector<8x32xbf16>
    %c0_5 = arith.constant 0 : index
    %c0_6 = arith.constant 0 : index
    %4 = vector.load %arg4[%c0_5, %c0_6] : memref<32x96xbf16, #tpu.memory_space<vmem>>, vector<32x96xbf16>
    %c0_7 = arith.constant 0 : index
    %c0_8 = arith.constant 0 : index
    %5 = vector.load %arg5[%c0_7, %c0_8] : memref<1x96xf32, #tpu.memory_space<vmem>>, vector<1x96xf32>
    %6 = vector.extract_strided_slice %4 {offsets = [0, 0], sizes = [32, 32], strides = [1, 1]} : vector<32x96xbf16> to vector<32x32xbf16>
    %cst = arith.constant dense<0.000000e+00> : vector<8x32xf32>
    %7 = tpu.matmul %1, %6, %cst {dimension_numbers = #tpu.dot_dimension_numbers<[1], [0], [0], [1], [0, 0, 1, 1], [], []>} : vector<8x32xbf16>, vector<32x32xbf16>, vector<8x32xf32> -> vector<8x32xf32>
    %8 = vector.extract_strided_slice %5 {offsets = [0, 0], sizes = [1, 32], strides = [1, 1]} : vector<1x96xf32> to vector<1x32xf32>
    %9 = vector.broadcast %8 : vector<1x32xf32> to vector<8x32xf32>
    %10 = arith.addf %7, %9 : vector<8x32xf32>
    %11 = vector.extract_strided_slice %4 {offsets = [0, 32], sizes = [32, 64], strides = [1, 1]} : vector<32x96xbf16> to vector<32x64xbf16>
    %cst_9 = arith.constant dense<0.000000e+00> : vector<8x64xf32>
    %12 = tpu.matmul %3, %11, %cst_9 {dimension_numbers = #tpu.dot_dimension_numbers<[1], [0], [0], [1], [0, 0, 1, 1], [], []>} : vector<8x32xbf16>, vector<32x64xbf16>, vector<8x64xf32> -> vector<8x64xf32>
    %13 = vector.extract_strided_slice %5 {offsets = [0, 32], sizes = [1, 64], strides = [1, 1]} : vector<1x96xf32> to vector<1x64xf32>
    %14 = vector.broadcast %13 : vector<1x64xf32> to vector<8x64xf32>
    %15 = arith.addf %12, %14 : vector<8x64xf32>
    %16 = vector.extract_strided_slice %15 {offsets = [0, 0], sizes = [8, 32], strides = [1, 1]} : vector<8x64xf32> to vector<8x32xf32>
    %17 = vector.extract_strided_slice %15 {offsets = [0, 32], sizes = [8, 32], strides = [1, 1]} : vector<8x64xf32> to vector<8x32xf32>
    %c0_10 = arith.constant 0 : index
    %c0_11 = arith.constant 0 : index
    %c0_12 = arith.constant 0 : index
    %18 = vector.load %arg3[%c0_10, %c0_11, %c0_12] : memref<1x1x8xf32, #tpu.memory_space<vmem>>, vector<1x1x8xf32>
    %19 = vector.shape_cast %18 : vector<1x1x8xf32> to vector<1x8xf32>
    %20 = vector.extract_strided_slice %10 {offsets = [0, 0], sizes = [8, 8], strides = [1, 1]} : vector<8x32xf32> to vector<8x8xf32>
    %21 = vector.extract_strided_slice %16 {offsets = [0, 0], sizes = [8, 8], strides = [1, 1]} : vector<8x32xf32> to vector<8x8xf32>
    %22 = vector.extract_strided_slice %17 {offsets = [0, 0], sizes = [8, 8], strides = [1, 1]} : vector<8x32xf32> to vector<8x8xf32>
    %23 = tpu.transpose %21, [1, 0] : vector<8x8xf32> -> vector<8x8xf32>
    %cst_13 = arith.constant dense<0.000000e+00> : vector<8x8xf32>
    %24 = tpu.matmul %20, %23, %cst_13 {dimension_numbers = #tpu.dot_dimension_numbers<[1], [0], [0], [1], [0, 0, 1, 1], [], []>} : vector<8x8xf32>, vector<8x8xf32>, vector<8x8xf32> -> vector<8x8xf32>
    %25 = vector.broadcast %19 : vector<1x8xf32> to vector<8x8xf32>
    %26 = arith.addf %24, %25 : vector<8x8xf32>
    %cst_14 = arith.constant dense<0xFF800000> : vector<8xf32>
    %27 = vector.multi_reduction <maximumf>, %26, %cst_14 [1] : vector<8x8xf32> to vector<8xf32>
    %28 = vector.shape_cast %27 : vector<8xf32> to vector<8x1xf32>
    %29 = vector.broadcast %28 : vector<8x1xf32> to vector<8x8xf32>
    %30 = arith.subf %26, %29 : vector<8x8xf32>
    %31 = math.exp %30 : vector<8x8xf32>
    %cst_15 = arith.constant dense<0.000000e+00> : vector<8xf32>
    %32 = vector.multi_reduction <add>, %31, %cst_15 [1] : vector<8x8xf32> to vector<8xf32>
    %33 = vector.shape_cast %32 : vector<8xf32> to vector<8x1xf32>
    %34 = tpu.reciprocal %33 {approx = true} : vector<8x1xf32> -> vector<8x1xf32>
    %35 = vector.broadcast %34 : vector<8x1xf32> to vector<8x8xf32>
    %36 = arith.mulf %31, %35 : vector<8x8xf32>
    %cst_16 = arith.constant dense<0.000000e+00> : vector<8x8xf32>
    %37 = tpu.matmul %36, %22, %cst_16 {dimension_numbers = #tpu.dot_dimension_numbers<[1], [0], [0], [1], [0, 0, 1, 1], [], []>} : vector<8x8xf32>, vector<8x8xf32>, vector<8x8xf32> -> vector<8x8xf32>
    %38 = vector.extract_strided_slice %10 {offsets = [0, 8], sizes = [8, 8], strides = [1, 1]} : vector<8x32xf32> to vector<8x8xf32>
    %39 = vector.extract_strided_slice %16 {offsets = [0, 8], sizes = [8, 8], strides = [1, 1]} : vector<8x32xf32> to vector<8x8xf32>
    %40 = vector.extract_strided_slice %17 {offsets = [0, 8], sizes = [8, 8], strides = [1, 1]} : vector<8x32xf32> to vector<8x8xf32>
    %41 = tpu.transpose %39, [1, 0] : vector<8x8xf32> -> vector<8x8xf32>
    %cst_17 = arith.constant dense<0.000000e+00> : vector<8x8xf32>
    %42 = tpu.matmul %38, %41, %cst_17 {dimension_numbers = #tpu.dot_dimension_numbers<[1], [0], [0], [1], [0, 0, 1, 1], [], []>} : vector<8x8xf32>, vector<8x8xf32>, vector<8x8xf32> -> vector<8x8xf32>
    %43 = vector.broadcast %19 : vector<1x8xf32> to vector<8x8xf32>
    %44 = arith.addf %42, %43 : vector<8x8xf32>
    %cst_18 = arith.constant dense<0xFF800000> : vector<8xf32>
    %45 = vector.multi_reduction <maximumf>, %44, %cst_18 [1] : vector<8x8xf32> to vector<8xf32>
    %46 = vector.shape_cast %45 : vector<8xf32> to vector<8x1xf32>
    %47 = vector.broadcast %46 : vector<8x1xf32> to vector<8x8xf32>
    %48 = arith.subf %44, %47 : vector<8x8xf32>
    %49 = math.exp %48 : vector<8x8xf32>
    %cst_19 = arith.constant dense<0.000000e+00> : vector<8xf32>
    %50 = vector.multi_reduction <add>, %49, %cst_19 [1] : vector<8x8xf32> to vector<8xf32>
    %51 = vector.shape_cast %50 : vector<8xf32> to vector<8x1xf32>
    %52 = tpu.reciprocal %51 {approx = true} : vector<8x1xf32> -> vector<8x1xf32>
    %53 = vector.broadcast %52 : vector<8x1xf32> to vector<8x8xf32>
    %54 = arith.mulf %49, %53 : vector<8x8xf32>
    %cst_20 = arith.constant dense<0.000000e+00> : vector<8x8xf32>
    %55 = tpu.matmul %54, %40, %cst_20 {dimension_numbers = #tpu.dot_dimension_numbers<[1], [0], [0], [1], [0, 0, 1, 1], [], []>} : vector<8x8xf32>, vector<8x8xf32>, vector<8x8xf32> -> vector<8x8xf32>
    %56 = vector.extract_strided_slice %10 {offsets = [0, 16], sizes = [8, 8], strides = [1, 1]} : vector<8x32xf32> to vector<8x8xf32>
    %57 = vector.extract_strided_slice %16 {offsets = [0, 16], sizes = [8, 8], strides = [1, 1]} : vector<8x32xf32> to vector<8x8xf32>
    %58 = vector.extract_strided_slice %17 {offsets = [0, 16], sizes = [8, 8], strides = [1, 1]} : vector<8x32xf32> to vector<8x8xf32>
    %59 = tpu.transpose %57, [1, 0] : vector<8x8xf32> -> vector<8x8xf32>
    %cst_21 = arith.constant dense<0.000000e+00> : vector<8x8xf32>
    %60 = tpu.matmul %56, %59, %cst_21 {dimension_numbers = #tpu.dot_dimension_numbers<[1], [0], [0], [1], [0, 0, 1, 1], [], []>} : vector<8x8xf32>, vector<8x8xf32>, vector<8x8xf32> -> vector<8x8xf32>
    %61 = vector.broadcast %19 : vector<1x8xf32> to vector<8x8xf32>
    %62 = arith.addf %60, %61 : vector<8x8xf32>
    %cst_22 = arith.constant dense<0xFF800000> : vector<8xf32>
    %63 = vector.multi_reduction <maximumf>, %62, %cst_22 [1] : vector<8x8xf32> to vector<8xf32>
    %64 = vector.shape_cast %63 : vector<8xf32> to vector<8x1xf32>
    %65 = vector.broadcast %64 : vector<8x1xf32> to vector<8x8xf32>
    %66 = arith.subf %62, %65 : vector<8x8xf32>
    %67 = math.exp %66 : vector<8x8xf32>
    %cst_23 = arith.constant dense<0.000000e+00> : vector<8xf32>
    %68 = vector.multi_reduction <add>, %67, %cst_23 [1] : vector<8x8xf32> to vector<8xf32>
    %69 = vector.shape_cast %68 : vector<8xf32> to vector<8x1xf32>
    %70 = tpu.reciprocal %69 {approx = true} : vector<8x1xf32> -> vector<8x1xf32>
    %71 = vector.broadcast %70 : vector<8x1xf32> to vector<8x8xf32>
    %72 = arith.mulf %67, %71 : vector<8x8xf32>
    %cst_24 = arith.constant dense<0.000000e+00> : vector<8x8xf32>
    %73 = tpu.matmul %72, %58, %cst_24 {dimension_numbers = #tpu.dot_dimension_numbers<[1], [0], [0], [1], [0, 0, 1, 1], [], []>} : vector<8x8xf32>, vector<8x8xf32>, vector<8x8xf32> -> vector<8x8xf32>
    %74 = vector.extract_strided_slice %10 {offsets = [0, 24], sizes = [8, 8], strides = [1, 1]} : vector<8x32xf32> to vector<8x8xf32>
    %75 = vector.extract_strided_slice %16 {offsets = [0, 24], sizes = [8, 8], strides = [1, 1]} : vector<8x32xf32> to vector<8x8xf32>
    %76 = vector.extract_strided_slice %17 {offsets = [0, 24], sizes = [8, 8], strides = [1, 1]} : vector<8x32xf32> to vector<8x8xf32>
    %77 = tpu.transpose %75, [1, 0] : vector<8x8xf32> -> vector<8x8xf32>
    %cst_25 = arith.constant dense<0.000000e+00> : vector<8x8xf32>
    %78 = tpu.matmul %74, %77, %cst_25 {dimension_numbers = #tpu.dot_dimension_numbers<[1], [0], [0], [1], [0, 0, 1, 1], [], []>} : vector<8x8xf32>, vector<8x8xf32>, vector<8x8xf32> -> vector<8x8xf32>
    %79 = vector.broadcast %19 : vector<1x8xf32> to vector<8x8xf32>
    %80 = arith.addf %78, %79 : vector<8x8xf32>
    %cst_26 = arith.constant dense<0xFF800000> : vector<8xf32>
    %81 = vector.multi_reduction <maximumf>, %80, %cst_26 [1] : vector<8x8xf32> to vector<8xf32>
    %82 = vector.shape_cast %81 : vector<8xf32> to vector<8x1xf32>
    %83 = vector.broadcast %82 : vector<8x1xf32> to vector<8x8xf32>
    %84 = arith.subf %80, %83 : vector<8x8xf32>
    %85 = math.exp %84 : vector<8x8xf32>
    %cst_27 = arith.constant dense<0.000000e+00> : vector<8xf32>
    %86 = vector.multi_reduction <add>, %85, %cst_27 [1] : vector<8x8xf32> to vector<8xf32>
    %87 = vector.shape_cast %86 : vector<8xf32> to vector<8x1xf32>
    %88 = tpu.reciprocal %87 {approx = true} : vector<8x1xf32> -> vector<8x1xf32>
    %89 = vector.broadcast %88 : vector<8x1xf32> to vector<8x8xf32>
    %90 = arith.mulf %85, %89 : vector<8x8xf32>
    %cst_28 = arith.constant dense<0.000000e+00> : vector<8x8xf32>
    %91 = tpu.matmul %90, %76, %cst_28 {dimension_numbers = #tpu.dot_dimension_numbers<[1], [0], [0], [1], [0, 0, 1, 1], [], []>} : vector<8x8xf32>, vector<8x8xf32>, vector<8x8xf32> -> vector<8x8xf32>
    %92 = tpu.concatenate %37, %55, %73, %91 in 1 : vector<8x8xf32>, vector<8x8xf32>, vector<8x8xf32>, vector<8x8xf32> -> vector<8x32xf32>
    %93 = arith.truncf %92 : vector<8x32xf32> to vector<8x32xbf16>
    %c0_29 = arith.constant 0 : index
    %c0_30 = arith.constant 0 : index
    %94 = vector.load %arg6[%c0_29, %c0_30] : memref<32x32xbf16, #tpu.memory_space<vmem>>, vector<32x32xbf16>
    %cst_31 = arith.constant dense<0.000000e+00> : vector<8x32xf32>
    %95 = tpu.matmul %93, %94, %cst_31 {dimension_numbers = #tpu.dot_dimension_numbers<[1], [0], [0], [1], [0, 0, 1, 1], [], []>} : vector<8x32xbf16>, vector<32x32xbf16>, vector<8x32xf32> -> vector<8x32xf32>
    %c0_32 = arith.constant 0 : index
    %c0_33 = arith.constant 0 : index
    %96 = vector.load %arg7[%c0_32, %c0_33] : memref<1x32xf32, #tpu.memory_space<vmem>>, vector<1x32xf32>
    %97 = vector.broadcast %96 : vector<1x32xf32> to vector<8x32xf32>
    %98 = arith.addf %95, %97 : vector<8x32xf32>
    %99 = arith.extf %1 : vector<8x32xbf16> to vector<8x32xf32>
    %100 = arith.addf %99, %98 : vector<8x32xf32>
    %cst_34 = arith.constant dense<0.000000e+00> : vector<8xf32>
    %101 = vector.multi_reduction <add>, %100, %cst_34 [1] : vector<8x32xf32> to vector<8xf32>
    %102 = vector.shape_cast %101 : vector<8xf32> to vector<8x1xf32>
    %cst_35 = arith.constant 3.200000e+01 : f32
    %103 = vector.broadcast %cst_35 : f32 to vector<8x1xf32>
    %104 = arith.divf %102, %103 : vector<8x1xf32>
    %105 = vector.broadcast %104 : vector<8x1xf32> to vector<8x32xf32>
    %106 = arith.subf %100, %105 : vector<8x32xf32>
    %107 = arith.mulf %106, %106 : vector<8x32xf32>
    %cst_36 = arith.constant dense<0.000000e+00> : vector<8xf32>
    %108 = vector.multi_reduction <add>, %107, %cst_36 [1] : vector<8x32xf32> to vector<8xf32>
    %109 = vector.shape_cast %108 : vector<8xf32> to vector<8x1xf32>
    %cst_37 = arith.constant 3.200000e+01 : f32
    %110 = vector.broadcast %cst_37 : f32 to vector<8x1xf32>
    %111 = arith.divf %109, %110 : vector<8x1xf32>
    %cst_38 = arith.constant 9.99999974E-6 : f32
    %112 = vector.broadcast %cst_38 : f32 to vector<8x1xf32>
    %113 = arith.addf %111, %112 : vector<8x1xf32>
    %114 = math.rsqrt %113 : vector<8x1xf32>
    %115 = vector.broadcast %114 : vector<8x1xf32> to vector<8x32xf32>
    %116 = arith.mulf %106, %115 : vector<8x32xf32>
    %c0_39 = arith.constant 0 : index
    %c0_40 = arith.constant 0 : index
    %117 = vector.load %arg8[%c0_39, %c0_40] : memref<1x32xf32, #tpu.memory_space<vmem>>, vector<1x32xf32>
    %118 = vector.broadcast %117 : vector<1x32xf32> to vector<8x32xf32>
    %119 = arith.mulf %116, %118 : vector<8x32xf32>
    %c0_41 = arith.constant 0 : index
    %c0_42 = arith.constant 0 : index
    %120 = vector.load %arg9[%c0_41, %c0_42] : memref<1x32xf32, #tpu.memory_space<vmem>>, vector<1x32xf32>
    %121 = vector.broadcast %120 : vector<1x32xf32> to vector<8x32xf32>
    %122 = arith.addf %119, %121 : vector<8x32xf32>
    %123 = arith.truncf %122 : vector<8x32xf32> to vector<8x32xbf16>
    %c0_43 = arith.constant 0 : index
    %c0_44 = arith.constant 0 : index
    %c0_45 = arith.constant 0 : index
    %124 = vector.load %arg10[%c0_43, %c0_44, %c0_45] : memref<1x8x32xbf16, #tpu.memory_space<vmem>>, vector<1x8x32xbf16>
    %125 = vector.shape_cast %124 : vector<1x8x32xbf16> to vector<8x32xbf16>
    %126 = vector.shape_cast %123 : vector<8x32xbf16> to vector<1x8x32xbf16>
    tpu.vector_store %arg10[%c0_43, %c0_44, %c0_45], %126 {strides = array<i32>} : memref<1x8x32xbf16, #tpu.memory_space<vmem>>, vector<1x8x32xbf16>,
    return
  }
  func.func @transform_0(%arg0: i32) -> (i32, i32, i32) {
    %c0_i32 = arith.constant 0 : i32
    %c0_i32_0 = arith.constant 0 : i32
    %c0_i32_1 = arith.constant 0 : i32
    return %arg0, %c0_i32, %c0_i32_0 : i32, i32, i32
  }
  func.func @transform_1(%arg0: i32) -> (i32, i32, i32) {
    %c0_i32 = arith.constant 0 : i32
    %c0_i32_0 = arith.constant 0 : i32
    %c0_i32_1 = arith.constant 0 : i32
    return %arg0, %c0_i32, %c0_i32_0 : i32, i32, i32
  }
  func.func @transform_2(%arg0: i32) -> (i32, i32, i32) {
    %c0_i32 = arith.constant 0 : i32
    %c0_i32_0 = arith.constant 0 : i32
    %c0_i32_1 = arith.constant 0 : i32
    return %arg0, %c0_i32, %c0_i32_0 : i32, i32, i32
  }
  func.func @transform_3(%arg0: i32) -> (i32, i32) {
    %c0_i32 = arith.constant 0 : i32
    %c0_i32_0 = arith.constant 0 : i32
    %c0_i32_1 = arith.constant 0 : i32
    return %c0_i32, %c0_i32_0 : i32, i32
  }
  func.func @transform_4(%arg0: i32) -> (i32, i32) {
    %c0_i32 = arith.constant 0 : i32
    %c0_i32_0 = arith.constant 0 : i32
    %c0_i32_1 = arith.constant 0 : i32
    return %c0_i32, %c0_i32_0 : i32, i32
  }
  func.func @transform_5(%arg0: i32) -> (i32, i32) {
    %c0_i32 = arith.constant 0 : i32
    %c0_i32_0 = arith.constant 0 : i32
    %c0_i32_1 = arith.constant 0 : i32
    return %c0_i32, %c0_i32_0 : i32, i32
  }
  func.func @transform_6(%arg0: i32) -> (i32, i32) {
    %c0_i32 = arith.constant 0 : i32
    %c0_i32_0 = arith.constant 0 : i32
    %c0_i32_1 = arith.constant 0 : i32
    return %c0_i32, %c0_i32_0 : i32, i32
  }
  func.func @transform_7(%arg0: i32) -> (i32, i32) {
    %c0_i32 = arith.constant 0 : i32
    %c0_i32_0 = arith.constant 0 : i32
    %c0_i32_1 = arith.constant 0 : i32
    return %c0_i32, %c0_i32_0 : i32, i32
  }
  func.func @transform_8(%arg0: i32) -> (i32, i32) {
    %c0_i32 = arith.constant 0 : i32
    %c0_i32_0 = arith.constant 0 : i32
    %c0_i32_1 = arith.constant 0 : i32
    return %c0_i32, %c0_i32_0 : i32, i32
  }
  func.func @transform_9(%arg0: i32) -> (i32, i32, i32) {
    %c0_i32 = arith.constant 0 : i32
    %c0_i32_0 = arith.constant 0 : i32
    %c0_i32_1 = arith.constant 0 : i32
    return %arg0, %c0_i32, %c0_i32_0 : i32, i32, i32
  }
}

module attributes {stable_mosaic.version = 11 : i64} {
  func.func @_mha_ln_kernel(%arg0: i32, %arg1: memref<1x8x32xbf16, #tpu.memory_space<vmem>>, %arg2: memref<1x8x32xbf16, #tpu.memory_space<vmem>>, %arg3: memref<1x8x8xf32, #tpu.memory_space<vmem>>, %arg4: memref<32x96xbf16, #tpu.memory_space<vmem>>, %arg5: memref<1x96xf32, #tpu.memory_space<vmem>>, %arg6: memref<32x32xbf16, #tpu.memory_space<vmem>>, %arg7: memref<1x32xf32, #tpu.memory_space<vmem>>, %arg8: memref<1x32xf32, #tpu.memory_space<vmem>>, %arg9: memref<1x32xf32, #tpu.memory_space<vmem>>, %arg10: memref<1x8x32xbf16, #tpu.memory_space<vmem>>) attributes {dimension_semantics = [#tpu.dimension_semantics<parallel>], iteration_bounds = array<i64: 2>, scalar_prefetch = 0 : i64, scratch_operands = 0 : i64, tpu.core_type = #tpu.core_type<tc>, window_params = [{transform_indices = @transform_0, window_bounds = array<i64: 1, 8, 32>}, {transform_indices = @transform_1, window_bounds = array<i64: 1, 8, 32>}, {transform_indices = @transform_2, window_bounds = array<i64: 1, 8, 8>}, {pipeline_mode = #tpu.pipeline_mode<synchronous>, transform_indices = @transform_3, window_bounds = array<i64: 32, 96>}, {pipeline_mode = #tpu.pipeline_mode<synchronous>, transform_indices = @transform_4, window_bounds = array<i64: 1, 96>}, {pipeline_mode = #tpu.pipeline_mode<synchronous>, transform_indices = @transform_5, window_bounds = array<i64: 32, 32>}, {pipeline_mode = #tpu.pipeline_mode<synchronous>, transform_indices = @transform_6, window_bounds = array<i64: 1, 32>}, {pipeline_mode = #tpu.pipeline_mode<synchronous>, transform_indices = @transform_7, window_bounds = array<i64: 1, 32>}, {pipeline_mode = #tpu.pipeline_mode<synchronous>, transform_indices = @transform_8, window_bounds = array<i64: 1, 32>}, {transform_indices = @transform_9, window_bounds = array<i64: 1, 8, 32>}]} {
    %c0 = arith.constant 0 : index
    %c0_0 = arith.constant 0 : index
    %c0_1 = arith.constant 0 : index
    %0 = vector.load %arg1[%c0, %c0_0, %c0_1] : memref<1x8x32xbf16, #tpu.memory_space<vmem>>, vector<1x8x32xbf16>
    %1 = vector.shape_cast %0 : vector<1x8x32xbf16> to vector<8x32xbf16>
    %c0_2 = arith.constant 0 : index
    %c0_3 = arith.constant 0 : index
    %2 = vector.load %arg4[%c0_2, %c0_3] : memref<32x96xbf16, #tpu.memory_space<vmem>>, vector<32x96xbf16>
    %cst = arith.constant dense<0.000000e+00> : vector<8x96xf32>
    %3 = tpu.matmul %1, %2, %cst {dimension_numbers = #tpu.dot_dimension_numbers<[1], [0], [0], [1], [0, 0, 1, 1], [], []>} : vector<8x32xbf16>, vector<32x96xbf16>, vector<8x96xf32> -> vector<8x96xf32>
    %c0_4 = arith.constant 0 : index
    %c0_5 = arith.constant 0 : index
    %4 = vector.load %arg5[%c0_4, %c0_5] : memref<1x96xf32, #tpu.memory_space<vmem>>, vector<1x96xf32>
    %5 = vector.broadcast %4 : vector<1x96xf32> to vector<8x96xf32>
    %6 = arith.addf %3, %5 : vector<8x96xf32>
    %7 = vector.extract_strided_slice %6 {offsets = [0, 0], sizes = [8, 32], strides = [1, 1]} : vector<8x96xf32> to vector<8x32xf32>
    %8 = vector.extract_strided_slice %6 {offsets = [0, 32], sizes = [8, 32], strides = [1, 1]} : vector<8x96xf32> to vector<8x32xf32>
    %9 = vector.extract_strided_slice %6 {offsets = [0, 64], sizes = [8, 32], strides = [1, 1]} : vector<8x96xf32> to vector<8x32xf32>
    %c0_6 = arith.constant 0 : index
    %c0_7 = arith.constant 0 : index
    %c0_8 = arith.constant 0 : index
    %10 = vector.load %arg3[%c0_6, %c0_7, %c0_8] : memref<1x8x8xf32, #tpu.memory_space<vmem>>, vector<1x8x8xf32>
    %11 = vector.shape_cast %10 : vector<1x8x8xf32> to vector<8x8xf32>
    %12 = vector.extract_strided_slice %7 {offsets = [0, 0], sizes = [8, 8], strides = [1, 1]} : vector<8x32xf32> to vector<8x8xf32>
    %13 = vector.extract_strided_slice %8 {offsets = [0, 0], sizes = [8, 8], strides = [1, 1]} : vector<8x32xf32> to vector<8x8xf32>
    %14 = vector.extract_strided_slice %9 {offsets = [0, 0], sizes = [8, 8], strides = [1, 1]} : vector<8x32xf32> to vector<8x8xf32>
    %15 = tpu.transpose %13, [1, 0] : vector<8x8xf32> -> vector<8x8xf32>
    %cst_9 = arith.constant dense<0.000000e+00> : vector<8x8xf32>
    %16 = tpu.matmul %12, %15, %cst_9 {dimension_numbers = #tpu.dot_dimension_numbers<[1], [0], [0], [1], [0, 0, 1, 1], [], []>} : vector<8x8xf32>, vector<8x8xf32>, vector<8x8xf32> -> vector<8x8xf32>
    %17 = arith.addf %16, %11 : vector<8x8xf32>
    %cst_10 = arith.constant dense<0xFF800000> : vector<8xf32>
    %18 = vector.multi_reduction <maximumf>, %17, %cst_10 [1] : vector<8x8xf32> to vector<8xf32>
    %19 = vector.shape_cast %18 : vector<8xf32> to vector<8x1xf32>
    %20 = vector.broadcast %19 : vector<8x1xf32> to vector<8x8xf32>
    %21 = arith.subf %17, %20 : vector<8x8xf32>
    %22 = math.exp %21 : vector<8x8xf32>
    %cst_11 = arith.constant dense<0.000000e+00> : vector<8xf32>
    %23 = vector.multi_reduction <add>, %22, %cst_11 [1] : vector<8x8xf32> to vector<8xf32>
    %24 = vector.shape_cast %23 : vector<8xf32> to vector<8x1xf32>
    %25 = tpu.reciprocal %24 {approx = true} : vector<8x1xf32> -> vector<8x1xf32>
    %26 = vector.broadcast %25 : vector<8x1xf32> to vector<8x8xf32>
    %27 = arith.mulf %22, %26 : vector<8x8xf32>
    %cst_12 = arith.constant dense<0.000000e+00> : vector<8x8xf32>
    %28 = tpu.matmul %27, %14, %cst_12 {dimension_numbers = #tpu.dot_dimension_numbers<[1], [0], [0], [1], [0, 0, 1, 1], [], []>} : vector<8x8xf32>, vector<8x8xf32>, vector<8x8xf32> -> vector<8x8xf32>
    %29 = vector.extract_strided_slice %7 {offsets = [0, 8], sizes = [8, 8], strides = [1, 1]} : vector<8x32xf32> to vector<8x8xf32>
    %30 = vector.extract_strided_slice %8 {offsets = [0, 8], sizes = [8, 8], strides = [1, 1]} : vector<8x32xf32> to vector<8x8xf32>
    %31 = vector.extract_strided_slice %9 {offsets = [0, 8], sizes = [8, 8], strides = [1, 1]} : vector<8x32xf32> to vector<8x8xf32>
    %32 = tpu.transpose %30, [1, 0] : vector<8x8xf32> -> vector<8x8xf32>
    %cst_13 = arith.constant dense<0.000000e+00> : vector<8x8xf32>
    %33 = tpu.matmul %29, %32, %cst_13 {dimension_numbers = #tpu.dot_dimension_numbers<[1], [0], [0], [1], [0, 0, 1, 1], [], []>} : vector<8x8xf32>, vector<8x8xf32>, vector<8x8xf32> -> vector<8x8xf32>
    %34 = arith.addf %33, %11 : vector<8x8xf32>
    %cst_14 = arith.constant dense<0xFF800000> : vector<8xf32>
    %35 = vector.multi_reduction <maximumf>, %34, %cst_14 [1] : vector<8x8xf32> to vector<8xf32>
    %36 = vector.shape_cast %35 : vector<8xf32> to vector<8x1xf32>
    %37 = vector.broadcast %36 : vector<8x1xf32> to vector<8x8xf32>
    %38 = arith.subf %34, %37 : vector<8x8xf32>
    %39 = math.exp %38 : vector<8x8xf32>
    %cst_15 = arith.constant dense<0.000000e+00> : vector<8xf32>
    %40 = vector.multi_reduction <add>, %39, %cst_15 [1] : vector<8x8xf32> to vector<8xf32>
    %41 = vector.shape_cast %40 : vector<8xf32> to vector<8x1xf32>
    %42 = tpu.reciprocal %41 {approx = true} : vector<8x1xf32> -> vector<8x1xf32>
    %43 = vector.broadcast %42 : vector<8x1xf32> to vector<8x8xf32>
    %44 = arith.mulf %39, %43 : vector<8x8xf32>
    %cst_16 = arith.constant dense<0.000000e+00> : vector<8x8xf32>
    %45 = tpu.matmul %44, %31, %cst_16 {dimension_numbers = #tpu.dot_dimension_numbers<[1], [0], [0], [1], [0, 0, 1, 1], [], []>} : vector<8x8xf32>, vector<8x8xf32>, vector<8x8xf32> -> vector<8x8xf32>
    %46 = vector.extract_strided_slice %7 {offsets = [0, 16], sizes = [8, 8], strides = [1, 1]} : vector<8x32xf32> to vector<8x8xf32>
    %47 = vector.extract_strided_slice %8 {offsets = [0, 16], sizes = [8, 8], strides = [1, 1]} : vector<8x32xf32> to vector<8x8xf32>
    %48 = vector.extract_strided_slice %9 {offsets = [0, 16], sizes = [8, 8], strides = [1, 1]} : vector<8x32xf32> to vector<8x8xf32>
    %49 = tpu.transpose %47, [1, 0] : vector<8x8xf32> -> vector<8x8xf32>
    %cst_17 = arith.constant dense<0.000000e+00> : vector<8x8xf32>
    %50 = tpu.matmul %46, %49, %cst_17 {dimension_numbers = #tpu.dot_dimension_numbers<[1], [0], [0], [1], [0, 0, 1, 1], [], []>} : vector<8x8xf32>, vector<8x8xf32>, vector<8x8xf32> -> vector<8x8xf32>
    %51 = arith.addf %50, %11 : vector<8x8xf32>
    %cst_18 = arith.constant dense<0xFF800000> : vector<8xf32>
    %52 = vector.multi_reduction <maximumf>, %51, %cst_18 [1] : vector<8x8xf32> to vector<8xf32>
    %53 = vector.shape_cast %52 : vector<8xf32> to vector<8x1xf32>
    %54 = vector.broadcast %53 : vector<8x1xf32> to vector<8x8xf32>
    %55 = arith.subf %51, %54 : vector<8x8xf32>
    %56 = math.exp %55 : vector<8x8xf32>
    %cst_19 = arith.constant dense<0.000000e+00> : vector<8xf32>
    %57 = vector.multi_reduction <add>, %56, %cst_19 [1] : vector<8x8xf32> to vector<8xf32>
    %58 = vector.shape_cast %57 : vector<8xf32> to vector<8x1xf32>
    %59 = tpu.reciprocal %58 {approx = true} : vector<8x1xf32> -> vector<8x1xf32>
    %60 = vector.broadcast %59 : vector<8x1xf32> to vector<8x8xf32>
    %61 = arith.mulf %56, %60 : vector<8x8xf32>
    %cst_20 = arith.constant dense<0.000000e+00> : vector<8x8xf32>
    %62 = tpu.matmul %61, %48, %cst_20 {dimension_numbers = #tpu.dot_dimension_numbers<[1], [0], [0], [1], [0, 0, 1, 1], [], []>} : vector<8x8xf32>, vector<8x8xf32>, vector<8x8xf32> -> vector<8x8xf32>
    %63 = vector.extract_strided_slice %7 {offsets = [0, 24], sizes = [8, 8], strides = [1, 1]} : vector<8x32xf32> to vector<8x8xf32>
    %64 = vector.extract_strided_slice %8 {offsets = [0, 24], sizes = [8, 8], strides = [1, 1]} : vector<8x32xf32> to vector<8x8xf32>
    %65 = vector.extract_strided_slice %9 {offsets = [0, 24], sizes = [8, 8], strides = [1, 1]} : vector<8x32xf32> to vector<8x8xf32>
    %66 = tpu.transpose %64, [1, 0] : vector<8x8xf32> -> vector<8x8xf32>
    %cst_21 = arith.constant dense<0.000000e+00> : vector<8x8xf32>
    %67 = tpu.matmul %63, %66, %cst_21 {dimension_numbers = #tpu.dot_dimension_numbers<[1], [0], [0], [1], [0, 0, 1, 1], [], []>} : vector<8x8xf32>, vector<8x8xf32>, vector<8x8xf32> -> vector<8x8xf32>
    %68 = arith.addf %67, %11 : vector<8x8xf32>
    %cst_22 = arith.constant dense<0xFF800000> : vector<8xf32>
    %69 = vector.multi_reduction <maximumf>, %68, %cst_22 [1] : vector<8x8xf32> to vector<8xf32>
    %70 = vector.shape_cast %69 : vector<8xf32> to vector<8x1xf32>
    %71 = vector.broadcast %70 : vector<8x1xf32> to vector<8x8xf32>
    %72 = arith.subf %68, %71 : vector<8x8xf32>
    %73 = math.exp %72 : vector<8x8xf32>
    %cst_23 = arith.constant dense<0.000000e+00> : vector<8xf32>
    %74 = vector.multi_reduction <add>, %73, %cst_23 [1] : vector<8x8xf32> to vector<8xf32>
    %75 = vector.shape_cast %74 : vector<8xf32> to vector<8x1xf32>
    %76 = tpu.reciprocal %75 {approx = true} : vector<8x1xf32> -> vector<8x1xf32>
    %77 = vector.broadcast %76 : vector<8x1xf32> to vector<8x8xf32>
    %78 = arith.mulf %73, %77 : vector<8x8xf32>
    %cst_24 = arith.constant dense<0.000000e+00> : vector<8x8xf32>
    %79 = tpu.matmul %78, %65, %cst_24 {dimension_numbers = #tpu.dot_dimension_numbers<[1], [0], [0], [1], [0, 0, 1, 1], [], []>} : vector<8x8xf32>, vector<8x8xf32>, vector<8x8xf32> -> vector<8x8xf32>
    %80 = tpu.concatenate %28, %45, %62, %79 in 1 : vector<8x8xf32>, vector<8x8xf32>, vector<8x8xf32>, vector<8x8xf32> -> vector<8x32xf32>
    %81 = arith.truncf %80 : vector<8x32xf32> to vector<8x32xbf16>
    %c0_25 = arith.constant 0 : index
    %c0_26 = arith.constant 0 : index
    %82 = vector.load %arg6[%c0_25, %c0_26] : memref<32x32xbf16, #tpu.memory_space<vmem>>, vector<32x32xbf16>
    %cst_27 = arith.constant dense<0.000000e+00> : vector<8x32xf32>
    %83 = tpu.matmul %81, %82, %cst_27 {dimension_numbers = #tpu.dot_dimension_numbers<[1], [0], [0], [1], [0, 0, 1, 1], [], []>} : vector<8x32xbf16>, vector<32x32xbf16>, vector<8x32xf32> -> vector<8x32xf32>
    %c0_28 = arith.constant 0 : index
    %c0_29 = arith.constant 0 : index
    %84 = vector.load %arg7[%c0_28, %c0_29] : memref<1x32xf32, #tpu.memory_space<vmem>>, vector<1x32xf32>
    %85 = vector.broadcast %84 : vector<1x32xf32> to vector<8x32xf32>
    %86 = arith.addf %83, %85 : vector<8x32xf32>
    %87 = arith.extf %1 : vector<8x32xbf16> to vector<8x32xf32>
    %88 = arith.addf %87, %86 : vector<8x32xf32>
    %cst_30 = arith.constant dense<0.000000e+00> : vector<8xf32>
    %89 = vector.multi_reduction <add>, %88, %cst_30 [1] : vector<8x32xf32> to vector<8xf32>
    %90 = vector.shape_cast %89 : vector<8xf32> to vector<8x1xf32>
    %cst_31 = arith.constant 3.200000e+01 : f32
    %91 = vector.broadcast %cst_31 : f32 to vector<8x1xf32>
    %92 = arith.divf %90, %91 : vector<8x1xf32>
    %93 = vector.broadcast %92 : vector<8x1xf32> to vector<8x32xf32>
    %94 = arith.subf %88, %93 : vector<8x32xf32>
    %95 = arith.mulf %94, %94 : vector<8x32xf32>
    %cst_32 = arith.constant dense<0.000000e+00> : vector<8xf32>
    %96 = vector.multi_reduction <add>, %95, %cst_32 [1] : vector<8x32xf32> to vector<8xf32>
    %97 = vector.shape_cast %96 : vector<8xf32> to vector<8x1xf32>
    %cst_33 = arith.constant 3.200000e+01 : f32
    %98 = vector.broadcast %cst_33 : f32 to vector<8x1xf32>
    %99 = arith.divf %97, %98 : vector<8x1xf32>
    %cst_34 = arith.constant 9.99999974E-6 : f32
    %100 = vector.broadcast %cst_34 : f32 to vector<8x1xf32>
    %101 = arith.addf %99, %100 : vector<8x1xf32>
    %102 = math.rsqrt %101 : vector<8x1xf32>
    %103 = vector.broadcast %102 : vector<8x1xf32> to vector<8x32xf32>
    %104 = arith.mulf %94, %103 : vector<8x32xf32>
    %c0_35 = arith.constant 0 : index
    %c0_36 = arith.constant 0 : index
    %105 = vector.load %arg8[%c0_35, %c0_36] : memref<1x32xf32, #tpu.memory_space<vmem>>, vector<1x32xf32>
    %106 = vector.broadcast %105 : vector<1x32xf32> to vector<8x32xf32>
    %107 = arith.mulf %104, %106 : vector<8x32xf32>
    %c0_37 = arith.constant 0 : index
    %c0_38 = arith.constant 0 : index
    %108 = vector.load %arg9[%c0_37, %c0_38] : memref<1x32xf32, #tpu.memory_space<vmem>>, vector<1x32xf32>
    %109 = vector.broadcast %108 : vector<1x32xf32> to vector<8x32xf32>
    %110 = arith.addf %107, %109 : vector<8x32xf32>
    %111 = arith.truncf %110 : vector<8x32xf32> to vector<8x32xbf16>
    %c0_39 = arith.constant 0 : index
    %c0_40 = arith.constant 0 : index
    %c0_41 = arith.constant 0 : index
    %112 = vector.load %arg10[%c0_39, %c0_40, %c0_41] : memref<1x8x32xbf16, #tpu.memory_space<vmem>>, vector<1x8x32xbf16>
    %113 = vector.shape_cast %112 : vector<1x8x32xbf16> to vector<8x32xbf16>
    %114 = vector.shape_cast %111 : vector<8x32xbf16> to vector<1x8x32xbf16>
    tpu.vector_store %arg10[%c0_39, %c0_40, %c0_41], %114 {strides = array<i32>} : memref<1x8x32xbf16, #tpu.memory_space<vmem>>, vector<1x8x32xbf16>,
    return
  }
  func.func @transform_0(%arg0: i32) -> (i32, i32, i32) {
    %c0_i32 = arith.constant 0 : i32
    %c0_i32_0 = arith.constant 0 : i32
    %c0_i32_1 = arith.constant 0 : i32
    return %arg0, %c0_i32, %c0_i32_0 : i32, i32, i32
  }
  func.func @transform_1(%arg0: i32) -> (i32, i32, i32) {
    %c0_i32 = arith.constant 0 : i32
    %c0_i32_0 = arith.constant 0 : i32
    %c0_i32_1 = arith.constant 0 : i32
    return %arg0, %c0_i32, %c0_i32_0 : i32, i32, i32
  }
  func.func @transform_2(%arg0: i32) -> (i32, i32, i32) {
    %c0_i32 = arith.constant 0 : i32
    %c0_i32_0 = arith.constant 0 : i32
    %c0_i32_1 = arith.constant 0 : i32
    return %arg0, %c0_i32, %c0_i32_0 : i32, i32, i32
  }
  func.func @transform_3(%arg0: i32) -> (i32, i32) {
    %c0_i32 = arith.constant 0 : i32
    %c0_i32_0 = arith.constant 0 : i32
    %c0_i32_1 = arith.constant 0 : i32
    return %c0_i32, %c0_i32_0 : i32, i32
  }
  func.func @transform_4(%arg0: i32) -> (i32, i32) {
    %c0_i32 = arith.constant 0 : i32
    %c0_i32_0 = arith.constant 0 : i32
    %c0_i32_1 = arith.constant 0 : i32
    return %c0_i32, %c0_i32_0 : i32, i32
  }
  func.func @transform_5(%arg0: i32) -> (i32, i32) {
    %c0_i32 = arith.constant 0 : i32
    %c0_i32_0 = arith.constant 0 : i32
    %c0_i32_1 = arith.constant 0 : i32
    return %c0_i32, %c0_i32_0 : i32, i32
  }
  func.func @transform_6(%arg0: i32) -> (i32, i32) {
    %c0_i32 = arith.constant 0 : i32
    %c0_i32_0 = arith.constant 0 : i32
    %c0_i32_1 = arith.constant 0 : i32
    return %c0_i32, %c0_i32_0 : i32, i32
  }
  func.func @transform_7(%arg0: i32) -> (i32, i32) {
    %c0_i32 = arith.constant 0 : i32
    %c0_i32_0 = arith.constant 0 : i32
    %c0_i32_1 = arith.constant 0 : i32
    return %c0_i32, %c0_i32_0 : i32, i32
  }
  func.func @transform_8(%arg0: i32) -> (i32, i32) {
    %c0_i32 = arith.constant 0 : i32
    %c0_i32_0 = arith.constant 0 : i32
    %c0_i32_1 = arith.constant 0 : i32
    return %c0_i32, %c0_i32_0 : i32, i32
  }
  func.func @transform_9(%arg0: i32) -> (i32, i32, i32) {
    %c0_i32 = arith.constant 0 : i32
    %c0_i32_0 = arith.constant 0 : i32
    %c0_i32_1 = arith.constant 0 : i32
    return %arg0, %c0_i32, %c0_i32_0 : i32, i32, i32
  }
}

module attributes {stable_mosaic.version = 11 : i64} {
  func.func @_proj_softmax_kernel(%arg0: i32, %arg1: memref<1x8x32xbf16, #tpu.memory_space<vmem>>, %arg2: memref<32x128xbf16, #tpu.memory_space<vmem>>, %arg3: memref<1x128xf32, #tpu.memory_space<vmem>>, %arg4: memref<1x8x128xf32, #tpu.memory_space<vmem>>) attributes {dimension_semantics = [#tpu.dimension_semantics<parallel>], iteration_bounds = array<i64: 2>, scalar_prefetch = 0 : i64, scratch_operands = 0 : i64, tpu.core_type = #tpu.core_type<tc>, window_params = [{transform_indices = @transform_0, window_bounds = array<i64: 1, 8, 32>}, {pipeline_mode = #tpu.pipeline_mode<synchronous>, transform_indices = @transform_1, window_bounds = array<i64: 32, 128>}, {pipeline_mode = #tpu.pipeline_mode<synchronous>, transform_indices = @transform_2, window_bounds = array<i64: 1, 128>}, {transform_indices = @transform_3, window_bounds = array<i64: 1, 8, 128>}]} {
    %c0 = arith.constant 0 : index
    %c0_0 = arith.constant 0 : index
    %c0_1 = arith.constant 0 : index
    %0 = vector.load %arg1[%c0, %c0_0, %c0_1] : memref<1x8x32xbf16, #tpu.memory_space<vmem>>, vector<1x8x32xbf16>
    %1 = vector.shape_cast %0 : vector<1x8x32xbf16> to vector<8x32xbf16>
    %c0_2 = arith.constant 0 : index
    %c0_3 = arith.constant 0 : index
    %2 = vector.load %arg2[%c0_2, %c0_3] : memref<32x128xbf16, #tpu.memory_space<vmem>>, vector<32x128xbf16>
    %cst = arith.constant dense<0.000000e+00> : vector<8x128xf32>
    %3 = tpu.matmul %1, %2, %cst {dimension_numbers = #tpu.dot_dimension_numbers<[1], [0], [0], [1], [0, 0, 1, 1], [], []>} : vector<8x32xbf16>, vector<32x128xbf16>, vector<8x128xf32> -> vector<8x128xf32>
    %c0_4 = arith.constant 0 : index
    %c0_5 = arith.constant 0 : index
    %4 = vector.load %arg3[%c0_4, %c0_5] : memref<1x128xf32, #tpu.memory_space<vmem>>, vector<1x128xf32>
    %5 = vector.broadcast %4 : vector<1x128xf32> to vector<8x128xf32>
    %6 = arith.addf %3, %5 : vector<8x128xf32>
    %cst_6 = arith.constant dense<0xFF800000> : vector<8xf32>
    %7 = vector.multi_reduction <maximumf>, %6, %cst_6 [1] : vector<8x128xf32> to vector<8xf32>
    %8 = vector.shape_cast %7 : vector<8xf32> to vector<8x1xf32>
    %9 = vector.broadcast %8 : vector<8x1xf32> to vector<8x128xf32>
    %10 = arith.subf %6, %9 : vector<8x128xf32>
    %11 = math.exp %10 : vector<8x128xf32>
    %cst_7 = arith.constant dense<0.000000e+00> : vector<8xf32>
    %12 = vector.multi_reduction <add>, %11, %cst_7 [1] : vector<8x128xf32> to vector<8xf32>
    %13 = vector.shape_cast %12 : vector<8xf32> to vector<8x1xf32>
    %14 = vector.broadcast %13 : vector<8x1xf32> to vector<8x128xf32>
    %15 = arith.divf %11, %14 : vector<8x128xf32>
    %c0_8 = arith.constant 0 : index
    %c0_9 = arith.constant 0 : index
    %c0_10 = arith.constant 0 : index
    %16 = vector.load %arg4[%c0_8, %c0_9, %c0_10] : memref<1x8x128xf32, #tpu.memory_space<vmem>>, vector<1x8x128xf32>
    %17 = vector.shape_cast %16 : vector<1x8x128xf32> to vector<8x128xf32>
    %18 = vector.shape_cast %15 : vector<8x128xf32> to vector<1x8x128xf32>
    tpu.vector_store %arg4[%c0_8, %c0_9, %c0_10], %18 {strides = array<i32>} : memref<1x8x128xf32, #tpu.memory_space<vmem>>, vector<1x8x128xf32>,
    return
  }
  func.func @transform_0(%arg0: i32) -> (i32, i32, i32) {
    %c0_i32 = arith.constant 0 : i32
    %c0_i32_0 = arith.constant 0 : i32
    %c0_i32_1 = arith.constant 0 : i32
    return %arg0, %c0_i32, %c0_i32_0 : i32, i32, i32
  }
  func.func @transform_1(%arg0: i32) -> (i32, i32) {
    %c0_i32 = arith.constant 0 : i32
    %c0_i32_0 = arith.constant 0 : i32
    %c0_i32_1 = arith.constant 0 : i32
    return %c0_i32, %c0_i32_0 : i32, i32
  }
  func.func @transform_2(%arg0: i32) -> (i32, i32) {
    %c0_i32 = arith.constant 0 : i32
    %c0_i32_0 = arith.constant 0 : i32
    %c0_i32_1 = arith.constant 0 : i32
    return %c0_i32, %c0_i32_0 : i32, i32
  }
  func.func @transform_3(%arg0: i32) -> (i32, i32, i32) {
    %c0_i32 = arith.constant 0 : i32
    %c0_i32_0 = arith.constant 0 : i32
    %c0_i32_1 = arith.constant 0 : i32
    return %arg0, %c0_i32, %c0_i32_0 : i32, i32, i32
  }
}

</mosaic_0001>

<llo_original>
// kernel: transformer_forward.12
$region0: #{transformer_forward.12}
  #allocation0 [shape = 'u32[]', space=smem, size = 0x4, offset = 0x4, fixed_abs, tag = 'smem constant byte address 0x4 - core index']
  #allocation1 [shape = 'u32[144,128]{1,0:T(1,128)}', space=vmem, size = 0x12000, scoped, tag = 'internal scratch']
  %s0 = inlined_call_operand.vmem [shape: bf16[2,8,32], index: 0, kind: input, shape index: {}]
  %s1 = inlined_call_operand.vmem [shape: bf16[32,128], index: 1, kind: input, shape index: {}]
  %s2 = inlined_call_operand.vmem [shape: f32[1,128], index: 2, kind: input, shape index: {}]
  %s3 = inlined_call_operand.vmem [shape: bf16[128,32], index: 3, kind: input, shape index: {}]
  %s4 = inlined_call_operand.vmem [shape: f32[1,32], index: 4, kind: input, shape index: {}]
  %s5 = inlined_call_operand.vmem [shape: f32[1,32], index: 5, kind: input, shape index: {}]
  %s6 = inlined_call_operand.vmem [shape: f32[1,32], index: 6, kind: input, shape index: {}]
  %s7 = inlined_call_operand.vmem [shape: bf16[2,8,32], index: 7, kind: output, shape index: {}]
  %s8 = sld [smem:[#allocation0]]
  $region61: #{transformer_forward.12} parent=0
    _
  %s10 = ssub.s32 1, %s8
  %s11 = scalar_select 0, %s10, %s8
  loop: start=0, step=1, limit=4
  $region2: #{transformer_forward.12} parent=0 // loop_pre_header
    _
  $region3: #{transformer_forward.12} parent=0 // loop_header
    %s13 = sphi 0, %s17
    %p14 = scmp.ge.s32.totalorder %s13, 4
    %s23 = sphi 0, %s25
    %s26 = sphi 0, %s23
    %s27 = sphi 0, %s26
    %s43 = sphi 0, %s27
    %s47 = sphi 0, %s47
    %s49 = sphi 0, %s47
    %s50 = sphi 0, %s49
    %s64 = sphi 0, %s50
    %s68 = sphi 0, %s68
    %s70 = sphi 0, %s68
    %s71 = sphi 0, %s70
    %s85 = sphi 0, %s71
    %s89 = sphi 0, %s89
    %s91 = sphi 0, %s89
    %s92 = sphi 0, %s91
    %s106 = sphi 0, %s92
    %s110 = sphi 0, %s110
    %s112 = sphi 0, %s110
    %s113 = sphi 0, %s112
    %s127 = sphi 0, %s113
    %s131 = sphi 0, %s131
    %s133 = sphi 0, %s131
    %s134 = sphi 0, %s133
    %s148 = sphi 0, %s134
    %s152 = sphi 0, %s152
    %s154 = sphi 0, %s152
    %s155 = sphi 0, %s154
    %s169 = sphi 0, %s155
    %s175 = sphi 0, %s177
    %s178 = sphi 0, %s175
    %s179 = sphi 0, %s178
    %s195 = sphi 0, %s179
  $region4: #{transformer_forward.12} parent=0 // loop_header_branch
    %16 = sbr.rel (%p14) target = $region8
  $region5: #{transformer_forward.12} parent=0 // loop_body
    %s18 = ssub.s32 %s13, 1
    %s19 = ssub.s32 %s13, 2
    %s20 = sadd.s32 %s13, 1
    %s21 = ssub.s32 %s13, %s20
    %p22 = scmp.eq.s32.totalorder %s21, 0
    %s24 = sadd.s32 %s23, 1
    %s25 = scalar_select %p22, %s23, %s24
    %p28 = pneg %p22
    %p29 = scmp.eq.s32.totalorder %s13, 1
    %p30 = por %p28, %p29
    %p31 = scmp.ne.s32.totalorder %s23, %s26
    %p32 = scmp.eq.s32.totalorder %s13, 0
    %p33 = por %p31, %p32
    %p34 = scmp.ne.s32.totalorder %s23, %s26
    %p35 = scmp.eq.s32.totalorder %s18, 1
    %p36 = por %p34, %p35
    %p37 = scmp.ne.s32.totalorder %s26, %s27
    %p38 = scmp.eq.s32.totalorder %s18, 0
    %p39 = por %p37, %p38
    %p40 = scmp.ne.s32.totalorder %s26, %s27
    %p41 = scmp.eq.s32.totalorder %s19, 1
    %p42 = por %p40, %p41
    %p44 = scmp.ne.s32.totalorder %s27, %s43
    %p45 = scmp.eq.s32.totalorder %s19, 0
    %p46 = por %p44, %p45
    %s48 = sadd.s32 %s47, 1
    %p51 = scmp.eq.s32.totalorder %s13, 1
    %p52 = scmp.ne.s32.totalorder %s47, %s49
    %p53 = scmp.eq.s32.totalorder %s13, 0
    %p54 = por %p52, %p53
    %p55 = scmp.ne.s32.totalorder %s47, %s49
    %p56 = scmp.eq.s32.totalorder %s18, 1
    %p57 = por %p55, %p56
    %p58 = scmp.ne.s32.totalorder %s49, %s50
    %p59 = scmp.eq.s32.totalorder %s18, 0
    %p60 = por %p58, %p59
    %p61 = scmp.ne.s32.totalorder %s49, %s50
    %p62 = scmp.eq.s32.totalorder %s19, 1
    %p63 = por %p61, %p62
    %p65 = scmp.ne.s32.totalorder %s50, %s64
    %p66 = scmp.eq.s32.totalorder %s19, 0
    %p67 = por %p65, %p66
    %s69 = sadd.s32 %s68, 1
    %p72 = scmp.eq.s32.totalorder %s13, 1
    %p73 = scmp.ne.s32.totalorder %s68, %s70
    %p74 = scmp.eq.s32.totalorder %s13, 0
    %p75 = por %p73, %p74
    %p76 = scmp.ne.s32.totalorder %s68, %s70
    %p77 = scmp.eq.s32.totalorder %s18, 1
    %p78 = por %p76, %p77
    %p79 = scmp.ne.s32.totalorder %s70, %s71
    %p80 = scmp.eq.s32.totalorder %s18, 0
    %p81 = por %p79, %p80
    %p82 = scmp.ne.s32.totalorder %s70, %s71
    %p83 = scmp.eq.s32.totalorder %s19, 1
    %p84 = por %p82, %p83
    %p86 = scmp.ne.s32.totalorder %s71, %s85
    %p87 = scmp.eq.s32.totalorder %s19, 0
    %p88 = por %p86, %p87
    %s90 = sadd.s32 %s89, 1
    %p93 = scmp.eq.s32.totalorder %s13, 1
    %p94 = scmp.ne.s32.totalorder %s89, %s91
    %p95 = scmp.eq.s32.totalorder %s13, 0
    %p96 = por %p94, %p95
    %p97 = scmp.ne.s32.totalorder %s89, %s91
    %p98 = scmp.eq.s32.totalorder %s18, 1
    %p99 = por %p97, %p98
    %p100 = scmp.ne.s32.totalorder %s91, %s92
    %p101 = scmp.eq.s32.totalorder %s18, 0
    %p102 = por %p100, %p101
    %p103 = scmp.ne.s32.totalorder %s91, %s92
    %p104 = scmp.eq.s32.totalorder %s19, 1
    %p105 = por %p103, %p104
    %p107 = scmp.ne.s32.totalorder %s92, %s106
    %p108 = scmp.eq.s32.totalorder %s19, 0
    %p109 = por %p107, %p108
    %s111 = sadd.s32 %s110, 1
    %p114 = scmp.eq.s32.totalorder %s13, 1
    %p115 = scmp.ne.s32.totalorder %s110, %s112
    %p116 = scmp.eq.s32.totalorder %s13, 0
    %p117 = por %p115, %p116
    %p118 = scmp.ne.s32.totalorder %s110, %s112
    %p119 = scmp.eq.s32.totalorder %s18, 1
    %p120 = por %p118, %p119
    %p121 = scmp.ne.s32.totalorder %s112, %s113
    %p122 = scmp.eq.s32.totalorder %s18, 0
    %p123 = por %p121, %p122
    %p124 = scmp.ne.s32.totalorder %s112, %s113
    %p125 = scmp.eq.s32.totalorder %s19, 1
    %p126 = por %p124, %p125
    %p128 = scmp.ne.s32.totalorder %s113, %s127
    %p129 = scmp.eq.s32.totalorder %s19, 0
    %p130 = por %p128, %p129
    %s132 = sadd.s32 %s131, 1
    %p135 = scmp.eq.s32.totalorder %s13, 1
    %p136 = scmp.ne.s32.totalorder %s131, %s133
    %p137 = scmp.eq.s32.totalorder %s13, 0
    %p138 = por %p136, %p137
    %p139 = scmp.ne.s32.totalorder %s131, %s133
    %p140 = scmp.eq.s32.totalorder %s18, 1
    %p141 = por %p139, %p140
    %p142 = scmp.ne.s32.totalorder %s133, %s134
    %p143 = scmp.eq.s32.totalorder %s18, 0
    %p144 = por %p142, %p143
    %p145 = scmp.ne.s32.totalorder %s133, %s134
    %p146 = scmp.eq.s32.totalorder %s19, 1
    %p147 = por %p145, %p146
    %p149 = scmp.ne.s32.totalorder %s134, %s148
    %p150 = scmp.eq.s32.totalorder %s19, 0
    %p151 = por %p149, %p150
    %s153 = sadd.s32 %s152, 1
    %p156 = scmp.eq.s32.totalorder %s13, 1
    %p157 = scmp.ne.s32.totalorder %s152, %s154
    %p158 = scmp.eq.s32.totalorder %s13, 0
    %p159 = por %p157, %p158
    %p160 = scmp.ne.s32.totalorder %s152, %s154
    %p161 = scmp.eq.s32.totalorder %s18, 1
    %p162 = por %p160, %p161
    %p163 = scmp.ne.s32.totalorder %s154, %s155
    %p164 = scmp.eq.s32.totalorder %s18, 0
    %p165 = por %p163, %p164
    %p166 = scmp.ne.s32.totalorder %s154, %s155
    %p167 = scmp.eq.s32.totalorder %s19, 1
    %p168 = por %p166, %p167
    %p170 = scmp.ne.s32.totalorder %s155, %s169
    %p171 = scmp.eq.s32.totalorder %s19, 0
    %p172 = por %p170, %p171
    %s173 = ssub.s32 %s13, %s20
    %p174 = scmp.eq.s32.totalorder %s173, 0
    %s176 = sadd.s32 %s175, 1
    %s177 = scalar_select %p174, %s175, %s176
    %p180 = pneg %p174
    %p181 = scmp.eq.s32.totalorder %s13, 1
    %p182 = por %p180, %p181
    %p183 = scmp.ne.s32.totalorder %s175, %s178
    %p184 = scmp.eq.s32.totalorder %s13, 0
    %p185 = por %p183, %p184
    %p186 = scmp.ne.s32.totalorder %s175, %s178
    %p187 = scmp.eq.s32.totalorder %s18, 1
    %p188 = por %p186, %p187
    %p189 = scmp.ne.s32.totalorder %s178, %s179
    %p190 = scmp.eq.s32.totalorder %s18, 0
    %p191 = por %p189, %p190
    %p192 = scmp.ne.s32.totalorder %s178, %s179
    %p193 = scmp.eq.s32.totalorder %s19, 1
    %p194 = por %p192, %p193
    %p196 = scmp.ne.s32.totalorder %s179, %s195
    %p197 = scmp.eq.s32.totalorder %s19, 0
    %p198 = por %p196, %p197
    %p199 = scmp.le.s32.totalorder 1, %s13
    %p200 = scmp.lt.s32.totalorder %s13, 3
    %p201 = pnand %p199, %p200
    %p202 = pneg %p201
    // Predicated region
    $region9: #{transformer_forward.12} parent=5 // pred_check
      _
    $region10: #{transformer_forward.12} parent=5 // pred_check_branch
      %204 = sbr.rel (%p201) target = $region12
    $region11: #{transformer_forward.12} parent=5 // pred_region
      %s205 = ssub.s32 %s13, 1
      // Predicated region
      $region13: #{transformer_forward.12} parent=11 // pred_check
        %p206 = pneg %p60
      $region14: #{transformer_forward.12} parent=11 // pred_check_branch
        %208 = sbr.rel (%p206) target = $region16
      $region15: #{transformer_forward.12} parent=11 // pred_region
        _
      $region16: #{transformer_forward.12} parent=11 // pred_fallthru
        _
      // Predicated region
      $region17: #{transformer_forward.12} parent=11 // pred_check
        %p209 = pneg %p81
      $region18: #{transformer_forward.12} parent=11 // pred_check_branch
        %211 = sbr.rel (%p209) target = $region20
      $region19: #{transformer_forward.12} parent=11 // pred_region
        _
      $region20: #{transformer_forward.12} parent=11 // pred_fallthru
        _
      // Predicated region
      $region21: #{transformer_forward.12} parent=11 // pred_check
        %p212 = pneg %p102
      $region22: #{transformer_forward.12} parent=11 // pred_check_branch
        %214 = sbr.rel (%p212) target = $region24
      $region23: #{transformer_forward.12} parent=11 // pred_region
        _
      $region24: #{transformer_forward.12} parent=11 // pred_fallthru
        _
      // Predicated region
      $region25: #{transformer_forward.12} parent=11 // pred_check
        %p215 = pneg %p123
      $region26: #{transformer_forward.12} parent=11 // pred_check_branch
        %217 = sbr.rel (%p215) target = $region28
      $region27: #{transformer_forward.12} parent=11 // pred_region
        _
      $region28: #{transformer_forward.12} parent=11 // pred_fallthru
        _
      // Predicated region
      $region29: #{transformer_forward.12} parent=11 // pred_check
        %p218 = pneg %p144
      $region30: #{transformer_forward.12} parent=11 // pred_check_branch
        %220 = sbr.rel (%p218) target = $region32
      $region31: #{transformer_forward.12} parent=11 // pred_region
        _
      $region32: #{transformer_forward.12} parent=11 // pred_fallthru
        _
      // Predicated region
      $region33: #{transformer_forward.12} parent=11 // pred_check
        %p221 = pneg %p165
      $region34: #{transformer_forward.12} parent=11 // pred_check_branch
        %223 = sbr.rel (%p221) target = $region36
      $region35: #{transformer_forward.12} parent=11 // pred_region
        _
      $region36: #{transformer_forward.12} parent=11 // pred_fallthru
        _
    $region12: #{transformer_forward.12} parent=5 // pred_fallthru
      _
    %p224 = scmp.lt.s32.totalorder %s13, 2
    // Predicated region
    $region37: #{transformer_forward.12} parent=5 // pred_check
      %p225 = pneg %p224
    $region38: #{transformer_forward.12} parent=5 // pred_check_branch
      %227 = sbr.rel (%p225) target = $region40
    $region39: #{transformer_forward.12} parent=5 // pred_region
      // Predicated region
      $region41: #{transformer_forward.12} parent=39 // pred_check
        %p228 = pneg %p33
      $region42: #{transformer_forward.12} parent=39 // pred_check_branch
        %230 = sbr.rel (%p228) target = $region44
      $region43: #{transformer_forward.12} parent=39 // pred_region
        %p231 = scmp.lt.s32.totalorder %s13, 1
        %s232 = scalar_select %p231, %s13, 1
        %s233 = smul.addr %s232, 4
        %s234 = scalar_lea.vmem %s0, %s233
      $region44: #{transformer_forward.12} parent=39 // pred_fallthru
        _
    $region40: #{transformer_forward.12} parent=5 // pred_fallthru
      _
    %p235 = scmp.le.s32.totalorder 1, %s13
    %p236 = scmp.lt.s32.totalorder %s13, 3
    %p237 = pnand %p235, %p236
    %p238 = pneg %p237
    // Predicated region
    $region45: #{transformer_forward.12} parent=5 // pred_check
      _
    $region46: #{transformer_forward.12} parent=5 // pred_check_branch
      %240 = sbr.rel (%p237) target = $region48
    $region47: #{transformer_forward.12} parent=5 // pred_region
      %s241 = ssub.s32 %s13, 1
      %p242 = scmp.lt.s32.totalorder %s18, 1
      %s243 = scalar_select %p242, %s18, 1
      %s244 = smul.addr %s243, 4
      %s245 = scalar_lea.vmem %s0, %s244
      %p246 = pneg %p39
      %p247 = pneg %p36
      %p248 = pneg %p60
      %p249 = pneg %p57
      %p250 = pneg %p81
      %p251 = pneg %p78
      %p252 = pneg %p102
      %p253 = pneg %p99
      %p254 = pneg %p123
      %p255 = pneg %p120
      %p256 = pneg %p144
      %p257 = pneg %p141
      %p258 = pneg %p165
      %p259 = pneg %p162
      %p260 = pneg %p191
      %p261 = pneg %p188
      %p262 = scmp.lt.s32.totalorder %s18, 1
      %s263 = scalar_select %p262, %s18, 1
      %s264 = smul.addr %s263, 4
      %s265 = scalar_lea.vmem %s7, %s264
      %p266 = scmp.lt.s32.totalorder %s18, 1
      %s267 = scalar_select %p266, %s18, 1
      %s268 = smul.addr %s267, 4
      %s269 = scalar_lea.vmem %s0, %s268
      %p270 = scmp.lt.s32.totalorder %s18, 1
      %s271 = scalar_select %p270, %s18, 1
      %s272 = smul.addr %s271, 4
      %s273 = scalar_lea.vmem %s7, %s272
      %v275 = vld [vmem:[%s269] sm:$0xf]
      %v276 = vld [vmem:[%s1] sm:$0xf]
      %v277 = vld [vmem:[%s1 + $0x4] sm:$0xf]
      %v278 = vld [vmem:[%s1 + $0x8] sm:$0xf]
      %v279 = vld [vmem:[%s1 + $0xc] sm:$0xf]
      %v280 = vld [vmem:[%s2] sm:$0x1]
      %v282 = vlaneseq
      %v283 = vshrl.u32 %v282, 7
      %v284 = vsub.s32 0, %v283
      %v285 = vrot.slane %v280, %v284
      %v291 = vunpack.c.l.b16 %v276
      %v292 = vunpack.c.l.b16 %v277
      %v293 = vunpack.c.l.b16 %v278
      %v294 = vunpack.c.l.b16 %v279
      %v295 = vpack.c.b16 %v292, %v291
      %v296 = vpack.c.b16 %v294, %v293
      %vm299 = vcmask 261120
      %v301 = vsel %vm299, %v275, 0
      %303 = vmatprep.subr.bf16.mxu0 0
      %304 = vmatpush1.bf16.msra.mxu0 %v295
      %305 = vmatprep.subr.bf16.mxu0 0
      %306 = vmatpush1.bf16.msra.mxu0 %v296
      %307 = vmatprep.subr.bf16.mxu0 0
      %308 = vmatpush1.bf16.msra.mxu0 0
      %309 = vmatprep.subr.bf16.mxu0 0
      %310 = vmatpush1.bf16.msra.mxu0 0
      %311 = vmatprep.subr.bf16.mxu0 0
      %312 = vmatpush1.bf16.msra.mxu0 0
      %313 = vmatprep.subr.bf16.mxu0 0
      %314 = vmatpush1.bf16.msra.mxu0 0
      %315 = vmatprep.subr.bf16.mxu0 0
      %316 = vmatpush1.bf16.msra.mxu0 0
      %317 = vmatprep.subr.bf16.mxu0 0
      %318 = vmatpush1.bf16.msra.mxu0 0
      %319 = vmatprep.subr.bf16.mxu0 0
      %320 = vmatpush1.bf16.msra.mxu0 0
      %321 = vmatprep.subr.bf16.mxu0 0
      %322 = vmatpush1.bf16.msra.mxu0 0
      %323 = vmatprep.subr.bf16.mxu0 0
      %324 = vmatpush1.bf16.msra.mxu0 0
      %325 = vmatprep.subr.bf16.mxu0 0
      %326 = vmatpush1.bf16.msra.mxu0 0
      %327 = vmatprep.subr.bf16.mxu0 0
      %328 = vmatpush1.bf16.msra.mxu0 0
      %329 = vmatprep.subr.bf16.mxu0 0
      %330 = vmatpush1.bf16.msra.mxu0 0
      %331 = vmatprep.subr.bf16.mxu0 0
      %332 = vmatpush1.bf16.msra.mxu0 0
      %333 = vmatprep.subr.bf16.mxu0 0
      %334 = vmatpush1.bf16.msra.mxu0 0
      %335 = vmatprep.mubr.bf16.mxu0 0
      %336 = vmatmul.mubr.bf16.gmra.mrb[0].mxu0 %v301
      %v337 = vpop.f32.mrb[0].mxu0
      %v338 = vadd.f32 %v285, %v337
      %v339 = vpop.f32.mrb[0].mxu0
      %v340 = vpop.f32.mrb[0].mxu0
      %v341 = vpop.f32.mrb[0].mxu0
      %342 = vdwg.mxu0
      %v343 = vmax.f32 %v338, 0.0
      %v344 = vpack.c.bf16 %v343, %v343
      %v345 = vld [vmem:[%s3] sm:$0xf]
      %v346 = vld [vmem:[%s3 + $0x4] sm:$0xf]
      %v347 = vld [vmem:[%s3 + $0x8] sm:$0xf]
      %v348 = vld [vmem:[%s3 + $0xc] sm:$0xf]
      %v349 = vld [vmem:[%s3 + $0x10] sm:$0xf]
      %v350 = vld [vmem:[%s3 + $0x14] sm:$0xf]
      %v351 = vld [vmem:[%s3 + $0x18] sm:$0xf]
      %v352 = vld [vmem:[%s3 + $0x1c] sm:$0xf]
      %v353 = vld [vmem:[%s3 + $0x20] sm:$0xf]
      %v354 = vld [vmem:[%s3 + $0x24] sm:$0xf]
      %v355 = vld [vmem:[%s3 + $0x28] sm:$0xf]
      %v356 = vld [vmem:[%s3 + $0x2c] sm:$0xf]
      %v357 = vld [vmem:[%s3 + $0x30] sm:$0xf]
      %v358 = vld [vmem:[%s3 + $0x34] sm:$0xf]
      %v359 = vld [vmem:[%s3 + $0x38] sm:$0xf]
      %v360 = vld [vmem:[%s3 + $0x3c] sm:$0xf]
      %v361 = vld [vmem:[%s4] sm:$0x1]
      %v363 = vlaneseq
      %v364 = vshrl.u32 %v363, 7
      %v365 = vsub.s32 0, %v364
      %v366 = vrot.slane %v361, %v365
      %v384 = vunpack.c.l.b16 %v345
      %v385 = vunpack.c.l.b16 %v346
      %v386 = vunpack.c.l.b16 %v347
      %v387 = vunpack.c.l.b16 %v348
      %v388 = vunpack.c.l.b16 %v349
      %v389 = vunpack.c.l.b16 %v350
      %v390 = vunpack.c.l.b16 %v351
      %v391 = vunpack.c.l.b16 %v352
      %v392 = vunpack.c.l.b16 %v353
      %v393 = vunpack.c.l.b16 %v354
      %v394 = vunpack.c.l.b16 %v355
      %v395 = vunpack.c.l.b16 %v356
      %v396 = vunpack.c.l.b16 %v357
      %v397 = vunpack.c.l.b16 %v358
      %v398 = vunpack.c.l.b16 %v359
      %v399 = vunpack.c.l.b16 %v360
      %v400 = vpack.c.b16 %v385, %v384
      %v401 = vpack.c.b16 %v387, %v386
      %v402 = vpack.c.b16 %v389, %v388
      %v403 = vpack.c.b16 %v391, %v390
      %v404 = vpack.c.b16 %v393, %v392
      %v405 = vpack.c.b16 %v395, %v394
      %v406 = vpack.c.b16 %v397, %v396
      %v407 = vpack.c.b16 %v399, %v398
      %416 = vmatprep.subr.bf16.mxu0 0
      %417 = vmatpush1.bf16.msra.mxu0 %v400
      %418 = vmatprep.subr.bf16.mxu0 0
      %419 = vmatpush1.bf16.msra.mxu0 %v401
      %420 = vmatprep.subr.bf16.mxu0 0
      %421 = vmatpush1.bf16.msra.mxu0 %v402
      %422 = vmatprep.subr.bf16.mxu0 0
      %423 = vmatpush1.bf16.msra.mxu0 %v403
      %424 = vmatprep.subr.bf16.mxu0 0
      %425 = vmatpush1.bf16.msra.mxu0 %v404
      %426 = vmatprep.subr.bf16.mxu0 0
      %427 = vmatpush1.bf16.msra.mxu0 %v405
      %428 = vmatprep.subr.bf16.mxu0 0
      %429 = vmatpush1.bf16.msra.mxu0 %v406
      %430 = vmatprep.subr.bf16.mxu0 0
      %431 = vmatpush1.bf16.msra.mxu0 %v407
      %432 = vmatprep.subr.bf16.mxu0 0
      %433 = vmatpush1.bf16.msra.mxu0 0
      %434 = vmatprep.subr.bf16.mxu0 0
      %435 = vmatpush1.bf16.msra.mxu0 0
      %436 = vmatprep.subr.bf16.mxu0 0
      %437 = vmatpush1.bf16.msra.mxu0 0
      %438 = vmatprep.subr.bf16.mxu0 0
      %439 = vmatpush1.bf16.msra.mxu0 0
      %440 = vmatprep.subr.bf16.mxu0 0
      %441 = vmatpush1.bf16.msra.mxu0 0
      %442 = vmatprep.subr.bf16.mxu0 0
      %443 = vmatpush1.bf16.msra.mxu0 0
      %444 = vmatprep.subr.bf16.mxu0 0
      %445 = vmatpush1.bf16.msra.mxu0 0
      %446 = vmatprep.subr.bf16.mxu0 0
      %447 = vmatpush1.bf16.msra.mxu0 0
      %448 = vmatprep.mubr.bf16.mxu0 0
      %449 = vmatmul.mubr.bf16.gmra.mrb[0].mxu0 %v344
      %v450 = vpop.f32.mrb[0].mxu0
      %v451 = vadd.f32 %v366, %v450
      %v452 = vpop.f32.mrb[0].mxu0
      %v453 = vpop.f32.mrb[0].mxu0
      %v454 = vpop.f32.mrb[0].mxu0
      %455 = vdwg.mxu0
      %v456 = vunpack.c.l.bf16 %v275
      %v457 = vadd.f32 %v456, %v451
      %v458 = vsel %vm299, %v457, 0.0
      %459 = vadd.xlane.f32.xlu0 %v458
      %v460 = vpop.xlane.xlu0 %459
      %v461 = vrcp.pop 32.0
      %v462 = vmul.f32 %v460, %v461
      %v463 = vsub.f32 %v457, %v462
      %v464 = vmul.f32 %v463, %v463
      %v465 = vsel %vm299, %v464, 0.0
      %466 = vadd.xlane.f32.xlu0 %v465
      %v467 = vpop.xlane.xlu0 %466
      %v468 = vmul.f32 %v467, %v461
      %v469 = vadd.f32 %v468, 1e-05
      %v470 = vrsqrt.pop %v469
      %v471 = vmul.f32 %v463, %v470
      %v472 = vld [vmem:[%s5] sm:$0x1]
      %v474 = vlaneseq
      %v475 = vshrl.u32 %v474, 7
      %v476 = vsub.s32 0, %v475
      %v477 = vrot.slane %v472, %v476
      %v479 = vmul.f32 %v471, %v477
      %v480 = vld [vmem:[%s6] sm:$0x1]
      %v482 = vlaneseq
      %v483 = vshrl.u32 %v482, 7
      %v484 = vsub.s32 0, %v483
      %v485 = vrot.slane %v480, %v484
      %v487 = vadd.f32 %v479, %v485
      %v488 = vpack.c.bf16 %v487, %v487
      %vm489 = vcmask 257024
      %490 = vst.msk [vmem:[%s273] sm:$0xf] %vm489, %v488
      %p491 = scmp.lt.s32.totalorder %s18, 1
      %s492 = scalar_select %p491, %s18, 1
      %s493 = smul.addr %s492, 4
      %s494 = scalar_lea.vmem %s7, %s493
      // Predicated region
      $region49: #{transformer_forward.12} parent=47 // pred_check
        %p495 = pneg %p188
      $region50: #{transformer_forward.12} parent=47 // pred_check_branch
        %497 = sbr.rel (%p495) target = $region52
      $region51: #{transformer_forward.12} parent=47 // pred_region
        _
      $region52: #{transformer_forward.12} parent=47 // pred_fallthru
        _
    $region48: #{transformer_forward.12} parent=5 // pred_fallthru
      _
    %p498 = scmp.le.s32.totalorder 2, %s13
    // Predicated region
    $region53: #{transformer_forward.12} parent=5 // pred_check
      %p499 = pneg %p498
    $region54: #{transformer_forward.12} parent=5 // pred_check_branch
      %501 = sbr.rel (%p499) target = $region56
    $region55: #{transformer_forward.12} parent=5 // pred_region
      %s502 = ssub.s32 %s13, 2
      // Predicated region
      $region57: #{transformer_forward.12} parent=55 // pred_check
        %p503 = pneg %p194
      $region58: #{transformer_forward.12} parent=55 // pred_check_branch
        %505 = sbr.rel (%p503) target = $region60
      $region59: #{transformer_forward.12} parent=55 // pred_region
        %p506 = scmp.lt.s32.totalorder %s19, 1
        %s507 = scalar_select %p506, %s19, 1
        %s508 = smul.addr %s507, 4
        %s509 = scalar_lea.vmem %s7, %s508
      $region60: #{transformer_forward.12} parent=55 // pred_fallthru
        _
    $region56: #{transformer_forward.12} parent=5 // pred_fallthru
      _
  $region6: #{transformer_forward.12} parent=0 // loop_footer
    %s17 = sadd.s32 1, %s13
  $region7: #{transformer_forward.12} parent=0 // loop_footer_branch
    %12 = sbr.rel target = $region3
  $region8: #{transformer_forward.12} parent=0 // loop_exit
    _

// kernel: transformer_forward.11
$region0: #{transformer_forward.11}
  #allocation0 [shape = 'u32[]', space=smem, size = 0x4, offset = 0x4, fixed_abs, tag = 'smem constant byte address 0x4 - core index']
  #allocation1 [shape = 'u32[144,128]{1,0:T(1,128)}', space=vmem, size = 0x12000, scoped, tag = 'internal scratch']
  %s0 = inlined_call_operand.vmem [shape: bf16[2,8,32], index: 0, kind: input, shape index: {}, may-alias: {0,1}]
  %s1 = inlined_call_operand.vmem [shape: bf16[2,8,32], index: 1, kind: input, shape index: {}, may-alias: {0,1}]
  %s2 = inlined_call_operand.vmem [shape: f32[2,1,8], index: 2, kind: input, shape index: {}]
  %s3 = inlined_call_operand.vmem [shape: bf16[32,96], index: 3, kind: input, shape index: {}]
  %s4 = inlined_call_operand.vmem [shape: f32[1,96], index: 4, kind: input, shape index: {}]
  %s5 = inlined_call_operand.vmem [shape: bf16[32,32], index: 5, kind: input, shape index: {}]
  %s6 = inlined_call_operand.vmem [shape: f32[1,32], index: 6, kind: input, shape index: {}]
  %s7 = inlined_call_operand.vmem [shape: f32[1,32], index: 7, kind: input, shape index: {}]
  %s8 = inlined_call_operand.vmem [shape: f32[1,32], index: 8, kind: input, shape index: {}]
  %s9 = inlined_call_operand.vmem [shape: bf16[2,8,32], index: 9, kind: output, shape index: {}]
  %s10 = sld [smem:[#allocation0]]
  $region69: #{transformer_forward.11} parent=0
    _
  %s12 = ssub.s32 1, %s10
  %s13 = scalar_select 0, %s12, %s10
  loop: start=0, step=1, limit=4
  $region2: #{transformer_forward.11} parent=0 // loop_pre_header
    _
  $region3: #{transformer_forward.11} parent=0 // loop_header
    %s15 = sphi 0, %s19
    %p16 = scmp.ge.s32.totalorder %s15, 4
    %s25 = sphi 0, %s27
    %s28 = sphi 0, %s25
    %s29 = sphi 0, %s28
    %s45 = sphi 0, %s29
    %s51 = sphi 0, %s53
    %s54 = sphi 0, %s51
    %s55 = sphi 0, %s54
    %s71 = sphi 0, %s55
    %s77 = sphi 0, %s79
    %s80 = sphi 0, %s77
    %s81 = sphi 0, %s80
    %s97 = sphi 0, %s81
    %s101 = sphi 0, %s101
    %s103 = sphi 0, %s101
    %s104 = sphi 0, %s103
    %s118 = sphi 0, %s104
    %s122 = sphi 0, %s122
    %s124 = sphi 0, %s122
    %s125 = sphi 0, %s124
    %s139 = sphi 0, %s125
    %s143 = sphi 0, %s143
    %s145 = sphi 0, %s143
    %s146 = sphi 0, %s145
    %s160 = sphi 0, %s146
    %s164 = sphi 0, %s164
    %s166 = sphi 0, %s164
    %s167 = sphi 0, %s166
    %s181 = sphi 0, %s167
    %s185 = sphi 0, %s185
    %s187 = sphi 0, %s185
    %s188 = sphi 0, %s187
    %s202 = sphi 0, %s188
    %s206 = sphi 0, %s206
    %s208 = sphi 0, %s206
    %s209 = sphi 0, %s208
    %s223 = sphi 0, %s209
    %s229 = sphi 0, %s231
    %s232 = sphi 0, %s229
    %s233 = sphi 0, %s232
    %s249 = sphi 0, %s233
  $region4: #{transformer_forward.11} parent=0 // loop_header_branch
    %18 = sbr.rel (%p16) target = $region8
  $region5: #{transformer_forward.11} parent=0 // loop_body
    %s20 = ssub.s32 %s15, 1
    %s21 = ssub.s32 %s15, 2
    %s22 = sadd.s32 %s15, 1
    %s23 = ssub.s32 %s15, %s22
    %p24 = scmp.eq.s32.totalorder %s23, 0
    %s26 = sadd.s32 %s25, 1
    %s27 = scalar_select %p24, %s25, %s26
    %p30 = pneg %p24
    %p31 = scmp.eq.s32.totalorder %s15, 1
    %p32 = por %p30, %p31
    %p33 = scmp.ne.s32.totalorder %s25, %s28
    %p34 = scmp.eq.s32.totalorder %s15, 0
    %p35 = por %p33, %p34
    %p36 = scmp.ne.s32.totalorder %s25, %s28
    %p37 = scmp.eq.s32.totalorder %s20, 1
    %p38 = por %p36, %p37
    %p39 = scmp.ne.s32.totalorder %s28, %s29
    %p40 = scmp.eq.s32.totalorder %s20, 0
    %p41 = por %p39, %p40
    %p42 = scmp.ne.s32.totalorder %s28, %s29
    %p43 = scmp.eq.s32.totalorder %s21, 1
    %p44 = por %p42, %p43
    %p46 = scmp.ne.s32.totalorder %s29, %s45
    %p47 = scmp.eq.s32.totalorder %s21, 0
    %p48 = por %p46, %p47
    %s49 = ssub.s32 %s15, %s22
    %p50 = scmp.eq.s32.totalorder %s49, 0
    %s52 = sadd.s32 %s51, 1
    %s53 = scalar_select %p50, %s51, %s52
    %p56 = pneg %p50
    %p57 = scmp.eq.s32.totalorder %s15, 1
    %p58 = por %p56, %p57
    %p59 = scmp.ne.s32.totalorder %s51, %s54
    %p60 = scmp.eq.s32.totalorder %s15, 0
    %p61 = por %p59, %p60
    %p62 = scmp.ne.s32.totalorder %s51, %s54
    %p63 = scmp.eq.s32.totalorder %s20, 1
    %p64 = por %p62, %p63
    %p65 = scmp.ne.s32.totalorder %s54, %s55
    %p66 = scmp.eq.s32.totalorder %s20, 0
    %p67 = por %p65, %p66
    %p68 = scmp.ne.s32.totalorder %s54, %s55
    %p69 = scmp.eq.s32.totalorder %s21, 1
    %p70 = por %p68, %p69
    %p72 = scmp.ne.s32.totalorder %s55, %s71
    %p73 = scmp.eq.s32.totalorder %s21, 0
    %p74 = por %p72, %p73
    %s75 = ssub.s32 %s15, %s22
    %p76 = scmp.eq.s32.totalorder %s75, 0
    %s78 = sadd.s32 %s77, 1
    %s79 = scalar_select %p76, %s77, %s78
    %p82 = pneg %p76
    %p83 = scmp.eq.s32.totalorder %s15, 1
    %p84 = por %p82, %p83
    %p85 = scmp.ne.s32.totalorder %s77, %s80
    %p86 = scmp.eq.s32.totalorder %s15, 0
    %p87 = por %p85, %p86
    %p88 = scmp.ne.s32.totalorder %s77, %s80
    %p89 = scmp.eq.s32.totalorder %s20, 1
    %p90 = por %p88, %p89
    %p91 = scmp.ne.s32.totalorder %s80, %s81
    %p92 = scmp.eq.s32.totalorder %s20, 0
    %p93 = por %p91, %p92
    %p94 = scmp.ne.s32.totalorder %s80, %s81
    %p95 = scmp.eq.s32.totalorder %s21, 1
    %p96 = por %p94, %p95
    %p98 = scmp.ne.s32.totalorder %s81, %s97
    %p99 = scmp.eq.s32.totalorder %s21, 0
    %p100 = por %p98, %p99
    %s102 = sadd.s32 %s101, 1
    %p105 = scmp.eq.s32.totalorder %s15, 1
    %p106 = scmp.ne.s32.totalorder %s101, %s103
    %p107 = scmp.eq.s32.totalorder %s15, 0
    %p108 = por %p106, %p107
    %p109 = scmp.ne.s32.totalorder %s101, %s103
    %p110 = scmp.eq.s32.totalorder %s20, 1
    %p111 = por %p109, %p110
    %p112 = scmp.ne.s32.totalorder %s103, %s104
    %p113 = scmp.eq.s32.totalorder %s20, 0
    %p114 = por %p112, %p113
    %p115 = scmp.ne.s32.totalorder %s103, %s104
    %p116 = scmp.eq.s32.totalorder %s21, 1
    %p117 = por %p115, %p116
    %p119 = scmp.ne.s32.totalorder %s104, %s118
    %p120 = scmp.eq.s32.totalorder %s21, 0
    %p121 = por %p119, %p120
    %s123 = sadd.s32 %s122, 1
    %p126 = scmp.eq.s32.totalorder %s15, 1
    %p127 = scmp.ne.s32.totalorder %s122, %s124
    %p128 = scmp.eq.s32.totalorder %s15, 0
    %p129 = por %p127, %p128
    %p130 = scmp.ne.s32.totalorder %s122, %s124
    %p131 = scmp.eq.s32.totalorder %s20, 1
    %p132 = por %p130, %p131
    %p133 = scmp.ne.s32.totalorder %s124, %s125
    %p134 = scmp.eq.s32.totalorder %s20, 0
    %p135 = por %p133, %p134
    %p136 = scmp.ne.s32.totalorder %s124, %s125
    %p137 = scmp.eq.s32.totalorder %s21, 1
    %p138 = por %p136, %p137
    %p140 = scmp.ne.s32.totalorder %s125, %s139
    %p141 = scmp.eq.s32.totalorder %s21, 0
    %p142 = por %p140, %p141
    %s144 = sadd.s32 %s143, 1
    %p147 = scmp.eq.s32.totalorder %s15, 1
    %p148 = scmp.ne.s32.totalorder %s143, %s145
    %p149 = scmp.eq.s32.totalorder %s15, 0
    %p150 = por %p148, %p149
    %p151 = scmp.ne.s32.totalorder %s143, %s145
    %p152 = scmp.eq.s32.totalorder %s20, 1
    %p153 = por %p151, %p152
    %p154 = scmp.ne.s32.totalorder %s145, %s146
    %p155 = scmp.eq.s32.totalorder %s20, 0
    %p156 = por %p154, %p155
    %p157 = scmp.ne.s32.totalorder %s145, %s146
    %p158 = scmp.eq.s32.totalorder %s21, 1
    %p159 = por %p157, %p158
    %p161 = scmp.ne.s32.totalorder %s146, %s160
    %p162 = scmp.eq.s32.totalorder %s21, 0
    %p163 = por %p161, %p162
    %s165 = sadd.s32 %s164, 1
    %p168 = scmp.eq.s32.totalorder %s15, 1
    %p169 = scmp.ne.s32.totalorder %s164, %s166
    %p170 = scmp.eq.s32.totalorder %s15, 0
    %p171 = por %p169, %p170
    %p172 = scmp.ne.s32.totalorder %s164, %s166
    %p173 = scmp.eq.s32.totalorder %s20, 1
    %p174 = por %p172, %p173
    %p175 = scmp.ne.s32.totalorder %s166, %s167
    %p176 = scmp.eq.s32.totalorder %s20, 0
    %p177 = por %p175, %p176
    %p178 = scmp.ne.s32.totalorder %s166, %s167
    %p179 = scmp.eq.s32.totalorder %s21, 1
    %p180 = por %p178, %p179
    %p182 = scmp.ne.s32.totalorder %s167, %s181
    %p183 = scmp.eq.s32.totalorder %s21, 0
    %p184 = por %p182, %p183
    %s186 = sadd.s32 %s185, 1
    %p189 = scmp.eq.s32.totalorder %s15, 1
    %p190 = scmp.ne.s32.totalorder %s185, %s187
    %p191 = scmp.eq.s32.totalorder %s15, 0
    %p192 = por %p190, %p191
    %p193 = scmp.ne.s32.totalorder %s185, %s187
    %p194 = scmp.eq.s32.totalorder %s20, 1
    %p195 = por %p193, %p194
    %p196 = scmp.ne.s32.totalorder %s187, %s188
    %p197 = scmp.eq.s32.totalorder %s20, 0
    %p198 = por %p196, %p197
    %p199 = scmp.ne.s32.totalorder %s187, %s188
    %p200 = scmp.eq.s32.totalorder %s21, 1
    %p201 = por %p199, %p200
    %p203 = scmp.ne.s32.totalorder %s188, %s202
    %p204 = scmp.eq.s32.totalorder %s21, 0
    %p205 = por %p203, %p204
    %s207 = sadd.s32 %s206, 1
    %p210 = scmp.eq.s32.totalorder %s15, 1
    %p211 = scmp.ne.s32.totalorder %s206, %s208
    %p212 = scmp.eq.s32.totalorder %s15, 0
    %p213 = por %p211, %p212
    %p214 = scmp.ne.s32.totalorder %s206, %s208
    %p215 = scmp.eq.s32.totalorder %s20, 1
    %p216 = por %p214, %p215
    %p217 = scmp.ne.s32.totalorder %s208, %s209
    %p218 = scmp.eq.s32.totalorder %s20, 0
    %p219 = por %p217, %p218
    %p220 = scmp.ne.s32.totalorder %s208, %s209
    %p221 = scmp.eq.s32.totalorder %s21, 1
    %p222 = por %p220, %p221
    %p224 = scmp.ne.s32.totalorder %s209, %s223
    %p225 = scmp.eq.s32.totalorder %s21, 0
    %p226 = por %p224, %p225
    %s227 = ssub.s32 %s15, %s22
    %p228 = scmp.eq.s32.totalorder %s227, 0
    %s230 = sadd.s32 %s229, 1
    %s231 = scalar_select %p228, %s229, %s230
    %p234 = pneg %p228
    %p235 = scmp.eq.s32.totalorder %s15, 1
    %p236 = por %p234, %p235
    %p237 = scmp.ne.s32.totalorder %s229, %s232
    %p238 = scmp.eq.s32.totalorder %s15, 0
    %p239 = por %p237, %p238
    %p240 = scmp.ne.s32.totalorder %s229, %s232
    %p241 = scmp.eq.s32.totalorder %s20, 1
    %p242 = por %p240, %p241
    %p243 = scmp.ne.s32.totalorder %s232, %s233
    %p244 = scmp.eq.s32.totalorder %s20, 0
    %p245 = por %p243, %p244
    %p246 = scmp.ne.s32.totalorder %s232, %s233
    %p247 = scmp.eq.s32.totalorder %s21, 1
    %p248 = por %p246, %p247
    %p250 = scmp.ne.s32.totalorder %s233, %s249
    %p251 = scmp.eq.s32.totalorder %s21, 0
    %p252 = por %p250, %p251
    %p253 = scmp.le.s32.totalorder 1, %s15
    %p254 = scmp.lt.s32.totalorder %s15, 3
    %p255 = pnand %p253, %p254
    %p256 = pneg %p255
    // Predicated region
    $region9: #{transformer_forward.11} parent=5 // pred_check
      _
    $region10: #{transformer_forward.11} parent=5 // pred_check_branch
      %258 = sbr.rel (%p255) target = $region12
    $region11: #{transformer_forward.11} parent=5 // pred_region
      %s259 = ssub.s32 %s15, 1
      // Predicated region
      $region13: #{transformer_forward.11} parent=11 // pred_check
        %p260 = pneg %p114
      $region14: #{transformer_forward.11} parent=11 // pred_check_branch
        %262 = sbr.rel (%p260) target = $region16
      $region15: #{transformer_forward.11} parent=11 // pred_region
        _
      $region16: #{transformer_forward.11} parent=11 // pred_fallthru
        _
      // Predicated region
      $region17: #{transformer_forward.11} parent=11 // pred_check
        %p263 = pneg %p135
      $region18: #{transformer_forward.11} parent=11 // pred_check_branch
        %265 = sbr.rel (%p263) target = $region20
      $region19: #{transformer_forward.11} parent=11 // pred_region
        _
      $region20: #{transformer_forward.11} parent=11 // pred_fallthru
        _
      // Predicated region
      $region21: #{transformer_forward.11} parent=11 // pred_check
        %p266 = pneg %p156
      $region22: #{transformer_forward.11} parent=11 // pred_check_branch
        %268 = sbr.rel (%p266) target = $region24
      $region23: #{transformer_forward.11} parent=11 // pred_region
        _
      $region24: #{transformer_forward.11} parent=11 // pred_fallthru
        _
      // Predicated region
      $region25: #{transformer_forward.11} parent=11 // pred_check
        %p269 = pneg %p177
      $region26: #{transformer_forward.11} parent=11 // pred_check_branch
        %271 = sbr.rel (%p269) target = $region28
      $region27: #{transformer_forward.11} parent=11 // pred_region
        _
      $region28: #{transformer_forward.11} parent=11 // pred_fallthru
        _
      // Predicated region
      $region29: #{transformer_forward.11} parent=11 // pred_check
        %p272 = pneg %p198
      $region30: #{transformer_forward.11} parent=11 // pred_check_branch
        %274 = sbr.rel (%p272) target = $region32
      $region31: #{transformer_forward.11} parent=11 // pred_region
        _
      $region32: #{transformer_forward.11} parent=11 // pred_fallthru
        _
      // Predicated region
      $region33: #{transformer_forward.11} parent=11 // pred_check
        %p275 = pneg %p219
      $region34: #{transformer_forward.11} parent=11 // pred_check_branch
        %277 = sbr.rel (%p275) target = $region36
      $region35: #{transformer_forward.11} parent=11 // pred_region
        _
      $region36: #{transformer_forward.11} parent=11 // pred_fallthru
        _
    $region12: #{transformer_forward.11} parent=5 // pred_fallthru
      _
    %p278 = scmp.lt.s32.totalorder %s15, 2
    // Predicated region
    $region37: #{transformer_forward.11} parent=5 // pred_check
      %p279 = pneg %p278
    $region38: #{transformer_forward.11} parent=5 // pred_check_branch
      %281 = sbr.rel (%p279) target = $region40
    $region39: #{transformer_forward.11} parent=5 // pred_region
      // Predicated region
      $region41: #{transformer_forward.11} parent=39 // pred_check
        %p282 = pneg %p35
      $region42: #{transformer_forward.11} parent=39 // pred_check_branch
        %284 = sbr.rel (%p282) target = $region44
      $region43: #{transformer_forward.11} parent=39 // pred_region
        %p285 = scmp.lt.s32.totalorder %s15, 1
        %s286 = scalar_select %p285, %s15, 1
        %s287 = smul.addr %s286, 4
        %s288 = scalar_lea.vmem %s0, %s287
      $region44: #{transformer_forward.11} parent=39 // pred_fallthru
        _
      // Predicated region
      $region45: #{transformer_forward.11} parent=39 // pred_check
        %p289 = pneg %p61
      $region46: #{transformer_forward.11} parent=39 // pred_check_branch
        %291 = sbr.rel (%p289) target = $region48
      $region47: #{transformer_forward.11} parent=39 // pred_region
        %p292 = scmp.lt.s32.totalorder %s15, 1
        %s293 = scalar_select %p292, %s15, 1
        %s294 = smul.addr %s293, 4
        %s295 = scalar_lea.vmem %s1, %s294
      $region48: #{transformer_forward.11} parent=39 // pred_fallthru
        _
      // Predicated region
      $region49: #{transformer_forward.11} parent=39 // pred_check
        %p296 = pneg %p87
      $region50: #{transformer_forward.11} parent=39 // pred_check_branch
        %298 = sbr.rel (%p296) target = $region52
      $region51: #{transformer_forward.11} parent=39 // pred_region
        %p299 = scmp.lt.s32.totalorder %s15, 1
        %s300 = scalar_select %p299, %s15, 1
        %s301 = scalar_lea.vmem %s2, %s300
      $region52: #{transformer_forward.11} parent=39 // pred_fallthru
        _
    $region40: #{transformer_forward.11} parent=5 // pred_fallthru
      _
    %p302 = scmp.le.s32.totalorder 1, %s15
    %p303 = scmp.lt.s32.totalorder %s15, 3
    %p304 = pnand %p302, %p303
    %p305 = pneg %p304
    // Predicated region
    $region53: #{transformer_forward.11} parent=5 // pred_check
      _
    $region54: #{transformer_forward.11} parent=5 // pred_check_branch
      %307 = sbr.rel (%p304) target = $region56
    $region55: #{transformer_forward.11} parent=5 // pred_region
      %s308 = ssub.s32 %s15, 1
      %p309 = scmp.lt.s32.totalorder %s20, 1
      %s310 = scalar_select %p309, %s20, 1
      %s311 = smul.addr %s310, 4
      %s312 = scalar_lea.vmem %s0, %s311
      %p313 = pneg %p41
      %p314 = pneg %p38
      %p315 = scmp.lt.s32.totalorder %s20, 1
      %s316 = scalar_select %p315, %s20, 1
      %s317 = smul.addr %s316, 4
      %s318 = scalar_lea.vmem %s1, %s317
      %p319 = pneg %p67
      %p320 = pneg %p64
      %p321 = scmp.lt.s32.totalorder %s20, 1
      %s322 = scalar_select %p321, %s20, 1
      %s323 = scalar_lea.vmem %s2, %s322
      %p324 = pneg %p93
      %p325 = pneg %p90
      %p326 = pneg %p114
      %p327 = pneg %p111
      %p328 = pneg %p135
      %p329 = pneg %p132
      %p330 = pneg %p156
      %p331 = pneg %p153
      %p332 = pneg %p177
      %p333 = pneg %p174
      %p334 = pneg %p198
      %p335 = pneg %p195
      %p336 = pneg %p219
      %p337 = pneg %p216
      %p338 = pneg %p245
      %p339 = pneg %p242
      %p340 = scmp.lt.s32.totalorder %s20, 1
      %s341 = scalar_select %p340, %s20, 1
      %s342 = smul.addr %s341, 4
      %s343 = scalar_lea.vmem %s9, %s342
      %p344 = scmp.lt.s32.totalorder %s20, 1
      %s345 = scalar_select %p344, %s20, 1
      %s346 = smul.addr %s345, 4
      %s347 = scalar_lea.vmem %s0, %s346
      %p348 = scmp.lt.s32.totalorder %s20, 1
      %s349 = scalar_select %p348, %s20, 1
      %s350 = smul.addr %s349, 4
      %s351 = scalar_lea.vmem %s1, %s350
      %p352 = scmp.lt.s32.totalorder %s20, 1
      %s353 = scalar_select %p352, %s20, 1
      %s354 = scalar_lea.vmem %s2, %s353
      %p355 = scmp.lt.s32.totalorder %s20, 1
      %s356 = scalar_select %p355, %s20, 1
      %s357 = smul.addr %s356, 4
      %s358 = scalar_lea.vmem %s9, %s357
      %v360 = vld [vmem:[%s347] sm:$0xf]
      %v361 = vld [vmem:[%s3] sm:$0xf]
      %v362 = vld [vmem:[%s3 + $0x4] sm:$0xf]
      %v363 = vld [vmem:[%s3 + $0x8] sm:$0xf]
      %v364 = vld [vmem:[%s3 + $0xc] sm:$0xf]
      %v365 = vld [vmem:[%s4] sm:$0x1]
      %v367 = vlaneseq
      %v368 = vshrl.u32 %v367, 7
      %v369 = vsub.s32 0, %v368
      %v370 = vrot.slane %v365, %v369
      %v376 = vunpack.c.l.b16 %v361
      %v377 = vunpack.c.l.b16 %v362
      %v378 = vunpack.c.l.b16 %v363
      %v379 = vunpack.c.l.b16 %v364
      %v380 = vpack.c.b16 %v377, %v376
      %v381 = vpack.c.b16 %v379, %v378
      %vm384 = vcmask 261120
      %v386 = vsel %vm384, %v360, 0
      %388 = vmatprep.subr.bf16.mxu0 0
      %389 = vmatpush1.bf16.msra.mxu0 %v380
      %390 = vmatprep.subr.bf16.mxu0 0
      %391 = vmatpush1.bf16.msra.mxu0 %v381
      %392 = vmatprep.subr.bf16.mxu0 0
      %393 = vmatpush1.bf16.msra.mxu0 0
      %394 = vmatprep.subr.bf16.mxu0 0
      %395 = vmatpush1.bf16.msra.mxu0 0
      %396 = vmatprep.subr.bf16.mxu0 0
      %397 = vmatpush1.bf16.msra.mxu0 0
      %398 = vmatprep.subr.bf16.mxu0 0
      %399 = vmatpush1.bf16.msra.mxu0 0
      %400 = vmatprep.subr.bf16.mxu0 0
      %401 = vmatpush1.bf16.msra.mxu0 0
      %402 = vmatprep.subr.bf16.mxu0 0
      %403 = vmatpush1.bf16.msra.mxu0 0
      %404 = vmatprep.subr.bf16.mxu0 0
      %405 = vmatpush1.bf16.msra.mxu0 0
      %406 = vmatprep.subr.bf16.mxu0 0
      %407 = vmatpush1.bf16.msra.mxu0 0
      %408 = vmatprep.subr.bf16.mxu0 0
      %409 = vmatpush1.bf16.msra.mxu0 0
      %410 = vmatprep.subr.bf16.mxu0 0
      %411 = vmatpush1.bf16.msra.mxu0 0
      %412 = vmatprep.subr.bf16.mxu0 0
      %413 = vmatpush1.bf16.msra.mxu0 0
      %414 = vmatprep.subr.bf16.mxu0 0
      %415 = vmatpush1.bf16.msra.mxu0 0
      %416 = vmatprep.subr.bf16.mxu0 0
      %417 = vmatpush1.bf16.msra.mxu0 0
      %418 = vmatprep.subr.bf16.mxu0 0
      %419 = vmatpush1.bf16.msra.mxu0 0
      %420 = vmatprep.mubr.bf16.mxu0 0
      %421 = vmatmul.mubr.bf16.gmra.mrb[0].mxu0 %v386
      %v422 = vpop.f32.mrb[0].mxu0
      %v423 = vadd.f32 %v370, %v422
      %v424 = vpop.f32.mrb[0].mxu0
      %v425 = vpop.f32.mrb[0].mxu0
      %v426 = vpop.f32.mrb[0].mxu0
      %427 = vdwg.mxu0
      %v428 = vld [vmem:[%s354] sm:$0x1]
      %v430 = vlaneseq
      %v431 = vshrl.u32 %v430, 7
      %v432 = vsub.s32 0, %v431
      %v433 = vrot.slane %v428, %v432
      %436 = vrot.lane.b32.xlu0 %v423, 96
      %v437 = vpop.permute.xlu0 %436
      %vm438 = vcmask 64512
      %v439 = vsel %vm438, %v423, 0
      %v441 = vsel %vm438, %v437, 0
      %443 = vmatprep.subr.mxu0 0.0
      %444 = vmatpush1.xpose.msra.mxu0 %v441
      %445 = vmatprep.subr.mxu0 0.0
      %446 = vmatpush1.xpose.msra.mxu0 0.0
      %447 = vmatprep.subr.mxu0 0.0
      %448 = vmatpush1.xpose.msra.mxu0 0.0
      %449 = vmatprep.subr.mxu0 0.0
      %450 = vmatpush1.xpose.msra.mxu0 0.0
      %451 = vmatprep.subr.mxu0 0.0
      %452 = vmatpush1.xpose.msra.mxu0 0.0
      %453 = vmatprep.subr.mxu0 0.0
      %454 = vmatpush1.xpose.msra.mxu0 0.0
      %455 = vmatprep.subr.mxu0 0.0
      %456 = vmatpush1.xpose.msra.mxu0 0.0
      %457 = vmatprep.subr.mxu0 0.0
      %458 = vmatpush1.xpose.msra.mxu0 0.0
      %459 = vmatprep.subr.mxu0 0.0
      %460 = vmatpush1.xpose.msra.mxu0 0.0
      %461 = vmatprep.subr.mxu0 0.0
      %462 = vmatpush1.xpose.msra.mxu0 0.0
      %463 = vmatprep.subr.mxu0 0.0
      %464 = vmatpush1.xpose.msra.mxu0 0.0
      %465 = vmatprep.subr.mxu0 0.0
      %466 = vmatpush1.xpose.msra.mxu0 0.0
      %467 = vmatprep.subr.mxu0 0.0
      %468 = vmatpush1.xpose.msra.mxu0 0.0
      %469 = vmatprep.subr.mxu0 0.0
      %470 = vmatpush1.xpose.msra.mxu0 0.0
      %471 = vmatprep.subr.mxu0 0.0
      %472 = vmatpush1.xpose.msra.mxu0 0.0
      %473 = vmatprep.subr.mxu0 0.0
      %474 = vmatpush1.xpose.msra.mxu0 0.0
      %475 = vmatprep.subr.mxu0 0.0
      %476 = vmatpush1.xpose.msra.mxu0 0.0
      %477 = vmatprep.subr.mxu0 0.0
      %478 = vmatpush1.xpose.msra.mxu0 0.0
      %479 = vmatprep.subr.mxu0 0.0
      %480 = vmatpush1.xpose.msra.mxu0 0.0
      %481 = vmatprep.subr.mxu0 0.0
      %482 = vmatpush1.xpose.msra.mxu0 0.0
      %483 = vmatprep.subr.mxu0 0.0
      %484 = vmatpush1.xpose.msra.mxu0 0.0
      %485 = vmatprep.subr.mxu0 0.0
      %486 = vmatpush1.xpose.msra.mxu0 0.0
      %487 = vmatprep.subr.mxu0 0.0
      %488 = vmatpush1.xpose.msra.mxu0 0.0
      %489 = vmatprep.subr.mxu0 0.0
      %490 = vmatpush1.xpose.msra.mxu0 0.0
      %491 = vmatprep.subr.mxu0 0.0
      %492 = vmatpush1.xpose.msra.mxu0 0.0
      %493 = vmatprep.subr.mxu0 0.0
      %494 = vmatpush1.xpose.msra.mxu0 0.0
      %495 = vmatprep.subr.mxu0 0.0
      %496 = vmatpush1.xpose.msra.mxu0 0.0
      %497 = vmatprep.subr.mxu0 0.0
      %498 = vmatpush1.xpose.msra.mxu0 0.0
      %499 = vmatprep.subr.mxu0 0.0
      %500 = vmatpush1.xpose.msra.mxu0 0.0
      %501 = vmatprep.subr.mxu0 0.0
      %502 = vmatpush1.xpose.msra.mxu0 0.0
      %503 = vmatprep.subr.mxu0 0.0
      %504 = vmatpush1.xpose.msra.mxu0 0.0
      %505 = vmatprep.subr.mxu0 0.0
      %506 = vmatpush1.xpose.msra.mxu0 0.0
      %507 = vmatprep.mubr.f32.mxu0 0.0
      %508 = vmatmul.mubr.f32.gmra.mrb[0].mxu0 %v439
      %v509 = vpop.f32.mrb[0].mxu0
      %v510 = vadd.f32 %v433, %v509
      %v511 = vpop.f32.mrb[0].mxu0
      %512 = vdwg.mxu0
      %v513 = vsel %vm438, %v510, -inf
      %514 = vmax.xlane.f32.xlu0 %v513
      %v515 = vpop.xlane.xlu0 %514
      %v516 = vsub.f32 %v510, %v515
      %v517 = vmul.f32 %v516, 1.442695
      %v518 = vpow.pop %v517
      %v519 = vsel %vm438, %v518, 0.0
      %520 = vadd.xlane.f32.xlu0 %v519
      %v521 = vpop.xlane.xlu0 %520
      %v522 = vrcp.pop %v521
      %v523 = vmul.f32 %v518, %v522
      %524 = vrot.lane.b32.xlu0 %v423, 64
      %v525 = vpop.permute.xlu0 %524
      %v528 = vsel %vm438, %v523, 0
      %530 = vmatprep.subr.mxu0 0.0
      %531 = vmatpush1.msra.mxu0 %v525
      %532 = vmatprep.subr.mxu0 0.0
      %533 = vmatpush1.msra.mxu0 0.0
      %534 = vmatprep.subr.mxu0 0.0
      %535 = vmatpush1.msra.mxu0 0.0
      %536 = vmatprep.subr.mxu0 0.0
      %537 = vmatpush1.msra.mxu0 0.0
      %538 = vmatprep.subr.mxu0 0.0
      %539 = vmatpush1.msra.mxu0 0.0
      %540 = vmatprep.subr.mxu0 0.0
      %541 = vmatpush1.msra.mxu0 0.0
      %542 = vmatprep.subr.mxu0 0.0
      %543 = vmatpush1.msra.mxu0 0.0
      %544 = vmatprep.subr.mxu0 0.0
      %545 = vmatpush1.msra.mxu0 0.0
      %546 = vmatprep.subr.mxu0 0.0
      %547 = vmatpush1.msra.mxu0 0.0
      %548 = vmatprep.subr.mxu0 0.0
      %549 = vmatpush1.msra.mxu0 0.0
      %550 = vmatprep.subr.mxu0 0.0
      %551 = vmatpush1.msra.mxu0 0.0
      %552 = vmatprep.subr.mxu0 0.0
      %553 = vmatpush1.msra.mxu0 0.0
      %554 = vmatprep.subr.mxu0 0.0
      %555 = vmatpush1.msra.mxu0 0.0
      %556 = vmatprep.subr.mxu0 0.0
      %557 = vmatpush1.msra.mxu0 0.0
      %558 = vmatprep.subr.mxu0 0.0
      %559 = vmatpush1.msra.mxu0 0.0
      %560 = vmatprep.subr.mxu0 0.0
      %561 = vmatpush1.msra.mxu0 0.0
      %562 = vmatprep.subr.mxu0 0.0
      %563 = vmatpush1.msra.mxu0 0.0
      %564 = vmatprep.subr.mxu0 0.0
      %565 = vmatpush1.msra.mxu0 0.0
      %566 = vmatprep.subr.mxu0 0.0
      %567 = vmatpush1.msra.mxu0 0.0
      %568 = vmatprep.subr.mxu0 0.0
      %569 = vmatpush1.msra.mxu0 0.0
      %570 = vmatprep.subr.mxu0 0.0
      %571 = vmatpush1.msra.mxu0 0.0
      %572 = vmatprep.subr.mxu0 0.0
      %573 = vmatpush1.msra.mxu0 0.0
      %574 = vmatprep.subr.mxu0 0.0
      %575 = vmatpush1.msra.mxu0 0.0
      %576 = vmatprep.subr.mxu0 0.0
      %577 = vmatpush1.msra.mxu0 0.0
      %578 = vmatprep.subr.mxu0 0.0
      %579 = vmatpush1.msra.mxu0 0.0
      %580 = vmatprep.subr.mxu0 0.0
      %581 = vmatpush1.msra.mxu0 0.0
      %582 = vmatprep.subr.mxu0 0.0
      %583 = vmatpush1.msra.mxu0 0.0
      %584 = vmatprep.subr.mxu0 0.0
      %585 = vmatpush1.msra.mxu0 0.0
      %586 = vmatprep.subr.mxu0 0.0
      %587 = vmatpush1.msra.mxu0 0.0
      %588 = vmatprep.subr.mxu0 0.0
      %589 = vmatpush1.msra.mxu0 0.0
      %590 = vmatprep.subr.mxu0 0.0
      %591 = vmatpush1.msra.mxu0 0.0
      %592 = vmatprep.subr.mxu0 0.0
      %593 = vmatpush1.msra.mxu0 0.0
      %594 = vmatprep.mubr.f32.mxu0 0.0
      %595 = vmatmul.mubr.f32.gmra.mrb[0].mxu0 %v528
      %v596 = vpop.f32.mrb[0].mxu0
      %v597 = vadd.f32 0.0, %v596
      %v598 = vpop.f32.mrb[0].mxu0
      %599 = vdwg.mxu0
      %600 = vrot.lane.b32.xlu0 %v423, 120
      %v601 = vpop.permute.xlu0 %600
      %602 = vrot.lane.b32.xlu0 %v423, 88
      %v603 = vpop.permute.xlu0 %602
      %v604 = vsel %vm438, %v601, 0
      %v606 = vsel %vm438, %v603, 0
      %608 = vmatprep.subr.mxu0 0.0
      %609 = vmatpush1.xpose.msra.mxu0 %v606
      %610 = vmatprep.subr.mxu0 0.0
      %611 = vmatpush1.xpose.msra.mxu0 0.0
      %612 = vmatprep.subr.mxu0 0.0
      %613 = vmatpush1.xpose.msra.mxu0 0.0
      %614 = vmatprep.subr.mxu0 0.0
      %615 = vmatpush1.xpose.msra.mxu0 0.0
      %616 = vmatprep.subr.mxu0 0.0
      %617 = vmatpush1.xpose.msra.mxu0 0.0
      %618 = vmatprep.subr.mxu0 0.0
      %619 = vmatpush1.xpose.msra.mxu0 0.0
      %620 = vmatprep.subr.mxu0 0.0
      %621 = vmatpush1.xpose.msra.mxu0 0.0
      %622 = vmatprep.subr.mxu0 0.0
      %623 = vmatpush1.xpose.msra.mxu0 0.0
      %624 = vmatprep.subr.mxu0 0.0
      %625 = vmatpush1.xpose.msra.mxu0 0.0
      %626 = vmatprep.subr.mxu0 0.0
      %627 = vmatpush1.xpose.msra.mxu0 0.0
      %628 = vmatprep.subr.mxu0 0.0
      %629 = vmatpush1.xpose.msra.mxu0 0.0
      %630 = vmatprep.subr.mxu0 0.0
      %631 = vmatpush1.xpose.msra.mxu0 0.0
      %632 = vmatprep.subr.mxu0 0.0
      %633 = vmatpush1.xpose.msra.mxu0 0.0
      %634 = vmatprep.subr.mxu0 0.0
      %635 = vmatpush1.xpose.msra.mxu0 0.0
      %636 = vmatprep.subr.mxu0 0.0
      %637 = vmatpush1.xpose.msra.mxu0 0.0
      %638 = vmatprep.subr.mxu0 0.0
      %639 = vmatpush1.xpose.msra.mxu0 0.0
      %640 = vmatprep.subr.mxu0 0.0
      %641 = vmatpush1.xpose.msra.mxu0 0.0
      %642 = vmatprep.subr.mxu0 0.0
      %643 = vmatpush1.xpose.msra.mxu0 0.0
      %644 = vmatprep.subr.mxu0 0.0
      %645 = vmatpush1.xpose.msra.mxu0 0.0
      %646 = vmatprep.subr.mxu0 0.0
      %647 = vmatpush1.xpose.msra.mxu0 0.0
      %648 = vmatprep.subr.mxu0 0.0
      %649 = vmatpush1.xpose.msra.mxu0 0.0
      %650 = vmatprep.subr.mxu0 0.0
      %651 = vmatpush1.xpose.msra.mxu0 0.0
      %652 = vmatprep.subr.mxu0 0.0
      %653 = vmatpush1.xpose.msra.mxu0 0.0
      %654 = vmatprep.subr.mxu0 0.0
      %655 = vmatpush1.xpose.msra.mxu0 0.0
      %656 = vmatprep.subr.mxu0 0.0
      %657 = vmatpush1.xpose.msra.mxu0 0.0
      %658 = vmatprep.subr.mxu0 0.0
      %659 = vmatpush1.xpose.msra.mxu0 0.0
      %660 = vmatprep.subr.mxu0 0.0
      %661 = vmatpush1.xpose.msra.mxu0 0.0
      %662 = vmatprep.subr.mxu0 0.0
      %663 = vmatpush1.xpose.msra.mxu0 0.0
      %664 = vmatprep.subr.mxu0 0.0
      %665 = vmatpush1.xpose.msra.mxu0 0.0
      %666 = vmatprep.subr.mxu0 0.0
      %667 = vmatpush1.xpose.msra.mxu0 0.0
      %668 = vmatprep.subr.mxu0 0.0
      %669 = vmatpush1.xpose.msra.mxu0 0.0
      %670 = vmatprep.subr.mxu0 0.0
      %671 = vmatpush1.xpose.msra.mxu0 0.0
      %672 = vmatprep.mubr.f32.mxu0 0.0
      %673 = vmatmul.mubr.f32.gmra.mrb[0].mxu0 %v604
      %v674 = vpop.f32.mrb[0].mxu0
      %v675 = vadd.f32 %v433, %v674
      %v676 = vpop.f32.mrb[0].mxu0
      %677 = vdwg.mxu0
      %v678 = vsel %vm438, %v675, -inf
      %679 = vmax.xlane.f32.xlu0 %v678
      %v680 = vpop.xlane.xlu0 %679
      %v681 = vsub.f32 %v675, %v680
      %v682 = vmul.f32 %v681, 1.442695
      %v683 = vpow.pop %v682
      %v684 = vsel %vm438, %v683, 0.0
      %685 = vadd.xlane.f32.xlu0 %v684
      %v686 = vpop.xlane.xlu0 %685
      %v687 = vrcp.pop %v686
      %v688 = vmul.f32 %v683, %v687
      %689 = vrot.lane.b32.xlu0 %v423, 56
      %v690 = vpop.permute.xlu0 %689
      %v693 = vsel %vm438, %v688, 0
      %695 = vmatprep.subr.mxu0 0.0
      %696 = vmatpush1.msra.mxu0 %v690
      %697 = vmatprep.subr.mxu0 0.0
      %698 = vmatpush1.msra.mxu0 0.0
      %699 = vmatprep.subr.mxu0 0.0
      %700 = vmatpush1.msra.mxu0 0.0
      %701 = vmatprep.subr.mxu0 0.0
      %702 = vmatpush1.msra.mxu0 0.0
      %703 = vmatprep.subr.mxu0 0.0
      %704 = vmatpush1.msra.mxu0 0.0
      %705 = vmatprep.subr.mxu0 0.0
      %706 = vmatpush1.msra.mxu0 0.0
      %707 = vmatprep.subr.mxu0 0.0
      %708 = vmatpush1.msra.mxu0 0.0
      %709 = vmatprep.subr.mxu0 0.0
      %710 = vmatpush1.msra.mxu0 0.0
      %711 = vmatprep.subr.mxu0 0.0
      %712 = vmatpush1.msra.mxu0 0.0
      %713 = vmatprep.subr.mxu0 0.0
      %714 = vmatpush1.msra.mxu0 0.0
      %715 = vmatprep.subr.mxu0 0.0
      %716 = vmatpush1.msra.mxu0 0.0
      %717 = vmatprep.subr.mxu0 0.0
      %718 = vmatpush1.msra.mxu0 0.0
      %719 = vmatprep.subr.mxu0 0.0
      %720 = vmatpush1.msra.mxu0 0.0
      %721 = vmatprep.subr.mxu0 0.0
      %722 = vmatpush1.msra.mxu0 0.0
      %723 = vmatprep.subr.mxu0 0.0
      %724 = vmatpush1.msra.mxu0 0.0
      %725 = vmatprep.subr.mxu0 0.0
      %726 = vmatpush1.msra.mxu0 0.0
      %727 = vmatprep.subr.mxu0 0.0
      %728 = vmatpush1.msra.mxu0 0.0
      %729 = vmatprep.subr.mxu0 0.0
      %730 = vmatpush1.msra.mxu0 0.0
      %731 = vmatprep.subr.mxu0 0.0
      %732 = vmatpush1.msra.mxu0 0.0
      %733 = vmatprep.subr.mxu0 0.0
      %734 = vmatpush1.msra.mxu0 0.0
      %735 = vmatprep.subr.mxu0 0.0
      %736 = vmatpush1.msra.mxu0 0.0
      %737 = vmatprep.subr.mxu0 0.0
      %738 = vmatpush1.msra.mxu0 0.0
      %739 = vmatprep.subr.mxu0 0.0
      %740 = vmatpush1.msra.mxu0 0.0
      %741 = vmatprep.subr.mxu0 0.0
      %742 = vmatpush1.msra.mxu0 0.0
      %743 = vmatprep.subr.mxu0 0.0
      %744 = vmatpush1.msra.mxu0 0.0
      %745 = vmatprep.subr.mxu0 0.0
      %746 = vmatpush1.msra.mxu0 0.0
      %747 = vmatprep.subr.mxu0 0.0
      %748 = vmatpush1.msra.mxu0 0.0
      %749 = vmatprep.subr.mxu0 0.0
      %750 = vmatpush1.msra.mxu0 0.0
      %751 = vmatprep.subr.mxu0 0.0
      %752 = vmatpush1.msra.mxu0 0.0
      %753 = vmatprep.subr.mxu0 0.0
      %754 = vmatpush1.msra.mxu0 0.0
      %755 = vmatprep.subr.mxu0 0.0
      %756 = vmatpush1.msra.mxu0 0.0
      %757 = vmatprep.subr.mxu0 0.0
      %758 = vmatpush1.msra.mxu0 0.0
      %759 = vmatprep.mubr.f32.mxu0 0.0
      %760 = vmatmul.mubr.f32.gmra.mrb[0].mxu0 %v693
      %v761 = vpop.f32.mrb[0].mxu0
      %v762 = vadd.f32 0.0, %v761
      %v763 = vpop.f32.mrb[0].mxu0
      %764 = vdwg.mxu0
      %765 = vrot.lane.b32.xlu0 %v423, 112
      %v766 = vpop.permute.xlu0 %765
      %767 = vrot.lane.b32.xlu0 %v423, 80
      %v768 = vpop.permute.xlu0 %767
      %v769 = vsel %vm438, %v766, 0
      %v771 = vsel %vm438, %v768, 0
      %773 = vmatprep.subr.mxu0 0.0
      %774 = vmatpush1.xpose.msra.mxu0 %v771
      %775 = vmatprep.subr.mxu0 0.0
      %776 = vmatpush1.xpose.msra.mxu0 0.0
      %777 = vmatprep.subr.mxu0 0.0
      %778 = vmatpush1.xpose.msra.mxu0 0.0
      %779 = vmatprep.subr.mxu0 0.0
      %780 = vmatpush1.xpose.msra.mxu0 0.0
      %781 = vmatprep.subr.mxu0 0.0
      %782 = vmatpush1.xpose.msra.mxu0 0.0
      %783 = vmatprep.subr.mxu0 0.0
      %784 = vmatpush1.xpose.msra.mxu0 0.0
      %785 = vmatprep.subr.mxu0 0.0
      %786 = vmatpush1.xpose.msra.mxu0 0.0
      %787 = vmatprep.subr.mxu0 0.0
      %788 = vmatpush1.xpose.msra.mxu0 0.0
      %789 = vmatprep.subr.mxu0 0.0
      %790 = vmatpush1.xpose.msra.mxu0 0.0
      %791 = vmatprep.subr.mxu0 0.0
      %792 = vmatpush1.xpose.msra.mxu0 0.0
      %793 = vmatprep.subr.mxu0 0.0
      %794 = vmatpush1.xpose.msra.mxu0 0.0
      %795 = vmatprep.subr.mxu0 0.0
      %796 = vmatpush1.xpose.msra.mxu0 0.0
      %797 = vmatprep.subr.mxu0 0.0
      %798 = vmatpush1.xpose.msra.mxu0 0.0
      %799 = vmatprep.subr.mxu0 0.0
      %800 = vmatpush1.xpose.msra.mxu0 0.0
      %801 = vmatprep.subr.mxu0 0.0
      %802 = vmatpush1.xpose.msra.mxu0 0.0
      %803 = vmatprep.subr.mxu0 0.0
      %804 = vmatpush1.xpose.msra.mxu0 0.0
      %805 = vmatprep.subr.mxu0 0.0
      %806 = vmatpush1.xpose.msra.mxu0 0.0
      %807 = vmatprep.subr.mxu0 0.0
      %808 = vmatpush1.xpose.msra.mxu0 0.0
      %809 = vmatprep.subr.mxu0 0.0
      %810 = vmatpush1.xpose.msra.mxu0 0.0
      %811 = vmatprep.subr.mxu0 0.0
      %812 = vmatpush1.xpose.msra.mxu0 0.0
      %813 = vmatprep.subr.mxu0 0.0
      %814 = vmatpush1.xpose.msra.mxu0 0.0
      %815 = vmatprep.subr.mxu0 0.0
      %816 = vmatpush1.xpose.msra.mxu0 0.0
      %817 = vmatprep.subr.mxu0 0.0
      %818 = vmatpush1.xpose.msra.mxu0 0.0
      %819 = vmatprep.subr.mxu0 0.0
      %820 = vmatpush1.xpose.msra.mxu0 0.0
      %821 = vmatprep.subr.mxu0 0.0
      %822 = vmatpush1.xpose.msra.mxu0 0.0
      %823 = vmatprep.subr.mxu0 0.0
      %824 = vmatpush1.xpose.msra.mxu0 0.0
      %825 = vmatprep.subr.mxu0 0.0
      %826 = vmatpush1.xpose.msra.mxu0 0.0
      %827 = vmatprep.subr.mxu0 0.0
      %828 = vmatpush1.xpose.msra.mxu0 0.0
      %829 = vmatprep.subr.mxu0 0.0
      %830 = vmatpush1.xpose.msra.mxu0 0.0
      %831 = vmatprep.subr.mxu0 0.0
      %832 = vmatpush1.xpose.msra.mxu0 0.0
      %833 = vmatprep.subr.mxu0 0.0
      %834 = vmatpush1.xpose.msra.mxu0 0.0
      %835 = vmatprep.subr.mxu0 0.0
      %836 = vmatpush1.xpose.msra.mxu0 0.0
      %837 = vmatprep.mubr.f32.mxu0 0.0
      %838 = vmatmul.mubr.f32.gmra.mrb[0].mxu0 %v769
      %v839 = vpop.f32.mrb[0].mxu0
      %v840 = vadd.f32 %v433, %v839
      %v841 = vpop.f32.mrb[0].mxu0
      %842 = vdwg.mxu0
      %v843 = vsel %vm438, %v840, -inf
      %844 = vmax.xlane.f32.xlu0 %v843
      %v845 = vpop.xlane.xlu0 %844
      %v846 = vsub.f32 %v840, %v845
      %v847 = vmul.f32 %v846, 1.442695
      %v848 = vpow.pop %v847
      %v849 = vsel %vm438, %v848, 0.0
      %850 = vadd.xlane.f32.xlu0 %v849
      %v851 = vpop.xlane.xlu0 %850
      %v852 = vrcp.pop %v851
      %v853 = vmul.f32 %v848, %v852
      %854 = vrot.lane.b32.xlu0 %v423, 48
      %v855 = vpop.permute.xlu0 %854
      %v858 = vsel %vm438, %v853, 0
      %860 = vmatprep.subr.mxu0 0.0
      %861 = vmatpush1.msra.mxu0 %v855
      %862 = vmatprep.subr.mxu0 0.0
      %863 = vmatpush1.msra.mxu0 0.0
      %864 = vmatprep.subr.mxu0 0.0
      %865 = vmatpush1.msra.mxu0 0.0
      %866 = vmatprep.subr.mxu0 0.0
      %867 = vmatpush1.msra.mxu0 0.0
      %868 = vmatprep.subr.mxu0 0.0
      %869 = vmatpush1.msra.mxu0 0.0
      %870 = vmatprep.subr.mxu0 0.0
      %871 = vmatpush1.msra.mxu0 0.0
      %872 = vmatprep.subr.mxu0 0.0
      %873 = vmatpush1.msra.mxu0 0.0
      %874 = vmatprep.subr.mxu0 0.0
      %875 = vmatpush1.msra.mxu0 0.0
      %876 = vmatprep.subr.mxu0 0.0
      %877 = vmatpush1.msra.mxu0 0.0
      %878 = vmatprep.subr.mxu0 0.0
      %879 = vmatpush1.msra.mxu0 0.0
      %880 = vmatprep.subr.mxu0 0.0
      %881 = vmatpush1.msra.mxu0 0.0
      %882 = vmatprep.subr.mxu0 0.0
      %883 = vmatpush1.msra.mxu0 0.0
      %884 = vmatprep.subr.mxu0 0.0
      %885 = vmatpush1.msra.mxu0 0.0
      %886 = vmatprep.subr.mxu0 0.0
      %887 = vmatpush1.msra.mxu0 0.0
      %888 = vmatprep.subr.mxu0 0.0
      %889 = vmatpush1.msra.mxu0 0.0
      %890 = vmatprep.subr.mxu0 0.0
      %891 = vmatpush1.msra.mxu0 0.0
      %892 = vmatprep.subr.mxu0 0.0
      %893 = vmatpush1.msra.mxu0 0.0
      %894 = vmatprep.subr.mxu0 0.0
      %895 = vmatpush1.msra.mxu0 0.0
      %896 = vmatprep.subr.mxu0 0.0
      %897 = vmatpush1.msra.mxu0 0.0
      %898 = vmatprep.subr.mxu0 0.0
      %899 = vmatpush1.msra.mxu0 0.0
      %900 = vmatprep.subr.mxu0 0.0
      %901 = vmatpush1.msra.mxu0 0.0
      %902 = vmatprep.subr.mxu0 0.0
      %903 = vmatpush1.msra.mxu0 0.0
      %904 = vmatprep.subr.mxu0 0.0
      %905 = vmatpush1.msra.mxu0 0.0
      %906 = vmatprep.subr.mxu0 0.0
      %907 = vmatpush1.msra.mxu0 0.0
      %908 = vmatprep.subr.mxu0 0.0
      %909 = vmatpush1.msra.mxu0 0.0
      %910 = vmatprep.subr.mxu0 0.0
      %911 = vmatpush1.msra.mxu0 0.0
      %912 = vmatprep.subr.mxu0 0.0
      %913 = vmatpush1.msra.mxu0 0.0
      %914 = vmatprep.subr.mxu0 0.0
      %915 = vmatpush1.msra.mxu0 0.0
      %916 = vmatprep.subr.mxu0 0.0
      %917 = vmatpush1.msra.mxu0 0.0
      %918 = vmatprep.subr.mxu0 0.0
      %919 = vmatpush1.msra.mxu0 0.0
      %920 = vmatprep.subr.mxu0 0.0
      %921 = vmatpush1.msra.mxu0 0.0
      %922 = vmatprep.subr.mxu0 0.0
      %923 = vmatpush1.msra.mxu0 0.0
      %924 = vmatprep.mubr.f32.mxu0 0.0
      %925 = vmatmul.mubr.f32.gmra.mrb[0].mxu0 %v858
      %v926 = vpop.f32.mrb[0].mxu0
      %v927 = vadd.f32 0.0, %v926
      %v928 = vpop.f32.mrb[0].mxu0
      %929 = vdwg.mxu0
      %930 = vrot.lane.b32.xlu0 %v423, 104
      %v931 = vpop.permute.xlu0 %930
      %932 = vrot.lane.b32.xlu0 %v423, 72
      %v933 = vpop.permute.xlu0 %932
      %v934 = vsel %vm438, %v931, 0
      %v936 = vsel %vm438, %v933, 0
      %938 = vmatprep.subr.mxu0 0.0
      %939 = vmatpush1.xpose.msra.mxu0 %v936
      %940 = vmatprep.subr.mxu0 0.0
      %941 = vmatpush1.xpose.msra.mxu0 0.0
      %942 = vmatprep.subr.mxu0 0.0
      %943 = vmatpush1.xpose.msra.mxu0 0.0
      %944 = vmatprep.subr.mxu0 0.0
      %945 = vmatpush1.xpose.msra.mxu0 0.0
      %946 = vmatprep.subr.mxu0 0.0
      %947 = vmatpush1.xpose.msra.mxu0 0.0
      %948 = vmatprep.subr.mxu0 0.0
      %949 = vmatpush1.xpose.msra.mxu0 0.0
      %950 = vmatprep.subr.mxu0 0.0
      %951 = vmatpush1.xpose.msra.mxu0 0.0
      %952 = vmatprep.subr.mxu0 0.0
      %953 = vmatpush1.xpose.msra.mxu0 0.0
      %954 = vmatprep.subr.mxu0 0.0
      %955 = vmatpush1.xpose.msra.mxu0 0.0
      %956 = vmatprep.subr.mxu0 0.0
      %957 = vmatpush1.xpose.msra.mxu0 0.0
      %958 = vmatprep.subr.mxu0 0.0
      %959 = vmatpush1.xpose.msra.mxu0 0.0
      %960 = vmatprep.subr.mxu0 0.0
      %961 = vmatpush1.xpose.msra.mxu0 0.0
      %962 = vmatprep.subr.mxu0 0.0
      %963 = vmatpush1.xpose.msra.mxu0 0.0
      %964 = vmatprep.subr.mxu0 0.0
      %965 = vmatpush1.xpose.msra.mxu0 0.0
      %966 = vmatprep.subr.mxu0 0.0
      %967 = vmatpush1.xpose.msra.mxu0 0.0
      %968 = vmatprep.subr.mxu0 0.0
      %969 = vmatpush1.xpose.msra.mxu0 0.0
      %970 = vmatprep.subr.mxu0 0.0
      %971 = vmatpush1.xpose.msra.mxu0 0.0
      %972 = vmatprep.subr.mxu0 0.0
      %973 = vmatpush1.xpose.msra.mxu0 0.0
      %974 = vmatprep.subr.mxu0 0.0
      %975 = vmatpush1.xpose.msra.mxu0 0.0
      %976 = vmatprep.subr.mxu0 0.0
      %977 = vmatpush1.xpose.msra.mxu0 0.0
      %978 = vmatprep.subr.mxu0 0.0
      %979 = vmatpush1.xpose.msra.mxu0 0.0
      %980 = vmatprep.subr.mxu0 0.0
      %981 = vmatpush1.xpose.msra.mxu0 0.0
      %982 = vmatprep.subr.mxu0 0.0
      %983 = vmatpush1.xpose.msra.mxu0 0.0
      %984 = vmatprep.subr.mxu0 0.0
      %985 = vmatpush1.xpose.msra.mxu0 0.0
      %986 = vmatprep.subr.mxu0 0.0
      %987 = vmatpush1.xpose.msra.mxu0 0.0
      %988 = vmatprep.subr.mxu0 0.0
      %989 = vmatpush1.xpose.msra.mxu0 0.0
      %990 = vmatprep.subr.mxu0 0.0
      %991 = vmatpush1.xpose.msra.mxu0 0.0
      %992 = vmatprep.subr.mxu0 0.0
      %993 = vmatpush1.xpose.msra.mxu0 0.0
      %994 = vmatprep.subr.mxu0 0.0
      %995 = vmatpush1.xpose.msra.mxu0 0.0
      %996 = vmatprep.subr.mxu0 0.0
      %997 = vmatpush1.xpose.msra.mxu0 0.0
      %998 = vmatprep.subr.mxu0 0.0
      %999 = vmatpush1.xpose.msra.mxu0 0.0
      %1000 = vmatprep.subr.mxu0 0.0
      %1001 = vmatpush1.xpose.msra.mxu0 0.0
      %1002 = vmatprep.mubr.f32.mxu0 0.0
      %1003 = vmatmul.mubr.f32.gmra.mrb[0].mxu0 %v934
      %v1004 = vpop.f32.mrb[0].mxu0
      %v1005 = vadd.f32 %v433, %v1004
      %v1006 = vpop.f32.mrb[0].mxu0
      %1007 = vdwg.mxu0
      %v1008 = vsel %vm438, %v1005, -inf
      %1009 = vmax.xlane.f32.xlu0 %v1008
      %v1010 = vpop.xlane.xlu0 %1009
      %v1011 = vsub.f32 %v1005, %v1010
      %v1012 = vmul.f32 %v1011, 1.442695
      %v1013 = vpow.pop %v1012
      %v1014 = vsel %vm438, %v1013, 0.0
      %1015 = vadd.xlane.f32.xlu0 %v1014
      %v1016 = vpop.xlane.xlu0 %1015
      %v1017 = vrcp.pop %v1016
      %v1018 = vmul.f32 %v1013, %v1017
      %1019 = vrot.lane.b32.xlu0 %v423, 40
      %v1020 = vpop.permute.xlu0 %1019
      %v1023 = vsel %vm438, %v1018, 0
      %1025 = vmatprep.subr.mxu0 0.0
      %1026 = vmatpush1.msra.mxu0 %v1020
      %1027 = vmatprep.subr.mxu0 0.0
      %1028 = vmatpush1.msra.mxu0 0.0
      %1029 = vmatprep.subr.mxu0 0.0
      %1030 = vmatpush1.msra.mxu0 0.0
      %1031 = vmatprep.subr.mxu0 0.0
      %1032 = vmatpush1.msra.mxu0 0.0
      %1033 = vmatprep.subr.mxu0 0.0
      %1034 = vmatpush1.msra.mxu0 0.0
      %1035 = vmatprep.subr.mxu0 0.0
      %1036 = vmatpush1.msra.mxu0 0.0
      %1037 = vmatprep.subr.mxu0 0.0
      %1038 = vmatpush1.msra.mxu0 0.0
      %1039 = vmatprep.subr.mxu0 0.0
      %1040 = vmatpush1.msra.mxu0 0.0
      %1041 = vmatprep.subr.mxu0 0.0
      %1042 = vmatpush1.msra.mxu0 0.0
      %1043 = vmatprep.subr.mxu0 0.0
      %1044 = vmatpush1.msra.mxu0 0.0
      %1045 = vmatprep.subr.mxu0 0.0
      %1046 = vmatpush1.msra.mxu0 0.0
      %1047 = vmatprep.subr.mxu0 0.0
      %1048 = vmatpush1.msra.mxu0 0.0
      %1049 = vmatprep.subr.mxu0 0.0
      %1050 = vmatpush1.msra.mxu0 0.0
      %1051 = vmatprep.subr.mxu0 0.0
      %1052 = vmatpush1.msra.mxu0 0.0
      %1053 = vmatprep.subr.mxu0 0.0
      %1054 = vmatpush1.msra.mxu0 0.0
      %1055 = vmatprep.subr.mxu0 0.0
      %1056 = vmatpush1.msra.mxu0 0.0
      %1057 = vmatprep.subr.mxu0 0.0
      %1058 = vmatpush1.msra.mxu0 0.0
      %1059 = vmatprep.subr.mxu0 0.0
      %1060 = vmatpush1.msra.mxu0 0.0
      %1061 = vmatprep.subr.mxu0 0.0
      %1062 = vmatpush1.msra.mxu0 0.0
      %1063 = vmatprep.subr.mxu0 0.0
      %1064 = vmatpush1.msra.mxu0 0.0
      %1065 = vmatprep.subr.mxu0 0.0
      %1066 = vmatpush1.msra.mxu0 0.0
      %1067 = vmatprep.subr.mxu0 0.0
      %1068 = vmatpush1.msra.mxu0 0.0
      %1069 = vmatprep.subr.mxu0 0.0
      %1070 = vmatpush1.msra.mxu0 0.0
      %1071 = vmatprep.subr.mxu0 0.0
      %1072 = vmatpush1.msra.mxu0 0.0
      %1073 = vmatprep.subr.mxu0 0.0
      %1074 = vmatpush1.msra.mxu0 0.0
      %1075 = vmatprep.subr.mxu0 0.0
      %1076 = vmatpush1.msra.mxu0 0.0
      %1077 = vmatprep.subr.mxu0 0.0
      %1078 = vmatpush1.msra.mxu0 0.0
      %1079 = vmatprep.subr.mxu0 0.0
      %1080 = vmatpush1.msra.mxu0 0.0
      %1081 = vmatprep.subr.mxu0 0.0
      %1082 = vmatpush1.msra.mxu0 0.0
      %1083 = vmatprep.subr.mxu0 0.0
      %1084 = vmatpush1.msra.mxu0 0.0
      %1085 = vmatprep.subr.mxu0 0.0
      %1086 = vmatpush1.msra.mxu0 0.0
      %1087 = vmatprep.subr.mxu0 0.0
      %1088 = vmatpush1.msra.mxu0 0.0
      %1089 = vmatprep.mubr.f32.mxu0 0.0
      %1090 = vmatmul.mubr.f32.gmra.mrb[0].mxu0 %v1023
      %v1091 = vpop.f32.mrb[0].mxu0
      %v1092 = vadd.f32 0.0, %v1091
      %v1093 = vpop.f32.mrb[0].mxu0
      %1094 = vdwg.mxu0
      %1096 = vrot.lane.b32.xlu0 %v762, 8
      %v1097 = vpop.permute.xlu0 %1096
      %1100 = vrot.lane.b32.xlu0 %v927, 16
      %v1101 = vpop.permute.xlu0 %1100
      %1104 = vrot.lane.b32.xlu0 %v1092, 24
      %v1105 = vpop.permute.xlu0 %1104
      %v1107 = vsel %vm438, %v597, %v1097
      %vm1108 = vcmask 130048
      %v1109 = vsel %vm1108, %v1107, %v1101
      %vm1110 = vcmask 195584
      %v1111 = vsel %vm1110, %v1109, %v1105
      %v1112 = vpack.c.bf16 %v1111, %v1111
      %v1113 = vld [vmem:[%s5] sm:$0xf]
      %v1114 = vld [vmem:[%s5 + $0x4] sm:$0xf]
      %v1115 = vld [vmem:[%s5 + $0x8] sm:$0xf]
      %v1116 = vld [vmem:[%s5 + $0xc] sm:$0xf]
      %v1117 = vld [vmem:[%s6] sm:$0x1]
      %v1119 = vlaneseq
      %v1120 = vshrl.u32 %v1119, 7
      %v1121 = vsub.s32 0, %v1120
      %v1122 = vrot.slane %v1117, %v1121
      %v1128 = vunpack.c.l.b16 %v1113
      %v1129 = vunpack.c.l.b16 %v1114
      %v1130 = vunpack.c.l.b16 %v1115
      %v1131 = vunpack.c.l.b16 %v1116
      %v1132 = vpack.c.b16 %v1129, %v1128
      %v1133 = vpack.c.b16 %v1131, %v1130
      %v1137 = vsel %vm384, %v1112, 0
      %1139 = vmatprep.subr.bf16.mxu0 0
      %1140 = vmatpush1.bf16.msra.mxu0 %v1132
      %1141 = vmatprep.subr.bf16.mxu0 0
      %1142 = vmatpush1.bf16.msra.mxu0 %v1133
      %1143 = vmatprep.subr.bf16.mxu0 0
      %1144 = vmatpush1.bf16.msra.mxu0 0
      %1145 = vmatprep.subr.bf16.mxu0 0
      %1146 = vmatpush1.bf16.msra.mxu0 0
      %1147 = vmatprep.subr.bf16.mxu0 0
      %1148 = vmatpush1.bf16.msra.mxu0 0
      %1149 = vmatprep.subr.bf16.mxu0 0
      %1150 = vmatpush1.bf16.msra.mxu0 0
      %1151 = vmatprep.subr.bf16.mxu0 0
      %1152 = vmatpush1.bf16.msra.mxu0 0
      %1153 = vmatprep.subr.bf16.mxu0 0
      %1154 = vmatpush1.bf16.msra.mxu0 0
      %1155 = vmatprep.subr.bf16.mxu0 0
      %1156 = vmatpush1.bf16.msra.mxu0 0
      %1157 = vmatprep.subr.bf16.mxu0 0
      %1158 = vmatpush1.bf16.msra.mxu0 0
      %1159 = vmatprep.subr.bf16.mxu0 0
      %1160 = vmatpush1.bf16.msra.mxu0 0
      %1161 = vmatprep.subr.bf16.mxu0 0
      %1162 = vmatpush1.bf16.msra.mxu0 0
      %1163 = vmatprep.subr.bf16.mxu0 0
      %1164 = vmatpush1.bf16.msra.mxu0 0
      %1165 = vmatprep.subr.bf16.mxu0 0
      %1166 = vmatpush1.bf16.msra.mxu0 0
      %1167 = vmatprep.subr.bf16.mxu0 0
      %1168 = vmatpush1.bf16.msra.mxu0 0
      %1169 = vmatprep.subr.bf16.mxu0 0
      %1170 = vmatpush1.bf16.msra.mxu0 0
      %1171 = vmatprep.mubr.bf16.mxu0 0
      %1172 = vmatmul.mubr.bf16.gmra.mrb[0].mxu0 %v1137
      %v1173 = vpop.f32.mrb[0].mxu0
      %v1174 = vadd.f32 %v1122, %v1173
      %v1175 = vpop.f32.mrb[0].mxu0
      %v1176 = vpop.f32.mrb[0].mxu0
      %v1177 = vpop.f32.mrb[0].mxu0
      %1178 = vdwg.mxu0
      %v1179 = vunpack.c.l.bf16 %v360
      %v1180 = vadd.f32 %v1179, %v1174
      %v1181 = vsel %vm384, %v1180, 0.0
      %1182 = vadd.xlane.f32.xlu0 %v1181
      %v1183 = vpop.xlane.xlu0 %1182
      %v1184 = vrcp.pop 32.0
      %v1185 = vmul.f32 %v1183, %v1184
      %v1186 = vsub.f32 %v1180, %v1185
      %v1187 = vmul.f32 %v1186, %v1186
      %v1188 = vsel %vm384, %v1187, 0.0
      %1189 = vadd.xlane.f32.xlu0 %v1188
      %v1190 = vpop.xlane.xlu0 %1189
      %v1191 = vmul.f32 %v1190, %v1184
      %v1192 = vadd.f32 %v1191, 1e-05
      %v1193 = vrsqrt.pop %v1192
      %v1194 = vmul.f32 %v1186, %v1193
      %v1195 = vld [vmem:[%s7] sm:$0x1]
      %v1197 = vlaneseq
      %v1198 = vshrl.u32 %v1197, 7
      %v1199 = vsub.s32 0, %v1198
      %v1200 = vrot.slane %v1195, %v1199
      %v1202 = vmul.f32 %v1194, %v1200
      %v1203 = vld [vmem:[%s8] sm:$0x1]
      %v1205 = vlaneseq
      %v1206 = vshrl.u32 %v1205, 7
      %v1207 = vsub.s32 0, %v1206
      %v1208 = vrot.slane %v1203, %v1207
      %v1210 = vadd.f32 %v1202, %v1208
      %v1211 = vpack.c.bf16 %v1210, %v1210
      %vm1212 = vcmask 257024
      %1213 = vst.msk [vmem:[%s358] sm:$0xf] %vm1212, %v1211
      %p1214 = scmp.lt.s32.totalorder %s20, 1
      %s1215 = scalar_select %p1214, %s20, 1
      %s1216 = smul.addr %s1215, 4
      %s1217 = scalar_lea.vmem %s9, %s1216
      // Predicated region
      $region57: #{transformer_forward.11} parent=55 // pred_check
        %p1218 = pneg %p242
      $region58: #{transformer_forward.11} parent=55 // pred_check_branch
        %1220 = sbr.rel (%p1218) target = $region60
      $region59: #{transformer_forward.11} parent=55 // pred_region
        _
      $region60: #{transformer_forward.11} parent=55 // pred_fallthru
        _
    $region56: #{transformer_forward.11} parent=5 // pred_fallthru
      _
    %p1221 = scmp.le.s32.totalorder 2, %s15
    // Predicated region
    $region61: #{transformer_forward.11} parent=5 // pred_check
      %p1222 = pneg %p1221
    $region62: #{transformer_forward.11} parent=5 // pred_check_branch
      %1224 = sbr.rel (%p1222) target = $region64
    $region63: #{transformer_forward.11} parent=5 // pred_region
      %s1225 = ssub.s32 %s15, 2
      // Predicated region
      $region65: #{transformer_forward.11} parent=63 // pred_check
        %p1226 = pneg %p248
      $region66: #{transformer_forward.11} parent=63 // pred_check_branch
        %1228 = sbr.rel (%p1226) target = $region68
      $region67: #{transformer_forward.11} parent=63 // pred_region
        %p1229 = scmp.lt.s32.totalorder %s21, 1
        %s1230 = scalar_select %p1229, %s21, 1
        %s1231 = smul.addr %s1230, 4
        %s1232 = scalar_lea.vmem %s9, %s1231
      $region68: #{transformer_forward.11} parent=63 // pred_fallthru
        _
    $region64: #{transformer_forward.11} parent=5 // pred_fallthru
      _
  $region6: #{transformer_forward.11} parent=0 // loop_footer
    %s19 = sadd.s32 1, %s15
  $region7: #{transformer_forward.11} parent=0 // loop_footer_branch
    %14 = sbr.rel target = $region3
  $region8: #{transformer_forward.11} parent=0 // loop_exit
    _

// kernel: transformer_forward.15
$region0: #{transformer_forward.15}
  #allocation0 [shape = 'u32[]', space=smem, size = 0x4, offset = 0x4, fixed_abs, tag = 'smem constant byte address 0x4 - core index']
  #allocation1 [shape = 'u32[144,128]{1,0:T(1,128)}', space=vmem, size = 0x12000, scoped, tag = 'internal scratch']
  %s0 = inlined_call_operand.vmem [shape: bf16[2,8,32], index: 0, kind: input, shape index: {}, may-alias: {0,1}]
  %s1 = inlined_call_operand.vmem [shape: bf16[2,8,32], index: 1, kind: input, shape index: {}, may-alias: {0,1}]
  %s2 = inlined_call_operand.vmem [shape: f32[2,8,8], index: 2, kind: input, shape index: {}]
  %s3 = inlined_call_operand.vmem [shape: bf16[32,96], index: 3, kind: input, shape index: {}]
  %s4 = inlined_call_operand.vmem [shape: f32[1,96], index: 4, kind: input, shape index: {}]
  %s5 = inlined_call_operand.vmem [shape: bf16[32,32], index: 5, kind: input, shape index: {}]
  %s6 = inlined_call_operand.vmem [shape: f32[1,32], index: 6, kind: input, shape index: {}]
  %s7 = inlined_call_operand.vmem [shape: f32[1,32], index: 7, kind: input, shape index: {}]
  %s8 = inlined_call_operand.vmem [shape: f32[1,32], index: 8, kind: input, shape index: {}]
  %s9 = inlined_call_operand.vmem [shape: bf16[2,8,32], index: 9, kind: output, shape index: {}]
  %s10 = sld [smem:[#allocation0]]
  $region69: #{transformer_forward.15} parent=0
    _
  %s12 = ssub.s32 1, %s10
  %s13 = scalar_select 0, %s12, %s10
  loop: start=0, step=1, limit=4
  $region2: #{transformer_forward.15} parent=0 // loop_pre_header
    _
  $region3: #{transformer_forward.15} parent=0 // loop_header
    %s15 = sphi 0, %s19
    %p16 = scmp.ge.s32.totalorder %s15, 4
    %s25 = sphi 0, %s27
    %s28 = sphi 0, %s25
    %s29 = sphi 0, %s28
    %s45 = sphi 0, %s29
    %s51 = sphi 0, %s53
    %s54 = sphi 0, %s51
    %s55 = sphi 0, %s54
    %s71 = sphi 0, %s55
    %s77 = sphi 0, %s79
    %s80 = sphi 0, %s77
    %s81 = sphi 0, %s80
    %s97 = sphi 0, %s81
    %s101 = sphi 0, %s101
    %s103 = sphi 0, %s101
    %s104 = sphi 0, %s103
    %s118 = sphi 0, %s104
    %s122 = sphi 0, %s122
    %s124 = sphi 0, %s122
    %s125 = sphi 0, %s124
    %s139 = sphi 0, %s125
    %s143 = sphi 0, %s143
    %s145 = sphi 0, %s143
    %s146 = sphi 0, %s145
    %s160 = sphi 0, %s146
    %s164 = sphi 0, %s164
    %s166 = sphi 0, %s164
    %s167 = sphi 0, %s166
    %s181 = sphi 0, %s167
    %s185 = sphi 0, %s185
    %s187 = sphi 0, %s185
    %s188 = sphi 0, %s187
    %s202 = sphi 0, %s188
    %s206 = sphi 0, %s206
    %s208 = sphi 0, %s206
    %s209 = sphi 0, %s208
    %s223 = sphi 0, %s209
    %s229 = sphi 0, %s231
    %s232 = sphi 0, %s229
    %s233 = sphi 0, %s232
    %s249 = sphi 0, %s233
  $region4: #{transformer_forward.15} parent=0 // loop_header_branch
    %18 = sbr.rel (%p16) target = $region8
  $region5: #{transformer_forward.15} parent=0 // loop_body
    %s20 = ssub.s32 %s15, 1
    %s21 = ssub.s32 %s15, 2
    %s22 = sadd.s32 %s15, 1
    %s23 = ssub.s32 %s15, %s22
    %p24 = scmp.eq.s32.totalorder %s23, 0
    %s26 = sadd.s32 %s25, 1
    %s27 = scalar_select %p24, %s25, %s26
    %p30 = pneg %p24
    %p31 = scmp.eq.s32.totalorder %s15, 1
    %p32 = por %p30, %p31
    %p33 = scmp.ne.s32.totalorder %s25, %s28
    %p34 = scmp.eq.s32.totalorder %s15, 0
    %p35 = por %p33, %p34
    %p36 = scmp.ne.s32.totalorder %s25, %s28
    %p37 = scmp.eq.s32.totalorder %s20, 1
    %p38 = por %p36, %p37
    %p39 = scmp.ne.s32.totalorder %s28, %s29
    %p40 = scmp.eq.s32.totalorder %s20, 0
    %p41 = por %p39, %p40
    %p42 = scmp.ne.s32.totalorder %s28, %s29
    %p43 = scmp.eq.s32.totalorder %s21, 1
    %p44 = por %p42, %p43
    %p46 = scmp.ne.s32.totalorder %s29, %s45
    %p47 = scmp.eq.s32.totalorder %s21, 0
    %p48 = por %p46, %p47
    %s49 = ssub.s32 %s15, %s22
    %p50 = scmp.eq.s32.totalorder %s49, 0
    %s52 = sadd.s32 %s51, 1
    %s53 = scalar_select %p50, %s51, %s52
    %p56 = pneg %p50
    %p57 = scmp.eq.s32.totalorder %s15, 1
    %p58 = por %p56, %p57
    %p59 = scmp.ne.s32.totalorder %s51, %s54
    %p60 = scmp.eq.s32.totalorder %s15, 0
    %p61 = por %p59, %p60
    %p62 = scmp.ne.s32.totalorder %s51, %s54
    %p63 = scmp.eq.s32.totalorder %s20, 1
    %p64 = por %p62, %p63
    %p65 = scmp.ne.s32.totalorder %s54, %s55
    %p66 = scmp.eq.s32.totalorder %s20, 0
    %p67 = por %p65, %p66
    %p68 = scmp.ne.s32.totalorder %s54, %s55
    %p69 = scmp.eq.s32.totalorder %s21, 1
    %p70 = por %p68, %p69
    %p72 = scmp.ne.s32.totalorder %s55, %s71
    %p73 = scmp.eq.s32.totalorder %s21, 0
    %p74 = por %p72, %p73
    %s75 = ssub.s32 %s15, %s22
    %p76 = scmp.eq.s32.totalorder %s75, 0
    %s78 = sadd.s32 %s77, 1
    %s79 = scalar_select %p76, %s77, %s78
    %p82 = pneg %p76
    %p83 = scmp.eq.s32.totalorder %s15, 1
    %p84 = por %p82, %p83
    %p85 = scmp.ne.s32.totalorder %s77, %s80
    %p86 = scmp.eq.s32.totalorder %s15, 0
    %p87 = por %p85, %p86
    %p88 = scmp.ne.s32.totalorder %s77, %s80
    %p89 = scmp.eq.s32.totalorder %s20, 1
    %p90 = por %p88, %p89
    %p91 = scmp.ne.s32.totalorder %s80, %s81
    %p92 = scmp.eq.s32.totalorder %s20, 0
    %p93 = por %p91, %p92
    %p94 = scmp.ne.s32.totalorder %s80, %s81
    %p95 = scmp.eq.s32.totalorder %s21, 1
    %p96 = por %p94, %p95
    %p98 = scmp.ne.s32.totalorder %s81, %s97
    %p99 = scmp.eq.s32.totalorder %s21, 0
    %p100 = por %p98, %p99
    %s102 = sadd.s32 %s101, 1
    %p105 = scmp.eq.s32.totalorder %s15, 1
    %p106 = scmp.ne.s32.totalorder %s101, %s103
    %p107 = scmp.eq.s32.totalorder %s15, 0
    %p108 = por %p106, %p107
    %p109 = scmp.ne.s32.totalorder %s101, %s103
    %p110 = scmp.eq.s32.totalorder %s20, 1
    %p111 = por %p109, %p110
    %p112 = scmp.ne.s32.totalorder %s103, %s104
    %p113 = scmp.eq.s32.totalorder %s20, 0
    %p114 = por %p112, %p113
    %p115 = scmp.ne.s32.totalorder %s103, %s104
    %p116 = scmp.eq.s32.totalorder %s21, 1
    %p117 = por %p115, %p116
    %p119 = scmp.ne.s32.totalorder %s104, %s118
    %p120 = scmp.eq.s32.totalorder %s21, 0
    %p121 = por %p119, %p120
    %s123 = sadd.s32 %s122, 1
    %p126 = scmp.eq.s32.totalorder %s15, 1
    %p127 = scmp.ne.s32.totalorder %s122, %s124
    %p128 = scmp.eq.s32.totalorder %s15, 0
    %p129 = por %p127, %p128
    %p130 = scmp.ne.s32.totalorder %s122, %s124
    %p131 = scmp.eq.s32.totalorder %s20, 1
    %p132 = por %p130, %p131
    %p133 = scmp.ne.s32.totalorder %s124, %s125
    %p134 = scmp.eq.s32.totalorder %s20, 0
    %p135 = por %p133, %p134
    %p136 = scmp.ne.s32.totalorder %s124, %s125
    %p137 = scmp.eq.s32.totalorder %s21, 1
    %p138 = por %p136, %p137
    %p140 = scmp.ne.s32.totalorder %s125, %s139
    %p141 = scmp.eq.s32.totalorder %s21, 0
    %p142 = por %p140, %p141
    %s144 = sadd.s32 %s143, 1
    %p147 = scmp.eq.s32.totalorder %s15, 1
    %p148 = scmp.ne.s32.totalorder %s143, %s145
    %p149 = scmp.eq.s32.totalorder %s15, 0
    %p150 = por %p148, %p149
    %p151 = scmp.ne.s32.totalorder %s143, %s145
    %p152 = scmp.eq.s32.totalorder %s20, 1
    %p153 = por %p151, %p152
    %p154 = scmp.ne.s32.totalorder %s145, %s146
    %p155 = scmp.eq.s32.totalorder %s20, 0
    %p156 = por %p154, %p155
    %p157 = scmp.ne.s32.totalorder %s145, %s146
    %p158 = scmp.eq.s32.totalorder %s21, 1
    %p159 = por %p157, %p158
    %p161 = scmp.ne.s32.totalorder %s146, %s160
    %p162 = scmp.eq.s32.totalorder %s21, 0
    %p163 = por %p161, %p162
    %s165 = sadd.s32 %s164, 1
    %p168 = scmp.eq.s32.totalorder %s15, 1
    %p169 = scmp.ne.s32.totalorder %s164, %s166
    %p170 = scmp.eq.s32.totalorder %s15, 0
    %p171 = por %p169, %p170
    %p172 = scmp.ne.s32.totalorder %s164, %s166
    %p173 = scmp.eq.s32.totalorder %s20, 1
    %p174 = por %p172, %p173
    %p175 = scmp.ne.s32.totalorder %s166, %s167
    %p176 = scmp.eq.s32.totalorder %s20, 0
    %p177 = por %p175, %p176
    %p178 = scmp.ne.s32.totalorder %s166, %s167
    %p179 = scmp.eq.s32.totalorder %s21, 1
    %p180 = por %p178, %p179
    %p182 = scmp.ne.s32.totalorder %s167, %s181
    %p183 = scmp.eq.s32.totalorder %s21, 0
    %p184 = por %p182, %p183
    %s186 = sadd.s32 %s185, 1
    %p189 = scmp.eq.s32.totalorder %s15, 1
    %p190 = scmp.ne.s32.totalorder %s185, %s187
    %p191 = scmp.eq.s32.totalorder %s15, 0
    %p192 = por %p190, %p191
    %p193 = scmp.ne.s32.totalorder %s185, %s187
    %p194 = scmp.eq.s32.totalorder %s20, 1
    %p195 = por %p193, %p194
    %p196 = scmp.ne.s32.totalorder %s187, %s188
    %p197 = scmp.eq.s32.totalorder %s20, 0
    %p198 = por %p196, %p197
    %p199 = scmp.ne.s32.totalorder %s187, %s188
    %p200 = scmp.eq.s32.totalorder %s21, 1
    %p201 = por %p199, %p200
    %p203 = scmp.ne.s32.totalorder %s188, %s202
    %p204 = scmp.eq.s32.totalorder %s21, 0
    %p205 = por %p203, %p204
    %s207 = sadd.s32 %s206, 1
    %p210 = scmp.eq.s32.totalorder %s15, 1
    %p211 = scmp.ne.s32.totalorder %s206, %s208
    %p212 = scmp.eq.s32.totalorder %s15, 0
    %p213 = por %p211, %p212
    %p214 = scmp.ne.s32.totalorder %s206, %s208
    %p215 = scmp.eq.s32.totalorder %s20, 1
    %p216 = por %p214, %p215
    %p217 = scmp.ne.s32.totalorder %s208, %s209
    %p218 = scmp.eq.s32.totalorder %s20, 0
    %p219 = por %p217, %p218
    %p220 = scmp.ne.s32.totalorder %s208, %s209
    %p221 = scmp.eq.s32.totalorder %s21, 1
    %p222 = por %p220, %p221
    %p224 = scmp.ne.s32.totalorder %s209, %s223
    %p225 = scmp.eq.s32.totalorder %s21, 0
    %p226 = por %p224, %p225
    %s227 = ssub.s32 %s15, %s22
    %p228 = scmp.eq.s32.totalorder %s227, 0
    %s230 = sadd.s32 %s229, 1
    %s231 = scalar_select %p228, %s229, %s230
    %p234 = pneg %p228
    %p235 = scmp.eq.s32.totalorder %s15, 1
    %p236 = por %p234, %p235
    %p237 = scmp.ne.s32.totalorder %s229, %s232
    %p238 = scmp.eq.s32.totalorder %s15, 0
    %p239 = por %p237, %p238
    %p240 = scmp.ne.s32.totalorder %s229, %s232
    %p241 = scmp.eq.s32.totalorder %s20, 1
    %p242 = por %p240, %p241
    %p243 = scmp.ne.s32.totalorder %s232, %s233
    %p244 = scmp.eq.s32.totalorder %s20, 0
    %p245 = por %p243, %p244
    %p246 = scmp.ne.s32.totalorder %s232, %s233
    %p247 = scmp.eq.s32.totalorder %s21, 1
    %p248 = por %p246, %p247
    %p250 = scmp.ne.s32.totalorder %s233, %s249
    %p251 = scmp.eq.s32.totalorder %s21, 0
    %p252 = por %p250, %p251
    %p253 = scmp.le.s32.totalorder 1, %s15
    %p254 = scmp.lt.s32.totalorder %s15, 3
    %p255 = pnand %p253, %p254
    %p256 = pneg %p255
    // Predicated region
    $region9: #{transformer_forward.15} parent=5 // pred_check
      _
    $region10: #{transformer_forward.15} parent=5 // pred_check_branch
      %258 = sbr.rel (%p255) target = $region12
    $region11: #{transformer_forward.15} parent=5 // pred_region
      %s259 = ssub.s32 %s15, 1
      // Predicated region
      $region13: #{transformer_forward.15} parent=11 // pred_check
        %p260 = pneg %p114
      $region14: #{transformer_forward.15} parent=11 // pred_check_branch
        %262 = sbr.rel (%p260) target = $region16
      $region15: #{transformer_forward.15} parent=11 // pred_region
        _
      $region16: #{transformer_forward.15} parent=11 // pred_fallthru
        _
      // Predicated region
      $region17: #{transformer_forward.15} parent=11 // pred_check
        %p263 = pneg %p135
      $region18: #{transformer_forward.15} parent=11 // pred_check_branch
        %265 = sbr.rel (%p263) target = $region20
      $region19: #{transformer_forward.15} parent=11 // pred_region
        _
      $region20: #{transformer_forward.15} parent=11 // pred_fallthru
        _
      // Predicated region
      $region21: #{transformer_forward.15} parent=11 // pred_check
        %p266 = pneg %p156
      $region22: #{transformer_forward.15} parent=11 // pred_check_branch
        %268 = sbr.rel (%p266) target = $region24
      $region23: #{transformer_forward.15} parent=11 // pred_region
        _
      $region24: #{transformer_forward.15} parent=11 // pred_fallthru
        _
      // Predicated region
      $region25: #{transformer_forward.15} parent=11 // pred_check
        %p269 = pneg %p177
      $region26: #{transformer_forward.15} parent=11 // pred_check_branch
        %271 = sbr.rel (%p269) target = $region28
      $region27: #{transformer_forward.15} parent=11 // pred_region
        _
      $region28: #{transformer_forward.15} parent=11 // pred_fallthru
        _
      // Predicated region
      $region29: #{transformer_forward.15} parent=11 // pred_check
        %p272 = pneg %p198
      $region30: #{transformer_forward.15} parent=11 // pred_check_branch
        %274 = sbr.rel (%p272) target = $region32
      $region31: #{transformer_forward.15} parent=11 // pred_region
        _
      $region32: #{transformer_forward.15} parent=11 // pred_fallthru
        _
      // Predicated region
      $region33: #{transformer_forward.15} parent=11 // pred_check
        %p275 = pneg %p219
      $region34: #{transformer_forward.15} parent=11 // pred_check_branch
        %277 = sbr.rel (%p275) target = $region36
      $region35: #{transformer_forward.15} parent=11 // pred_region
        _
      $region36: #{transformer_forward.15} parent=11 // pred_fallthru
        _
    $region12: #{transformer_forward.15} parent=5 // pred_fallthru
      _
    %p278 = scmp.lt.s32.totalorder %s15, 2
    // Predicated region
    $region37: #{transformer_forward.15} parent=5 // pred_check
      %p279 = pneg %p278
    $region38: #{transformer_forward.15} parent=5 // pred_check_branch
      %281 = sbr.rel (%p279) target = $region40
    $region39: #{transformer_forward.15} parent=5 // pred_region
      // Predicated region
      $region41: #{transformer_forward.15} parent=39 // pred_check
        %p282 = pneg %p35
      $region42: #{transformer_forward.15} parent=39 // pred_check_branch
        %284 = sbr.rel (%p282) target = $region44
      $region43: #{transformer_forward.15} parent=39 // pred_region
        %p285 = scmp.lt.s32.totalorder %s15, 1
        %s286 = scalar_select %p285, %s15, 1
        %s287 = smul.addr %s286, 4
        %s288 = scalar_lea.vmem %s0, %s287
      $region44: #{transformer_forward.15} parent=39 // pred_fallthru
        _
      // Predicated region
      $region45: #{transformer_forward.15} parent=39 // pred_check
        %p289 = pneg %p61
      $region46: #{transformer_forward.15} parent=39 // pred_check_branch
        %291 = sbr.rel (%p289) target = $region48
      $region47: #{transformer_forward.15} parent=39 // pred_region
        %p292 = scmp.lt.s32.totalorder %s15, 1
        %s293 = scalar_select %p292, %s15, 1
        %s294 = smul.addr %s293, 4
        %s295 = scalar_lea.vmem %s1, %s294
      $region48: #{transformer_forward.15} parent=39 // pred_fallthru
        _
      // Predicated region
      $region49: #{transformer_forward.15} parent=39 // pred_check
        %p296 = pneg %p87
      $region50: #{transformer_forward.15} parent=39 // pred_check_branch
        %298 = sbr.rel (%p296) target = $region52
      $region51: #{transformer_forward.15} parent=39 // pred_region
        %p299 = scmp.lt.s32.totalorder %s15, 1
        %s300 = scalar_select %p299, %s15, 1
        %s301 = smul.addr %s300, 8
        %s302 = scalar_lea.vmem %s2, %s301
      $region52: #{transformer_forward.15} parent=39 // pred_fallthru
        _
    $region40: #{transformer_forward.15} parent=5 // pred_fallthru
      _
    %p303 = scmp.le.s32.totalorder 1, %s15
    %p304 = scmp.lt.s32.totalorder %s15, 3
    %p305 = pnand %p303, %p304
    %p306 = pneg %p305
    // Predicated region
    $region53: #{transformer_forward.15} parent=5 // pred_check
      _
    $region54: #{transformer_forward.15} parent=5 // pred_check_branch
      %308 = sbr.rel (%p305) target = $region56
    $region55: #{transformer_forward.15} parent=5 // pred_region
      %s309 = ssub.s32 %s15, 1
      %p310 = scmp.lt.s32.totalorder %s20, 1
      %s311 = scalar_select %p310, %s20, 1
      %s312 = smul.addr %s311, 4
      %s313 = scalar_lea.vmem %s0, %s312
      %p314 = pneg %p41
      %p315 = pneg %p38
      %p316 = scmp.lt.s32.totalorder %s20, 1
      %s317 = scalar_select %p316, %s20, 1
      %s318 = smul.addr %s317, 4
      %s319 = scalar_lea.vmem %s1, %s318
      %p320 = pneg %p67
      %p321 = pneg %p64
      %p322 = scmp.lt.s32.totalorder %s20, 1
      %s323 = scalar_select %p322, %s20, 1
      %s324 = smul.addr %s323, 8
      %s325 = scalar_lea.vmem %s2, %s324
      %p326 = pneg %p93
      %p327 = pneg %p90
      %p328 = pneg %p114
      %p329 = pneg %p111
      %p330 = pneg %p135
      %p331 = pneg %p132
      %p332 = pneg %p156
      %p333 = pneg %p153
      %p334 = pneg %p177
      %p335 = pneg %p174
      %p336 = pneg %p198
      %p337 = pneg %p195
      %p338 = pneg %p219
      %p339 = pneg %p216
      %p340 = pneg %p245
      %p341 = pneg %p242
      %p342 = scmp.lt.s32.totalorder %s20, 1
      %s343 = scalar_select %p342, %s20, 1
      %s344 = smul.addr %s343, 4
      %s345 = scalar_lea.vmem %s9, %s344
      %p346 = scmp.lt.s32.totalorder %s20, 1
      %s347 = scalar_select %p346, %s20, 1
      %s348 = smul.addr %s347, 4
      %s349 = scalar_lea.vmem %s0, %s348
      %p350 = scmp.lt.s32.totalorder %s20, 1
      %s351 = scalar_select %p350, %s20, 1
      %s352 = smul.addr %s351, 4
      %s353 = scalar_lea.vmem %s1, %s352
      %p354 = scmp.lt.s32.totalorder %s20, 1
      %s355 = scalar_select %p354, %s20, 1
      %s356 = smul.addr %s355, 8
      %s357 = scalar_lea.vmem %s2, %s356
      %p358 = scmp.lt.s32.totalorder %s20, 1
      %s359 = scalar_select %p358, %s20, 1
      %s360 = smul.addr %s359, 4
      %s361 = scalar_lea.vmem %s9, %s360
      %v363 = vld [vmem:[%s349] sm:$0xf]
      %v364 = vld [vmem:[%s3] sm:$0xf]
      %v365 = vld [vmem:[%s3 + $0x4] sm:$0xf]
      %v366 = vld [vmem:[%s3 + $0x8] sm:$0xf]
      %v367 = vld [vmem:[%s3 + $0xc] sm:$0xf]
      %v368 = vld [vmem:[%s4] sm:$0x1]
      %v370 = vlaneseq
      %v371 = vshrl.u32 %v370, 7
      %v372 = vsub.s32 0, %v371
      %v373 = vrot.slane %v368, %v372
      %v379 = vunpack.c.l.b16 %v364
      %v380 = vunpack.c.l.b16 %v365
      %v381 = vunpack.c.l.b16 %v366
      %v382 = vunpack.c.l.b16 %v367
      %v383 = vpack.c.b16 %v380, %v379
      %v384 = vpack.c.b16 %v382, %v381
      %vm387 = vcmask 261120
      %v389 = vsel %vm387, %v363, 0
      %391 = vmatprep.subr.bf16.mxu0 0
      %392 = vmatpush1.bf16.msra.mxu0 %v383
      %393 = vmatprep.subr.bf16.mxu0 0
      %394 = vmatpush1.bf16.msra.mxu0 %v384
      %395 = vmatprep.subr.bf16.mxu0 0
      %396 = vmatpush1.bf16.msra.mxu0 0
      %397 = vmatprep.subr.bf16.mxu0 0
      %398 = vmatpush1.bf16.msra.mxu0 0
      %399 = vmatprep.subr.bf16.mxu0 0
      %400 = vmatpush1.bf16.msra.mxu0 0
      %401 = vmatprep.subr.bf16.mxu0 0
      %402 = vmatpush1.bf16.msra.mxu0 0
      %403 = vmatprep.subr.bf16.mxu0 0
      %404 = vmatpush1.bf16.msra.mxu0 0
      %405 = vmatprep.subr.bf16.mxu0 0
      %406 = vmatpush1.bf16.msra.mxu0 0
      %407 = vmatprep.subr.bf16.mxu0 0
      %408 = vmatpush1.bf16.msra.mxu0 0
      %409 = vmatprep.subr.bf16.mxu0 0
      %410 = vmatpush1.bf16.msra.mxu0 0
      %411 = vmatprep.subr.bf16.mxu0 0
      %412 = vmatpush1.bf16.msra.mxu0 0
      %413 = vmatprep.subr.bf16.mxu0 0
      %414 = vmatpush1.bf16.msra.mxu0 0
      %415 = vmatprep.subr.bf16.mxu0 0
      %416 = vmatpush1.bf16.msra.mxu0 0
      %417 = vmatprep.subr.bf16.mxu0 0
      %418 = vmatpush1.bf16.msra.mxu0 0
      %419 = vmatprep.subr.bf16.mxu0 0
      %420 = vmatpush1.bf16.msra.mxu0 0
      %421 = vmatprep.subr.bf16.mxu0 0
      %422 = vmatpush1.bf16.msra.mxu0 0
      %423 = vmatprep.mubr.bf16.mxu0 0
      %424 = vmatmul.mubr.bf16.gmra.mrb[0].mxu0 %v389
      %v425 = vpop.f32.mrb[0].mxu0
      %v426 = vadd.f32 %v373, %v425
      %v427 = vpop.f32.mrb[0].mxu0
      %v428 = vpop.f32.mrb[0].mxu0
      %v429 = vpop.f32.mrb[0].mxu0
      %430 = vdwg.mxu0
      %v431 = vld [vmem:[%s357] sm:$0xff]
      %433 = vrot.lane.b32.xlu0 %v426, 96
      %v434 = vpop.permute.xlu0 %433
      %vm435 = vcmask 64512
      %v436 = vsel %vm435, %v426, 0
      %v438 = vsel %vm435, %v434, 0
      %440 = vmatprep.subr.mxu0 0.0
      %441 = vmatpush1.xpose.msra.mxu0 %v438
      %442 = vmatprep.subr.mxu0 0.0
      %443 = vmatpush1.xpose.msra.mxu0 0.0
      %444 = vmatprep.subr.mxu0 0.0
      %445 = vmatpush1.xpose.msra.mxu0 0.0
      %446 = vmatprep.subr.mxu0 0.0
      %447 = vmatpush1.xpose.msra.mxu0 0.0
      %448 = vmatprep.subr.mxu0 0.0
      %449 = vmatpush1.xpose.msra.mxu0 0.0
      %450 = vmatprep.subr.mxu0 0.0
      %451 = vmatpush1.xpose.msra.mxu0 0.0
      %452 = vmatprep.subr.mxu0 0.0
      %453 = vmatpush1.xpose.msra.mxu0 0.0
      %454 = vmatprep.subr.mxu0 0.0
      %455 = vmatpush1.xpose.msra.mxu0 0.0
      %456 = vmatprep.subr.mxu0 0.0
      %457 = vmatpush1.xpose.msra.mxu0 0.0
      %458 = vmatprep.subr.mxu0 0.0
      %459 = vmatpush1.xpose.msra.mxu0 0.0
      %460 = vmatprep.subr.mxu0 0.0
      %461 = vmatpush1.xpose.msra.mxu0 0.0
      %462 = vmatprep.subr.mxu0 0.0
      %463 = vmatpush1.xpose.msra.mxu0 0.0
      %464 = vmatprep.subr.mxu0 0.0
      %465 = vmatpush1.xpose.msra.mxu0 0.0
      %466 = vmatprep.subr.mxu0 0.0
      %467 = vmatpush1.xpose.msra.mxu0 0.0
      %468 = vmatprep.subr.mxu0 0.0
      %469 = vmatpush1.xpose.msra.mxu0 0.0
      %470 = vmatprep.subr.mxu0 0.0
      %471 = vmatpush1.xpose.msra.mxu0 0.0
      %472 = vmatprep.subr.mxu0 0.0
      %473 = vmatpush1.xpose.msra.mxu0 0.0
      %474 = vmatprep.subr.mxu0 0.0
      %475 = vmatpush1.xpose.msra.mxu0 0.0
      %476 = vmatprep.subr.mxu0 0.0
      %477 = vmatpush1.xpose.msra.mxu0 0.0
      %478 = vmatprep.subr.mxu0 0.0
      %479 = vmatpush1.xpose.msra.mxu0 0.0
      %480 = vmatprep.subr.mxu0 0.0
      %481 = vmatpush1.xpose.msra.mxu0 0.0
      %482 = vmatprep.subr.mxu0 0.0
      %483 = vmatpush1.xpose.msra.mxu0 0.0
      %484 = vmatprep.subr.mxu0 0.0
      %485 = vmatpush1.xpose.msra.mxu0 0.0
      %486 = vmatprep.subr.mxu0 0.0
      %487 = vmatpush1.xpose.msra.mxu0 0.0
      %488 = vmatprep.subr.mxu0 0.0
      %489 = vmatpush1.xpose.msra.mxu0 0.0
      %490 = vmatprep.subr.mxu0 0.0
      %491 = vmatpush1.xpose.msra.mxu0 0.0
      %492 = vmatprep.subr.mxu0 0.0
      %493 = vmatpush1.xpose.msra.mxu0 0.0
      %494 = vmatprep.subr.mxu0 0.0
      %495 = vmatpush1.xpose.msra.mxu0 0.0
      %496 = vmatprep.subr.mxu0 0.0
      %497 = vmatpush1.xpose.msra.mxu0 0.0
      %498 = vmatprep.subr.mxu0 0.0
      %499 = vmatpush1.xpose.msra.mxu0 0.0
      %500 = vmatprep.subr.mxu0 0.0
      %501 = vmatpush1.xpose.msra.mxu0 0.0
      %502 = vmatprep.subr.mxu0 0.0
      %503 = vmatpush1.xpose.msra.mxu0 0.0
      %504 = vmatprep.mubr.f32.mxu0 0.0
      %505 = vmatmul.mubr.f32.gmra.mrb[0].mxu0 %v436
      %v506 = vpop.f32.mrb[0].mxu0
      %v507 = vadd.f32 %v431, %v506
      %v508 = vpop.f32.mrb[0].mxu0
      %509 = vdwg.mxu0
      %v510 = vsel %vm435, %v507, -inf
      %511 = vmax.xlane.f32.xlu0 %v510
      %v512 = vpop.xlane.xlu0 %511
      %v513 = vsub.f32 %v507, %v512
      %v514 = vmul.f32 %v513, 1.442695
      %v515 = vpow.pop %v514
      %v516 = vsel %vm435, %v515, 0.0
      %517 = vadd.xlane.f32.xlu0 %v516
      %v518 = vpop.xlane.xlu0 %517
      %v519 = vrcp.pop %v518
      %v520 = vmul.f32 %v515, %v519
      %521 = vrot.lane.b32.xlu0 %v426, 64
      %v522 = vpop.permute.xlu0 %521
      %v525 = vsel %vm435, %v520, 0
      %527 = vmatprep.subr.mxu0 0.0
      %528 = vmatpush1.msra.mxu0 %v522
      %529 = vmatprep.subr.mxu0 0.0
      %530 = vmatpush1.msra.mxu0 0.0
      %531 = vmatprep.subr.mxu0 0.0
      %532 = vmatpush1.msra.mxu0 0.0
      %533 = vmatprep.subr.mxu0 0.0
      %534 = vmatpush1.msra.mxu0 0.0
      %535 = vmatprep.subr.mxu0 0.0
      %536 = vmatpush1.msra.mxu0 0.0
      %537 = vmatprep.subr.mxu0 0.0
      %538 = vmatpush1.msra.mxu0 0.0
      %539 = vmatprep.subr.mxu0 0.0
      %540 = vmatpush1.msra.mxu0 0.0
      %541 = vmatprep.subr.mxu0 0.0
      %542 = vmatpush1.msra.mxu0 0.0
      %543 = vmatprep.subr.mxu0 0.0
      %544 = vmatpush1.msra.mxu0 0.0
      %545 = vmatprep.subr.mxu0 0.0
      %546 = vmatpush1.msra.mxu0 0.0
      %547 = vmatprep.subr.mxu0 0.0
      %548 = vmatpush1.msra.mxu0 0.0
      %549 = vmatprep.subr.mxu0 0.0
      %550 = vmatpush1.msra.mxu0 0.0
      %551 = vmatprep.subr.mxu0 0.0
      %552 = vmatpush1.msra.mxu0 0.0
      %553 = vmatprep.subr.mxu0 0.0
      %554 = vmatpush1.msra.mxu0 0.0
      %555 = vmatprep.subr.mxu0 0.0
      %556 = vmatpush1.msra.mxu0 0.0
      %557 = vmatprep.subr.mxu0 0.0
      %558 = vmatpush1.msra.mxu0 0.0
      %559 = vmatprep.subr.mxu0 0.0
      %560 = vmatpush1.msra.mxu0 0.0
      %561 = vmatprep.subr.mxu0 0.0
      %562 = vmatpush1.msra.mxu0 0.0
      %563 = vmatprep.subr.mxu0 0.0
      %564 = vmatpush1.msra.mxu0 0.0
      %565 = vmatprep.subr.mxu0 0.0
      %566 = vmatpush1.msra.mxu0 0.0
      %567 = vmatprep.subr.mxu0 0.0
      %568 = vmatpush1.msra.mxu0 0.0
      %569 = vmatprep.subr.mxu0 0.0
      %570 = vmatpush1.msra.mxu0 0.0
      %571 = vmatprep.subr.mxu0 0.0
      %572 = vmatpush1.msra.mxu0 0.0
      %573 = vmatprep.subr.mxu0 0.0
      %574 = vmatpush1.msra.mxu0 0.0
      %575 = vmatprep.subr.mxu0 0.0
      %576 = vmatpush1.msra.mxu0 0.0
      %577 = vmatprep.subr.mxu0 0.0
      %578 = vmatpush1.msra.mxu0 0.0
      %579 = vmatprep.subr.mxu0 0.0
      %580 = vmatpush1.msra.mxu0 0.0
      %581 = vmatprep.subr.mxu0 0.0
      %582 = vmatpush1.msra.mxu0 0.0
      %583 = vmatprep.subr.mxu0 0.0
      %584 = vmatpush1.msra.mxu0 0.0
      %585 = vmatprep.subr.mxu0 0.0
      %586 = vmatpush1.msra.mxu0 0.0
      %587 = vmatprep.subr.mxu0 0.0
      %588 = vmatpush1.msra.mxu0 0.0
      %589 = vmatprep.subr.mxu0 0.0
      %590 = vmatpush1.msra.mxu0 0.0
      %591 = vmatprep.mubr.f32.mxu0 0.0
      %592 = vmatmul.mubr.f32.gmra.mrb[0].mxu0 %v525
      %v593 = vpop.f32.mrb[0].mxu0
      %v594 = vadd.f32 0.0, %v593
      %v595 = vpop.f32.mrb[0].mxu0
      %596 = vdwg.mxu0
      %597 = vrot.lane.b32.xlu0 %v426, 120
      %v598 = vpop.permute.xlu0 %597
      %599 = vrot.lane.b32.xlu0 %v426, 88
      %v600 = vpop.permute.xlu0 %599
      %v601 = vsel %vm435, %v598, 0
      %v603 = vsel %vm435, %v600, 0
      %605 = vmatprep.subr.mxu0 0.0
      %606 = vmatpush1.xpose.msra.mxu0 %v603
      %607 = vmatprep.subr.mxu0 0.0
      %608 = vmatpush1.xpose.msra.mxu0 0.0
      %609 = vmatprep.subr.mxu0 0.0
      %610 = vmatpush1.xpose.msra.mxu0 0.0
      %611 = vmatprep.subr.mxu0 0.0
      %612 = vmatpush1.xpose.msra.mxu0 0.0
      %613 = vmatprep.subr.mxu0 0.0
      %614 = vmatpush1.xpose.msra.mxu0 0.0
      %615 = vmatprep.subr.mxu0 0.0
      %616 = vmatpush1.xpose.msra.mxu0 0.0
      %617 = vmatprep.subr.mxu0 0.0
      %618 = vmatpush1.xpose.msra.mxu0 0.0
      %619 = vmatprep.subr.mxu0 0.0
      %620 = vmatpush1.xpose.msra.mxu0 0.0
      %621 = vmatprep.subr.mxu0 0.0
      %622 = vmatpush1.xpose.msra.mxu0 0.0
      %623 = vmatprep.subr.mxu0 0.0
      %624 = vmatpush1.xpose.msra.mxu0 0.0
      %625 = vmatprep.subr.mxu0 0.0
      %626 = vmatpush1.xpose.msra.mxu0 0.0
      %627 = vmatprep.subr.mxu0 0.0
      %628 = vmatpush1.xpose.msra.mxu0 0.0
      %629 = vmatprep.subr.mxu0 0.0
      %630 = vmatpush1.xpose.msra.mxu0 0.0
      %631 = vmatprep.subr.mxu0 0.0
      %632 = vmatpush1.xpose.msra.mxu0 0.0
      %633 = vmatprep.subr.mxu0 0.0
      %634 = vmatpush1.xpose.msra.mxu0 0.0
      %635 = vmatprep.subr.mxu0 0.0
      %636 = vmatpush1.xpose.msra.mxu0 0.0
      %637 = vmatprep.subr.mxu0 0.0
      %638 = vmatpush1.xpose.msra.mxu0 0.0
      %639 = vmatprep.subr.mxu0 0.0
      %640 = vmatpush1.xpose.msra.mxu0 0.0
      %641 = vmatprep.subr.mxu0 0.0
      %642 = vmatpush1.xpose.msra.mxu0 0.0
      %643 = vmatprep.subr.mxu0 0.0
      %644 = vmatpush1.xpose.msra.mxu0 0.0
      %645 = vmatprep.subr.mxu0 0.0
      %646 = vmatpush1.xpose.msra.mxu0 0.0
      %647 = vmatprep.subr.mxu0 0.0
      %648 = vmatpush1.xpose.msra.mxu0 0.0
      %649 = vmatprep.subr.mxu0 0.0
      %650 = vmatpush1.xpose.msra.mxu0 0.0
      %651 = vmatprep.subr.mxu0 0.0
      %652 = vmatpush1.xpose.msra.mxu0 0.0
      %653 = vmatprep.subr.mxu0 0.0
      %654 = vmatpush1.xpose.msra.mxu0 0.0
      %655 = vmatprep.subr.mxu0 0.0
      %656 = vmatpush1.xpose.msra.mxu0 0.0
      %657 = vmatprep.subr.mxu0 0.0
      %658 = vmatpush1.xpose.msra.mxu0 0.0
      %659 = vmatprep.subr.mxu0 0.0
      %660 = vmatpush1.xpose.msra.mxu0 0.0
      %661 = vmatprep.subr.mxu0 0.0
      %662 = vmatpush1.xpose.msra.mxu0 0.0
      %663 = vmatprep.subr.mxu0 0.0
      %664 = vmatpush1.xpose.msra.mxu0 0.0
      %665 = vmatprep.subr.mxu0 0.0
      %666 = vmatpush1.xpose.msra.mxu0 0.0
      %667 = vmatprep.subr.mxu0 0.0
      %668 = vmatpush1.xpose.msra.mxu0 0.0
      %669 = vmatprep.mubr.f32.mxu0 0.0
      %670 = vmatmul.mubr.f32.gmra.mrb[0].mxu0 %v601
      %v671 = vpop.f32.mrb[0].mxu0
      %v672 = vadd.f32 %v431, %v671
      %v673 = vpop.f32.mrb[0].mxu0
      %674 = vdwg.mxu0
      %v675 = vsel %vm435, %v672, -inf
      %676 = vmax.xlane.f32.xlu0 %v675
      %v677 = vpop.xlane.xlu0 %676
      %v678 = vsub.f32 %v672, %v677
      %v679 = vmul.f32 %v678, 1.442695
      %v680 = vpow.pop %v679
      %v681 = vsel %vm435, %v680, 0.0
      %682 = vadd.xlane.f32.xlu0 %v681
      %v683 = vpop.xlane.xlu0 %682
      %v684 = vrcp.pop %v683
      %v685 = vmul.f32 %v680, %v684
      %686 = vrot.lane.b32.xlu0 %v426, 56
      %v687 = vpop.permute.xlu0 %686
      %v690 = vsel %vm435, %v685, 0
      %692 = vmatprep.subr.mxu0 0.0
      %693 = vmatpush1.msra.mxu0 %v687
      %694 = vmatprep.subr.mxu0 0.0
      %695 = vmatpush1.msra.mxu0 0.0
      %696 = vmatprep.subr.mxu0 0.0
      %697 = vmatpush1.msra.mxu0 0.0
      %698 = vmatprep.subr.mxu0 0.0
      %699 = vmatpush1.msra.mxu0 0.0
      %700 = vmatprep.subr.mxu0 0.0
      %701 = vmatpush1.msra.mxu0 0.0
      %702 = vmatprep.subr.mxu0 0.0
      %703 = vmatpush1.msra.mxu0 0.0
      %704 = vmatprep.subr.mxu0 0.0
      %705 = vmatpush1.msra.mxu0 0.0
      %706 = vmatprep.subr.mxu0 0.0
      %707 = vmatpush1.msra.mxu0 0.0
      %708 = vmatprep.subr.mxu0 0.0
      %709 = vmatpush1.msra.mxu0 0.0
      %710 = vmatprep.subr.mxu0 0.0
      %711 = vmatpush1.msra.mxu0 0.0
      %712 = vmatprep.subr.mxu0 0.0
      %713 = vmatpush1.msra.mxu0 0.0
      %714 = vmatprep.subr.mxu0 0.0
      %715 = vmatpush1.msra.mxu0 0.0
      %716 = vmatprep.subr.mxu0 0.0
      %717 = vmatpush1.msra.mxu0 0.0
      %718 = vmatprep.subr.mxu0 0.0
      %719 = vmatpush1.msra.mxu0 0.0
      %720 = vmatprep.subr.mxu0 0.0
      %721 = vmatpush1.msra.mxu0 0.0
      %722 = vmatprep.subr.mxu0 0.0
      %723 = vmatpush1.msra.mxu0 0.0
      %724 = vmatprep.subr.mxu0 0.0
      %725 = vmatpush1.msra.mxu0 0.0
      %726 = vmatprep.subr.mxu0 0.0
      %727 = vmatpush1.msra.mxu0 0.0
      %728 = vmatprep.subr.mxu0 0.0
      %729 = vmatpush1.msra.mxu0 0.0
      %730 = vmatprep.subr.mxu0 0.0
      %731 = vmatpush1.msra.mxu0 0.0
      %732 = vmatprep.subr.mxu0 0.0
      %733 = vmatpush1.msra.mxu0 0.0
      %734 = vmatprep.subr.mxu0 0.0
      %735 = vmatpush1.msra.mxu0 0.0
      %736 = vmatprep.subr.mxu0 0.0
      %737 = vmatpush1.msra.mxu0 0.0
      %738 = vmatprep.subr.mxu0 0.0
      %739 = vmatpush1.msra.mxu0 0.0
      %740 = vmatprep.subr.mxu0 0.0
      %741 = vmatpush1.msra.mxu0 0.0
      %742 = vmatprep.subr.mxu0 0.0
      %743 = vmatpush1.msra.mxu0 0.0
      %744 = vmatprep.subr.mxu0 0.0
      %745 = vmatpush1.msra.mxu0 0.0
      %746 = vmatprep.subr.mxu0 0.0
      %747 = vmatpush1.msra.mxu0 0.0
      %748 = vmatprep.subr.mxu0 0.0
      %749 = vmatpush1.msra.mxu0 0.0
      %750 = vmatprep.subr.mxu0 0.0
      %751 = vmatpush1.msra.mxu0 0.0
      %752 = vmatprep.subr.mxu0 0.0
      %753 = vmatpush1.msra.mxu0 0.0
      %754 = vmatprep.subr.mxu0 0.0
      %755 = vmatpush1.msra.mxu0 0.0
      %756 = vmatprep.mubr.f32.mxu0 0.0
      %757 = vmatmul.mubr.f32.gmra.mrb[0].mxu0 %v690
      %v758 = vpop.f32.mrb[0].mxu0
      %v759 = vadd.f32 0.0, %v758
      %v760 = vpop.f32.mrb[0].mxu0
      %761 = vdwg.mxu0
      %762 = vrot.lane.b32.xlu0 %v426, 112
      %v763 = vpop.permute.xlu0 %762
      %764 = vrot.lane.b32.xlu0 %v426, 80
      %v765 = vpop.permute.xlu0 %764
      %v766 = vsel %vm435, %v763, 0
      %v768 = vsel %vm435, %v765, 0
      %770 = vmatprep.subr.mxu0 0.0
      %771 = vmatpush1.xpose.msra.mxu0 %v768
      %772 = vmatprep.subr.mxu0 0.0
      %773 = vmatpush1.xpose.msra.mxu0 0.0
      %774 = vmatprep.subr.mxu0 0.0
      %775 = vmatpush1.xpose.msra.mxu0 0.0
      %776 = vmatprep.subr.mxu0 0.0
      %777 = vmatpush1.xpose.msra.mxu0 0.0
      %778 = vmatprep.subr.mxu0 0.0
      %779 = vmatpush1.xpose.msra.mxu0 0.0
      %780 = vmatprep.subr.mxu0 0.0
      %781 = vmatpush1.xpose.msra.mxu0 0.0
      %782 = vmatprep.subr.mxu0 0.0
      %783 = vmatpush1.xpose.msra.mxu0 0.0
      %784 = vmatprep.subr.mxu0 0.0
      %785 = vmatpush1.xpose.msra.mxu0 0.0
      %786 = vmatprep.subr.mxu0 0.0
      %787 = vmatpush1.xpose.msra.mxu0 0.0
      %788 = vmatprep.subr.mxu0 0.0
      %789 = vmatpush1.xpose.msra.mxu0 0.0
      %790 = vmatprep.subr.mxu0 0.0
      %791 = vmatpush1.xpose.msra.mxu0 0.0
      %792 = vmatprep.subr.mxu0 0.0
      %793 = vmatpush1.xpose.msra.mxu0 0.0
      %794 = vmatprep.subr.mxu0 0.0
      %795 = vmatpush1.xpose.msra.mxu0 0.0
      %796 = vmatprep.subr.mxu0 0.0
      %797 = vmatpush1.xpose.msra.mxu0 0.0
      %798 = vmatprep.subr.mxu0 0.0
      %799 = vmatpush1.xpose.msra.mxu0 0.0
      %800 = vmatprep.subr.mxu0 0.0
      %801 = vmatpush1.xpose.msra.mxu0 0.0
      %802 = vmatprep.subr.mxu0 0.0
      %803 = vmatpush1.xpose.msra.mxu0 0.0
      %804 = vmatprep.subr.mxu0 0.0
      %805 = vmatpush1.xpose.msra.mxu0 0.0
      %806 = vmatprep.subr.mxu0 0.0
      %807 = vmatpush1.xpose.msra.mxu0 0.0
      %808 = vmatprep.subr.mxu0 0.0
      %809 = vmatpush1.xpose.msra.mxu0 0.0
      %810 = vmatprep.subr.mxu0 0.0
      %811 = vmatpush1.xpose.msra.mxu0 0.0
      %812 = vmatprep.subr.mxu0 0.0
      %813 = vmatpush1.xpose.msra.mxu0 0.0
      %814 = vmatprep.subr.mxu0 0.0
      %815 = vmatpush1.xpose.msra.mxu0 0.0
      %816 = vmatprep.subr.mxu0 0.0
      %817 = vmatpush1.xpose.msra.mxu0 0.0
      %818 = vmatprep.subr.mxu0 0.0
      %819 = vmatpush1.xpose.msra.mxu0 0.0
      %820 = vmatprep.subr.mxu0 0.0
      %821 = vmatpush1.xpose.msra.mxu0 0.0
      %822 = vmatprep.subr.mxu0 0.0
      %823 = vmatpush1.xpose.msra.mxu0 0.0
      %824 = vmatprep.subr.mxu0 0.0
      %825 = vmatpush1.xpose.msra.mxu0 0.0
      %826 = vmatprep.subr.mxu0 0.0
      %827 = vmatpush1.xpose.msra.mxu0 0.0
      %828 = vmatprep.subr.mxu0 0.0
      %829 = vmatpush1.xpose.msra.mxu0 0.0
      %830 = vmatprep.subr.mxu0 0.0
      %831 = vmatpush1.xpose.msra.mxu0 0.0
      %832 = vmatprep.subr.mxu0 0.0
      %833 = vmatpush1.xpose.msra.mxu0 0.0
      %834 = vmatprep.mubr.f32.mxu0 0.0
      %835 = vmatmul.mubr.f32.gmra.mrb[0].mxu0 %v766
      %v836 = vpop.f32.mrb[0].mxu0
      %v837 = vadd.f32 %v431, %v836
      %v838 = vpop.f32.mrb[0].mxu0
      %839 = vdwg.mxu0
      %v840 = vsel %vm435, %v837, -inf
      %841 = vmax.xlane.f32.xlu0 %v840
      %v842 = vpop.xlane.xlu0 %841
      %v843 = vsub.f32 %v837, %v842
      %v844 = vmul.f32 %v843, 1.442695
      %v845 = vpow.pop %v844
      %v846 = vsel %vm435, %v845, 0.0
      %847 = vadd.xlane.f32.xlu0 %v846
      %v848 = vpop.xlane.xlu0 %847
      %v849 = vrcp.pop %v848
      %v850 = vmul.f32 %v845, %v849
      %851 = vrot.lane.b32.xlu0 %v426, 48
      %v852 = vpop.permute.xlu0 %851
      %v855 = vsel %vm435, %v850, 0
      %857 = vmatprep.subr.mxu0 0.0
      %858 = vmatpush1.msra.mxu0 %v852
      %859 = vmatprep.subr.mxu0 0.0
      %860 = vmatpush1.msra.mxu0 0.0
      %861 = vmatprep.subr.mxu0 0.0
      %862 = vmatpush1.msra.mxu0 0.0
      %863 = vmatprep.subr.mxu0 0.0
      %864 = vmatpush1.msra.mxu0 0.0
      %865 = vmatprep.subr.mxu0 0.0
      %866 = vmatpush1.msra.mxu0 0.0
      %867 = vmatprep.subr.mxu0 0.0
      %868 = vmatpush1.msra.mxu0 0.0
      %869 = vmatprep.subr.mxu0 0.0
      %870 = vmatpush1.msra.mxu0 0.0
      %871 = vmatprep.subr.mxu0 0.0
      %872 = vmatpush1.msra.mxu0 0.0
      %873 = vmatprep.subr.mxu0 0.0
      %874 = vmatpush1.msra.mxu0 0.0
      %875 = vmatprep.subr.mxu0 0.0
      %876 = vmatpush1.msra.mxu0 0.0
      %877 = vmatprep.subr.mxu0 0.0
      %878 = vmatpush1.msra.mxu0 0.0
      %879 = vmatprep.subr.mxu0 0.0
      %880 = vmatpush1.msra.mxu0 0.0
      %881 = vmatprep.subr.mxu0 0.0
      %882 = vmatpush1.msra.mxu0 0.0
      %883 = vmatprep.subr.mxu0 0.0
      %884 = vmatpush1.msra.mxu0 0.0
      %885 = vmatprep.subr.mxu0 0.0
      %886 = vmatpush1.msra.mxu0 0.0
      %887 = vmatprep.subr.mxu0 0.0
      %888 = vmatpush1.msra.mxu0 0.0
      %889 = vmatprep.subr.mxu0 0.0
      %890 = vmatpush1.msra.mxu0 0.0
      %891 = vmatprep.subr.mxu0 0.0
      %892 = vmatpush1.msra.mxu0 0.0
      %893 = vmatprep.subr.mxu0 0.0
      %894 = vmatpush1.msra.mxu0 0.0
      %895 = vmatprep.subr.mxu0 0.0
      %896 = vmatpush1.msra.mxu0 0.0
      %897 = vmatprep.subr.mxu0 0.0
      %898 = vmatpush1.msra.mxu0 0.0
      %899 = vmatprep.subr.mxu0 0.0
      %900 = vmatpush1.msra.mxu0 0.0
      %901 = vmatprep.subr.mxu0 0.0
      %902 = vmatpush1.msra.mxu0 0.0
      %903 = vmatprep.subr.mxu0 0.0
      %904 = vmatpush1.msra.mxu0 0.0
      %905 = vmatprep.subr.mxu0 0.0
      %906 = vmatpush1.msra.mxu0 0.0
      %907 = vmatprep.subr.mxu0 0.0
      %908 = vmatpush1.msra.mxu0 0.0
      %909 = vmatprep.subr.mxu0 0.0
      %910 = vmatpush1.msra.mxu0 0.0
      %911 = vmatprep.subr.mxu0 0.0
      %912 = vmatpush1.msra.mxu0 0.0
      %913 = vmatprep.subr.mxu0 0.0
      %914 = vmatpush1.msra.mxu0 0.0
      %915 = vmatprep.subr.mxu0 0.0
      %916 = vmatpush1.msra.mxu0 0.0
      %917 = vmatprep.subr.mxu0 0.0
      %918 = vmatpush1.msra.mxu0 0.0
      %919 = vmatprep.subr.mxu0 0.0
      %920 = vmatpush1.msra.mxu0 0.0
      %921 = vmatprep.mubr.f32.mxu0 0.0
      %922 = vmatmul.mubr.f32.gmra.mrb[0].mxu0 %v855
      %v923 = vpop.f32.mrb[0].mxu0
      %v924 = vadd.f32 0.0, %v923
      %v925 = vpop.f32.mrb[0].mxu0
      %926 = vdwg.mxu0
      %927 = vrot.lane.b32.xlu0 %v426, 104
      %v928 = vpop.permute.xlu0 %927
      %929 = vrot.lane.b32.xlu0 %v426, 72
      %v930 = vpop.permute.xlu0 %929
      %v931 = vsel %vm435, %v928, 0
      %v933 = vsel %vm435, %v930, 0
      %935 = vmatprep.subr.mxu0 0.0
      %936 = vmatpush1.xpose.msra.mxu0 %v933
      %937 = vmatprep.subr.mxu0 0.0
      %938 = vmatpush1.xpose.msra.mxu0 0.0
      %939 = vmatprep.subr.mxu0 0.0
      %940 = vmatpush1.xpose.msra.mxu0 0.0
      %941 = vmatprep.subr.mxu0 0.0
      %942 = vmatpush1.xpose.msra.mxu0 0.0
      %943 = vmatprep.subr.mxu0 0.0
      %944 = vmatpush1.xpose.msra.mxu0 0.0
      %945 = vmatprep.subr.mxu0 0.0
      %946 = vmatpush1.xpose.msra.mxu0 0.0
      %947 = vmatprep.subr.mxu0 0.0
      %948 = vmatpush1.xpose.msra.mxu0 0.0
      %949 = vmatprep.subr.mxu0 0.0
      %950 = vmatpush1.xpose.msra.mxu0 0.0
      %951 = vmatprep.subr.mxu0 0.0
      %952 = vmatpush1.xpose.msra.mxu0 0.0
      %953 = vmatprep.subr.mxu0 0.0
      %954 = vmatpush1.xpose.msra.mxu0 0.0
      %955 = vmatprep.subr.mxu0 0.0
      %956 = vmatpush1.xpose.msra.mxu0 0.0
      %957 = vmatprep.subr.mxu0 0.0
      %958 = vmatpush1.xpose.msra.mxu0 0.0
      %959 = vmatprep.subr.mxu0 0.0
      %960 = vmatpush1.xpose.msra.mxu0 0.0
      %961 = vmatprep.subr.mxu0 0.0
      %962 = vmatpush1.xpose.msra.mxu0 0.0
      %963 = vmatprep.subr.mxu0 0.0
      %964 = vmatpush1.xpose.msra.mxu0 0.0
      %965 = vmatprep.subr.mxu0 0.0
      %966 = vmatpush1.xpose.msra.mxu0 0.0
      %967 = vmatprep.subr.mxu0 0.0
      %968 = vmatpush1.xpose.msra.mxu0 0.0
      %969 = vmatprep.subr.mxu0 0.0
      %970 = vmatpush1.xpose.msra.mxu0 0.0
      %971 = vmatprep.subr.mxu0 0.0
      %972 = vmatpush1.xpose.msra.mxu0 0.0
      %973 = vmatprep.subr.mxu0 0.0
      %974 = vmatpush1.xpose.msra.mxu0 0.0
      %975 = vmatprep.subr.mxu0 0.0
      %976 = vmatpush1.xpose.msra.mxu0 0.0
      %977 = vmatprep.subr.mxu0 0.0
      %978 = vmatpush1.xpose.msra.mxu0 0.0
      %979 = vmatprep.subr.mxu0 0.0
      %980 = vmatpush1.xpose.msra.mxu0 0.0
      %981 = vmatprep.subr.mxu0 0.0
      %982 = vmatpush1.xpose.msra.mxu0 0.0
      %983 = vmatprep.subr.mxu0 0.0
      %984 = vmatpush1.xpose.msra.mxu0 0.0
      %985 = vmatprep.subr.mxu0 0.0
      %986 = vmatpush1.xpose.msra.mxu0 0.0
      %987 = vmatprep.subr.mxu0 0.0
      %988 = vmatpush1.xpose.msra.mxu0 0.0
      %989 = vmatprep.subr.mxu0 0.0
      %990 = vmatpush1.xpose.msra.mxu0 0.0
      %991 = vmatprep.subr.mxu0 0.0
      %992 = vmatpush1.xpose.msra.mxu0 0.0
      %993 = vmatprep.subr.mxu0 0.0
      %994 = vmatpush1.xpose.msra.mxu0 0.0
      %995 = vmatprep.subr.mxu0 0.0
      %996 = vmatpush1.xpose.msra.mxu0 0.0
      %997 = vmatprep.subr.mxu0 0.0
      %998 = vmatpush1.xpose.msra.mxu0 0.0
      %999 = vmatprep.mubr.f32.mxu0 0.0
      %1000 = vmatmul.mubr.f32.gmra.mrb[0].mxu0 %v931
      %v1001 = vpop.f32.mrb[0].mxu0
      %v1002 = vadd.f32 %v431, %v1001
      %v1003 = vpop.f32.mrb[0].mxu0
      %1004 = vdwg.mxu0
      %v1005 = vsel %vm435, %v1002, -inf
      %1006 = vmax.xlane.f32.xlu0 %v1005
      %v1007 = vpop.xlane.xlu0 %1006
      %v1008 = vsub.f32 %v1002, %v1007
      %v1009 = vmul.f32 %v1008, 1.442695
      %v1010 = vpow.pop %v1009
      %v1011 = vsel %vm435, %v1010, 0.0
      %1012 = vadd.xlane.f32.xlu0 %v1011
      %v1013 = vpop.xlane.xlu0 %1012
      %v1014 = vrcp.pop %v1013
      %v1015 = vmul.f32 %v1010, %v1014
      %1016 = vrot.lane.b32.xlu0 %v426, 40
      %v1017 = vpop.permute.xlu0 %1016
      %v1020 = vsel %vm435, %v1015, 0
      %1022 = vmatprep.subr.mxu0 0.0
      %1023 = vmatpush1.msra.mxu0 %v1017
      %1024 = vmatprep.subr.mxu0 0.0
      %1025 = vmatpush1.msra.mxu0 0.0
      %1026 = vmatprep.subr.mxu0 0.0
      %1027 = vmatpush1.msra.mxu0 0.0
      %1028 = vmatprep.subr.mxu0 0.0
      %1029 = vmatpush1.msra.mxu0 0.0
      %1030 = vmatprep.subr.mxu0 0.0
      %1031 = vmatpush1.msra.mxu0 0.0
      %1032 = vmatprep.subr.mxu0 0.0
      %1033 = vmatpush1.msra.mxu0 0.0
      %1034 = vmatprep.subr.mxu0 0.0
      %1035 = vmatpush1.msra.mxu0 0.0
      %1036 = vmatprep.subr.mxu0 0.0
      %1037 = vmatpush1.msra.mxu0 0.0
      %1038 = vmatprep.subr.mxu0 0.0
      %1039 = vmatpush1.msra.mxu0 0.0
      %1040 = vmatprep.subr.mxu0 0.0
      %1041 = vmatpush1.msra.mxu0 0.0
      %1042 = vmatprep.subr.mxu0 0.0
      %1043 = vmatpush1.msra.mxu0 0.0
      %1044 = vmatprep.subr.mxu0 0.0
      %1045 = vmatpush1.msra.mxu0 0.0
      %1046 = vmatprep.subr.mxu0 0.0
      %1047 = vmatpush1.msra.mxu0 0.0
      %1048 = vmatprep.subr.mxu0 0.0
      %1049 = vmatpush1.msra.mxu0 0.0
      %1050 = vmatprep.subr.mxu0 0.0
      %1051 = vmatpush1.msra.mxu0 0.0
      %1052 = vmatprep.subr.mxu0 0.0
      %1053 = vmatpush1.msra.mxu0 0.0
      %1054 = vmatprep.subr.mxu0 0.0
      %1055 = vmatpush1.msra.mxu0 0.0
      %1056 = vmatprep.subr.mxu0 0.0
      %1057 = vmatpush1.msra.mxu0 0.0
      %1058 = vmatprep.subr.mxu0 0.0
      %1059 = vmatpush1.msra.mxu0 0.0
      %1060 = vmatprep.subr.mxu0 0.0
      %1061 = vmatpush1.msra.mxu0 0.0
      %1062 = vmatprep.subr.mxu0 0.0
      %1063 = vmatpush1.msra.mxu0 0.0
      %1064 = vmatprep.subr.mxu0 0.0
      %1065 = vmatpush1.msra.mxu0 0.0
      %1066 = vmatprep.subr.mxu0 0.0
      %1067 = vmatpush1.msra.mxu0 0.0
      %1068 = vmatprep.subr.mxu0 0.0
      %1069 = vmatpush1.msra.mxu0 0.0
      %1070 = vmatprep.subr.mxu0 0.0
      %1071 = vmatpush1.msra.mxu0 0.0
      %1072 = vmatprep.subr.mxu0 0.0
      %1073 = vmatpush1.msra.mxu0 0.0
      %1074 = vmatprep.subr.mxu0 0.0
      %1075 = vmatpush1.msra.mxu0 0.0
      %1076 = vmatprep.subr.mxu0 0.0
      %1077 = vmatpush1.msra.mxu0 0.0
      %1078 = vmatprep.subr.mxu0 0.0
      %1079 = vmatpush1.msra.mxu0 0.0
      %1080 = vmatprep.subr.mxu0 0.0
      %1081 = vmatpush1.msra.mxu0 0.0
      %1082 = vmatprep.subr.mxu0 0.0
      %1083 = vmatpush1.msra.mxu0 0.0
      %1084 = vmatprep.subr.mxu0 0.0
      %1085 = vmatpush1.msra.mxu0 0.0
      %1086 = vmatprep.mubr.f32.mxu0 0.0
      %1087 = vmatmul.mubr.f32.gmra.mrb[0].mxu0 %v1020
      %v1088 = vpop.f32.mrb[0].mxu0
      %v1089 = vadd.f32 0.0, %v1088
      %v1090 = vpop.f32.mrb[0].mxu0
      %1091 = vdwg.mxu0
      %1093 = vrot.lane.b32.xlu0 %v759, 8
      %v1094 = vpop.permute.xlu0 %1093
      %1097 = vrot.lane.b32.xlu0 %v924, 16
      %v1098 = vpop.permute.xlu0 %1097
      %1101 = vrot.lane.b32.xlu0 %v1089, 24
      %v1102 = vpop.permute.xlu0 %1101
      %v1104 = vsel %vm435, %v594, %v1094
      %vm1105 = vcmask 130048
      %v1106 = vsel %vm1105, %v1104, %v1098
      %vm1107 = vcmask 195584
      %v1108 = vsel %vm1107, %v1106, %v1102
      %v1109 = vpack.c.bf16 %v1108, %v1108
      %v1110 = vld [vmem:[%s5] sm:$0xf]
      %v1111 = vld [vmem:[%s5 + $0x4] sm:$0xf]
      %v1112 = vld [vmem:[%s5 + $0x8] sm:$0xf]
      %v1113 = vld [vmem:[%s5 + $0xc] sm:$0xf]
      %v1114 = vld [vmem:[%s6] sm:$0x1]
      %v1116 = vlaneseq
      %v1117 = vshrl.u32 %v1116, 7
      %v1118 = vsub.s32 0, %v1117
      %v1119 = vrot.slane %v1114, %v1118
      %v1125 = vunpack.c.l.b16 %v1110
      %v1126 = vunpack.c.l.b16 %v1111
      %v1127 = vunpack.c.l.b16 %v1112
      %v1128 = vunpack.c.l.b16 %v1113
      %v1129 = vpack.c.b16 %v1126, %v1125
      %v1130 = vpack.c.b16 %v1128, %v1127
      %v1134 = vsel %vm387, %v1109, 0
      %1136 = vmatprep.subr.bf16.mxu0 0
      %1137 = vmatpush1.bf16.msra.mxu0 %v1129
      %1138 = vmatprep.subr.bf16.mxu0 0
      %1139 = vmatpush1.bf16.msra.mxu0 %v1130
      %1140 = vmatprep.subr.bf16.mxu0 0
      %1141 = vmatpush1.bf16.msra.mxu0 0
      %1142 = vmatprep.subr.bf16.mxu0 0
      %1143 = vmatpush1.bf16.msra.mxu0 0
      %1144 = vmatprep.subr.bf16.mxu0 0
      %1145 = vmatpush1.bf16.msra.mxu0 0
      %1146 = vmatprep.subr.bf16.mxu0 0
      %1147 = vmatpush1.bf16.msra.mxu0 0
      %1148 = vmatprep.subr.bf16.mxu0 0
      %1149 = vmatpush1.bf16.msra.mxu0 0
      %1150 = vmatprep.subr.bf16.mxu0 0
      %1151 = vmatpush1.bf16.msra.mxu0 0
      %1152 = vmatprep.subr.bf16.mxu0 0
      %1153 = vmatpush1.bf16.msra.mxu0 0
      %1154 = vmatprep.subr.bf16.mxu0 0
      %1155 = vmatpush1.bf16.msra.mxu0 0
      %1156 = vmatprep.subr.bf16.mxu0 0
      %1157 = vmatpush1.bf16.msra.mxu0 0
      %1158 = vmatprep.subr.bf16.mxu0 0
      %1159 = vmatpush1.bf16.msra.mxu0 0
      %1160 = vmatprep.subr.bf16.mxu0 0
      %1161 = vmatpush1.bf16.msra.mxu0 0
      %1162 = vmatprep.subr.bf16.mxu0 0
      %1163 = vmatpush1.bf16.msra.mxu0 0
      %1164 = vmatprep.subr.bf16.mxu0 0
      %1165 = vmatpush1.bf16.msra.mxu0 0
      %1166 = vmatprep.subr.bf16.mxu0 0
      %1167 = vmatpush1.bf16.msra.mxu0 0
      %1168 = vmatprep.mubr.bf16.mxu0 0
      %1169 = vmatmul.mubr.bf16.gmra.mrb[0].mxu0 %v1134
      %v1170 = vpop.f32.mrb[0].mxu0
      %v1171 = vadd.f32 %v1119, %v1170
      %v1172 = vpop.f32.mrb[0].mxu0
      %v1173 = vpop.f32.mrb[0].mxu0
      %v1174 = vpop.f32.mrb[0].mxu0
      %1175 = vdwg.mxu0
      %v1176 = vunpack.c.l.bf16 %v363
      %v1177 = vadd.f32 %v1176, %v1171
      %v1178 = vsel %vm387, %v1177, 0.0
      %1179 = vadd.xlane.f32.xlu0 %v1178
      %v1180 = vpop.xlane.xlu0 %1179
      %v1181 = vrcp.pop 32.0
      %v1182 = vmul.f32 %v1180, %v1181
      %v1183 = vsub.f32 %v1177, %v1182
      %v1184 = vmul.f32 %v1183, %v1183
      %v1185 = vsel %vm387, %v1184, 0.0
      %1186 = vadd.xlane.f32.xlu0 %v1185
      %v1187 = vpop.xlane.xlu0 %1186
      %v1188 = vmul.f32 %v1187, %v1181
      %v1189 = vadd.f32 %v1188, 1e-05
      %v1190 = vrsqrt.pop %v1189
      %v1191 = vmul.f32 %v1183, %v1190
      %v1192 = vld [vmem:[%s7] sm:$0x1]
      %v1194 = vlaneseq
      %v1195 = vshrl.u32 %v1194, 7
      %v1196 = vsub.s32 0, %v1195
      %v1197 = vrot.slane %v1192, %v1196
      %v1199 = vmul.f32 %v1191, %v1197
      %v1200 = vld [vmem:[%s8] sm:$0x1]
      %v1202 = vlaneseq
      %v1203 = vshrl.u32 %v1202, 7
      %v1204 = vsub.s32 0, %v1203
      %v1205 = vrot.slane %v1200, %v1204
      %v1207 = vadd.f32 %v1199, %v1205
      %v1208 = vpack.c.bf16 %v1207, %v1207
      %vm1209 = vcmask 257024
      %1210 = vst.msk [vmem:[%s361] sm:$0xf] %vm1209, %v1208
      %p1211 = scmp.lt.s32.totalorder %s20, 1
      %s1212 = scalar_select %p1211, %s20, 1
      %s1213 = smul.addr %s1212, 4
      %s1214 = scalar_lea.vmem %s9, %s1213
      // Predicated region
      $region57: #{transformer_forward.15} parent=55 // pred_check
        %p1215 = pneg %p242
      $region58: #{transformer_forward.15} parent=55 // pred_check_branch
        %1217 = sbr.rel (%p1215) target = $region60
      $region59: #{transformer_forward.15} parent=55 // pred_region
        _
      $region60: #{transformer_forward.15} parent=55 // pred_fallthru
        _
    $region56: #{transformer_forward.15} parent=5 // pred_fallthru
      _
    %p1218 = scmp.le.s32.totalorder 2, %s15
    // Predicated region
    $region61: #{transformer_forward.15} parent=5 // pred_check
      %p1219 = pneg %p1218
    $region62: #{transformer_forward.15} parent=5 // pred_check_branch
      %1221 = sbr.rel (%p1219) target = $region64
    $region63: #{transformer_forward.15} parent=5 // pred_region
      %s1222 = ssub.s32 %s15, 2
      // Predicated region
      $region65: #{transformer_forward.15} parent=63 // pred_check
        %p1223 = pneg %p248
      $region66: #{transformer_forward.15} parent=63 // pred_check_branch
        %1225 = sbr.rel (%p1223) target = $region68
      $region67: #{transformer_forward.15} parent=63 // pred_region
        %p1226 = scmp.lt.s32.totalorder %s21, 1
        %s1227 = scalar_select %p1226, %s21, 1
        %s1228 = smul.addr %s1227, 4
        %s1229 = scalar_lea.vmem %s9, %s1228
      $region68: #{transformer_forward.15} parent=63 // pred_fallthru
        _
    $region64: #{transformer_forward.15} parent=5 // pred_fallthru
      _
  $region6: #{transformer_forward.15} parent=0 // loop_footer
    %s19 = sadd.s32 1, %s15
  $region7: #{transformer_forward.15} parent=0 // loop_footer_branch
    %14 = sbr.rel target = $region3
  $region8: #{transformer_forward.15} parent=0 // loop_exit
    _

// kernel: transformer_forward.16
$region0: #{transformer_forward.16}
  #allocation0 [shape = 'u32[]', space=smem, size = 0x4, offset = 0x4, fixed_abs, tag = 'smem constant byte address 0x4 - core index']
  #allocation1 [shape = 'u32[144,128]{1,0:T(1,128)}', space=vmem, size = 0x12000, scoped, tag = 'internal scratch']
  %s0 = inlined_call_operand.vmem [shape: bf16[2,8,32], index: 0, kind: input, shape index: {}]
  %s1 = inlined_call_operand.vmem [shape: bf16[2,8,32], index: 1, kind: input, shape index: {}]
  %s2 = inlined_call_operand.vmem [shape: f32[2,1,8], index: 2, kind: input, shape index: {}]
  %s3 = inlined_call_operand.vmem [shape: bf16[32,96], index: 3, kind: input, shape index: {}]
  %s4 = inlined_call_operand.vmem [shape: f32[1,96], index: 4, kind: input, shape index: {}]
  %s5 = inlined_call_operand.vmem [shape: bf16[32,32], index: 5, kind: input, shape index: {}]
  %s6 = inlined_call_operand.vmem [shape: f32[1,32], index: 6, kind: input, shape index: {}]
  %s7 = inlined_call_operand.vmem [shape: f32[1,32], index: 7, kind: input, shape index: {}]
  %s8 = inlined_call_operand.vmem [shape: f32[1,32], index: 8, kind: input, shape index: {}]
  %s9 = inlined_call_operand.vmem [shape: bf16[2,8,32], index: 9, kind: output, shape index: {}]
  %s10 = sld [smem:[#allocation0]]
  $region69: #{transformer_forward.16} parent=0
    _
  %s12 = ssub.s32 1, %s10
  %s13 = scalar_select 0, %s12, %s10
  loop: start=0, step=1, limit=4
  $region2: #{transformer_forward.16} parent=0 // loop_pre_header
    _
  $region3: #{transformer_forward.16} parent=0 // loop_header
    %s15 = sphi 0, %s19
    %p16 = scmp.ge.s32.totalorder %s15, 4
    %s25 = sphi 0, %s27
    %s28 = sphi 0, %s25
    %s29 = sphi 0, %s28
    %s45 = sphi 0, %s29
    %s51 = sphi 0, %s53
    %s54 = sphi 0, %s51
    %s55 = sphi 0, %s54
    %s71 = sphi 0, %s55
    %s77 = sphi 0, %s79
    %s80 = sphi 0, %s77
    %s81 = sphi 0, %s80
    %s97 = sphi 0, %s81
    %s101 = sphi 0, %s101
    %s103 = sphi 0, %s101
    %s104 = sphi 0, %s103
    %s118 = sphi 0, %s104
    %s122 = sphi 0, %s122
    %s124 = sphi 0, %s122
    %s125 = sphi 0, %s124
    %s139 = sphi 0, %s125
    %s143 = sphi 0, %s143
    %s145 = sphi 0, %s143
    %s146 = sphi 0, %s145
    %s160 = sphi 0, %s146
    %s164 = sphi 0, %s164
    %s166 = sphi 0, %s164
    %s167 = sphi 0, %s166
    %s181 = sphi 0, %s167
    %s185 = sphi 0, %s185
    %s187 = sphi 0, %s185
    %s188 = sphi 0, %s187
    %s202 = sphi 0, %s188
    %s206 = sphi 0, %s206
    %s208 = sphi 0, %s206
    %s209 = sphi 0, %s208
    %s223 = sphi 0, %s209
    %s229 = sphi 0, %s231
    %s232 = sphi 0, %s229
    %s233 = sphi 0, %s232
    %s249 = sphi 0, %s233
  $region4: #{transformer_forward.16} parent=0 // loop_header_branch
    %18 = sbr.rel (%p16) target = $region8
  $region5: #{transformer_forward.16} parent=0 // loop_body
    %s20 = ssub.s32 %s15, 1
    %s21 = ssub.s32 %s15, 2
    %s22 = sadd.s32 %s15, 1
    %s23 = ssub.s32 %s15, %s22
    %p24 = scmp.eq.s32.totalorder %s23, 0
    %s26 = sadd.s32 %s25, 1
    %s27 = scalar_select %p24, %s25, %s26
    %p30 = pneg %p24
    %p31 = scmp.eq.s32.totalorder %s15, 1
    %p32 = por %p30, %p31
    %p33 = scmp.ne.s32.totalorder %s25, %s28
    %p34 = scmp.eq.s32.totalorder %s15, 0
    %p35 = por %p33, %p34
    %p36 = scmp.ne.s32.totalorder %s25, %s28
    %p37 = scmp.eq.s32.totalorder %s20, 1
    %p38 = por %p36, %p37
    %p39 = scmp.ne.s32.totalorder %s28, %s29
    %p40 = scmp.eq.s32.totalorder %s20, 0
    %p41 = por %p39, %p40
    %p42 = scmp.ne.s32.totalorder %s28, %s29
    %p43 = scmp.eq.s32.totalorder %s21, 1
    %p44 = por %p42, %p43
    %p46 = scmp.ne.s32.totalorder %s29, %s45
    %p47 = scmp.eq.s32.totalorder %s21, 0
    %p48 = por %p46, %p47
    %s49 = ssub.s32 %s15, %s22
    %p50 = scmp.eq.s32.totalorder %s49, 0
    %s52 = sadd.s32 %s51, 1
    %s53 = scalar_select %p50, %s51, %s52
    %p56 = pneg %p50
    %p57 = scmp.eq.s32.totalorder %s15, 1
    %p58 = por %p56, %p57
    %p59 = scmp.ne.s32.totalorder %s51, %s54
    %p60 = scmp.eq.s32.totalorder %s15, 0
    %p61 = por %p59, %p60
    %p62 = scmp.ne.s32.totalorder %s51, %s54
    %p63 = scmp.eq.s32.totalorder %s20, 1
    %p64 = por %p62, %p63
    %p65 = scmp.ne.s32.totalorder %s54, %s55
    %p66 = scmp.eq.s32.totalorder %s20, 0
    %p67 = por %p65, %p66
    %p68 = scmp.ne.s32.totalorder %s54, %s55
    %p69 = scmp.eq.s32.totalorder %s21, 1
    %p70 = por %p68, %p69
    %p72 = scmp.ne.s32.totalorder %s55, %s71
    %p73 = scmp.eq.s32.totalorder %s21, 0
    %p74 = por %p72, %p73
    %s75 = ssub.s32 %s15, %s22
    %p76 = scmp.eq.s32.totalorder %s75, 0
    %s78 = sadd.s32 %s77, 1
    %s79 = scalar_select %p76, %s77, %s78
    %p82 = pneg %p76
    %p83 = scmp.eq.s32.totalorder %s15, 1
    %p84 = por %p82, %p83
    %p85 = scmp.ne.s32.totalorder %s77, %s80
    %p86 = scmp.eq.s32.totalorder %s15, 0
    %p87 = por %p85, %p86
    %p88 = scmp.ne.s32.totalorder %s77, %s80
    %p89 = scmp.eq.s32.totalorder %s20, 1
    %p90 = por %p88, %p89
    %p91 = scmp.ne.s32.totalorder %s80, %s81
    %p92 = scmp.eq.s32.totalorder %s20, 0
    %p93 = por %p91, %p92
    %p94 = scmp.ne.s32.totalorder %s80, %s81
    %p95 = scmp.eq.s32.totalorder %s21, 1
    %p96 = por %p94, %p95
    %p98 = scmp.ne.s32.totalorder %s81, %s97
    %p99 = scmp.eq.s32.totalorder %s21, 0
    %p100 = por %p98, %p99
    %s102 = sadd.s32 %s101, 1
    %p105 = scmp.eq.s32.totalorder %s15, 1
    %p106 = scmp.ne.s32.totalorder %s101, %s103
    %p107 = scmp.eq.s32.totalorder %s15, 0
    %p108 = por %p106, %p107
    %p109 = scmp.ne.s32.totalorder %s101, %s103
    %p110 = scmp.eq.s32.totalorder %s20, 1
    %p111 = por %p109, %p110
    %p112 = scmp.ne.s32.totalorder %s103, %s104
    %p113 = scmp.eq.s32.totalorder %s20, 0
    %p114 = por %p112, %p113
    %p115 = scmp.ne.s32.totalorder %s103, %s104
    %p116 = scmp.eq.s32.totalorder %s21, 1
    %p117 = por %p115, %p116
    %p119 = scmp.ne.s32.totalorder %s104, %s118
    %p120 = scmp.eq.s32.totalorder %s21, 0
    %p121 = por %p119, %p120
    %s123 = sadd.s32 %s122, 1
    %p126 = scmp.eq.s32.totalorder %s15, 1
    %p127 = scmp.ne.s32.totalorder %s122, %s124
    %p128 = scmp.eq.s32.totalorder %s15, 0
    %p129 = por %p127, %p128
    %p130 = scmp.ne.s32.totalorder %s122, %s124
    %p131 = scmp.eq.s32.totalorder %s20, 1
    %p132 = por %p130, %p131
    %p133 = scmp.ne.s32.totalorder %s124, %s125
    %p134 = scmp.eq.s32.totalorder %s20, 0
    %p135 = por %p133, %p134
    %p136 = scmp.ne.s32.totalorder %s124, %s125
    %p137 = scmp.eq.s32.totalorder %s21, 1
    %p138 = por %p136, %p137
    %p140 = scmp.ne.s32.totalorder %s125, %s139
    %p141 = scmp.eq.s32.totalorder %s21, 0
    %p142 = por %p140, %p141
    %s144 = sadd.s32 %s143, 1
    %p147 = scmp.eq.s32.totalorder %s15, 1
    %p148 = scmp.ne.s32.totalorder %s143, %s145
    %p149 = scmp.eq.s32.totalorder %s15, 0
    %p150 = por %p148, %p149
    %p151 = scmp.ne.s32.totalorder %s143, %s145
    %p152 = scmp.eq.s32.totalorder %s20, 1
    %p153 = por %p151, %p152
    %p154 = scmp.ne.s32.totalorder %s145, %s146
    %p155 = scmp.eq.s32.totalorder %s20, 0
    %p156 = por %p154, %p155
    %p157 = scmp.ne.s32.totalorder %s145, %s146
    %p158 = scmp.eq.s32.totalorder %s21, 1
    %p159 = por %p157, %p158
    %p161 = scmp.ne.s32.totalorder %s146, %s160
    %p162 = scmp.eq.s32.totalorder %s21, 0
    %p163 = por %p161, %p162
    %s165 = sadd.s32 %s164, 1
    %p168 = scmp.eq.s32.totalorder %s15, 1
    %p169 = scmp.ne.s32.totalorder %s164, %s166
    %p170 = scmp.eq.s32.totalorder %s15, 0
    %p171 = por %p169, %p170
    %p172 = scmp.ne.s32.totalorder %s164, %s166
    %p173 = scmp.eq.s32.totalorder %s20, 1
    %p174 = por %p172, %p173
    %p175 = scmp.ne.s32.totalorder %s166, %s167
    %p176 = scmp.eq.s32.totalorder %s20, 0
    %p177 = por %p175, %p176
    %p178 = scmp.ne.s32.totalorder %s166, %s167
    %p179 = scmp.eq.s32.totalorder %s21, 1
    %p180 = por %p178, %p179
    %p182 = scmp.ne.s32.totalorder %s167, %s181
    %p183 = scmp.eq.s32.totalorder %s21, 0
    %p184 = por %p182, %p183
    %s186 = sadd.s32 %s185, 1
    %p189 = scmp.eq.s32.totalorder %s15, 1
    %p190 = scmp.ne.s32.totalorder %s185, %s187
    %p191 = scmp.eq.s32.totalorder %s15, 0
    %p192 = por %p190, %p191
    %p193 = scmp.ne.s32.totalorder %s185, %s187
    %p194 = scmp.eq.s32.totalorder %s20, 1
    %p195 = por %p193, %p194
    %p196 = scmp.ne.s32.totalorder %s187, %s188
    %p197 = scmp.eq.s32.totalorder %s20, 0
    %p198 = por %p196, %p197
    %p199 = scmp.ne.s32.totalorder %s187, %s188
    %p200 = scmp.eq.s32.totalorder %s21, 1
    %p201 = por %p199, %p200
    %p203 = scmp.ne.s32.totalorder %s188, %s202
    %p204 = scmp.eq.s32.totalorder %s21, 0
    %p205 = por %p203, %p204
    %s207 = sadd.s32 %s206, 1
    %p210 = scmp.eq.s32.totalorder %s15, 1
    %p211 = scmp.ne.s32.totalorder %s206, %s208
    %p212 = scmp.eq.s32.totalorder %s15, 0
    %p213 = por %p211, %p212
    %p214 = scmp.ne.s32.totalorder %s206, %s208
    %p215 = scmp.eq.s32.totalorder %s20, 1
    %p216 = por %p214, %p215
    %p217 = scmp.ne.s32.totalorder %s208, %s209
    %p218 = scmp.eq.s32.totalorder %s20, 0
    %p219 = por %p217, %p218
    %p220 = scmp.ne.s32.totalorder %s208, %s209
    %p221 = scmp.eq.s32.totalorder %s21, 1
    %p222 = por %p220, %p221
    %p224 = scmp.ne.s32.totalorder %s209, %s223
    %p225 = scmp.eq.s32.totalorder %s21, 0
    %p226 = por %p224, %p225
    %s227 = ssub.s32 %s15, %s22
    %p228 = scmp.eq.s32.totalorder %s227, 0
    %s230 = sadd.s32 %s229, 1
    %s231 = scalar_select %p228, %s229, %s230
    %p234 = pneg %p228
    %p235 = scmp.eq.s32.totalorder %s15, 1
    %p236 = por %p234, %p235
    %p237 = scmp.ne.s32.totalorder %s229, %s232
    %p238 = scmp.eq.s32.totalorder %s15, 0
    %p239 = por %p237, %p238
    %p240 = scmp.ne.s32.totalorder %s229, %s232
    %p241 = scmp.eq.s32.totalorder %s20, 1
    %p242 = por %p240, %p241
    %p243 = scmp.ne.s32.totalorder %s232, %s233
    %p244 = scmp.eq.s32.totalorder %s20, 0
    %p245 = por %p243, %p244
    %p246 = scmp.ne.s32.totalorder %s232, %s233
    %p247 = scmp.eq.s32.totalorder %s21, 1
    %p248 = por %p246, %p247
    %p250 = scmp.ne.s32.totalorder %s233, %s249
    %p251 = scmp.eq.s32.totalorder %s21, 0
    %p252 = por %p250, %p251
    %p253 = scmp.le.s32.totalorder 1, %s15
    %p254 = scmp.lt.s32.totalorder %s15, 3
    %p255 = pnand %p253, %p254
    %p256 = pneg %p255
    // Predicated region
    $region9: #{transformer_forward.16} parent=5 // pred_check
      _
    $region10: #{transformer_forward.16} parent=5 // pred_check_branch
      %258 = sbr.rel (%p255) target = $region12
    $region11: #{transformer_forward.16} parent=5 // pred_region
      %s259 = ssub.s32 %s15, 1
      // Predicated region
      $region13: #{transformer_forward.16} parent=11 // pred_check
        %p260 = pneg %p114
      $region14: #{transformer_forward.16} parent=11 // pred_check_branch
        %262 = sbr.rel (%p260) target = $region16
      $region15: #{transformer_forward.16} parent=11 // pred_region
        _
      $region16: #{transformer_forward.16} parent=11 // pred_fallthru
        _
      // Predicated region
      $region17: #{transformer_forward.16} parent=11 // pred_check
        %p263 = pneg %p135
      $region18: #{transformer_forward.16} parent=11 // pred_check_branch
        %265 = sbr.rel (%p263) target = $region20
      $region19: #{transformer_forward.16} parent=11 // pred_region
        _
      $region20: #{transformer_forward.16} parent=11 // pred_fallthru
        _
      // Predicated region
      $region21: #{transformer_forward.16} parent=11 // pred_check
        %p266 = pneg %p156
      $region22: #{transformer_forward.16} parent=11 // pred_check_branch
        %268 = sbr.rel (%p266) target = $region24
      $region23: #{transformer_forward.16} parent=11 // pred_region
        _
      $region24: #{transformer_forward.16} parent=11 // pred_fallthru
        _
      // Predicated region
      $region25: #{transformer_forward.16} parent=11 // pred_check
        %p269 = pneg %p177
      $region26: #{transformer_forward.16} parent=11 // pred_check_branch
        %271 = sbr.rel (%p269) target = $region28
      $region27: #{transformer_forward.16} parent=11 // pred_region
        _
      $region28: #{transformer_forward.16} parent=11 // pred_fallthru
        _
      // Predicated region
      $region29: #{transformer_forward.16} parent=11 // pred_check
        %p272 = pneg %p198
      $region30: #{transformer_forward.16} parent=11 // pred_check_branch
        %274 = sbr.rel (%p272) target = $region32
      $region31: #{transformer_forward.16} parent=11 // pred_region
        _
      $region32: #{transformer_forward.16} parent=11 // pred_fallthru
        _
      // Predicated region
      $region33: #{transformer_forward.16} parent=11 // pred_check
        %p275 = pneg %p219
      $region34: #{transformer_forward.16} parent=11 // pred_check_branch
        %277 = sbr.rel (%p275) target = $region36
      $region35: #{transformer_forward.16} parent=11 // pred_region
        _
      $region36: #{transformer_forward.16} parent=11 // pred_fallthru
        _
    $region12: #{transformer_forward.16} parent=5 // pred_fallthru
      _
    %p278 = scmp.lt.s32.totalorder %s15, 2
    // Predicated region
    $region37: #{transformer_forward.16} parent=5 // pred_check
      %p279 = pneg %p278
    $region38: #{transformer_forward.16} parent=5 // pred_check_branch
      %281 = sbr.rel (%p279) target = $region40
    $region39: #{transformer_forward.16} parent=5 // pred_region
      // Predicated region
      $region41: #{transformer_forward.16} parent=39 // pred_check
        %p282 = pneg %p35
      $region42: #{transformer_forward.16} parent=39 // pred_check_branch
        %284 = sbr.rel (%p282) target = $region44
      $region43: #{transformer_forward.16} parent=39 // pred_region
        %p285 = scmp.lt.s32.totalorder %s15, 1
        %s286 = scalar_select %p285, %s15, 1
        %s287 = smul.addr %s286, 4
        %s288 = scalar_lea.vmem %s0, %s287
      $region44: #{transformer_forward.16} parent=39 // pred_fallthru
        _
      // Predicated region
      $region45: #{transformer_forward.16} parent=39 // pred_check
        %p289 = pneg %p61
      $region46: #{transformer_forward.16} parent=39 // pred_check_branch
        %291 = sbr.rel (%p289) target = $region48
      $region47: #{transformer_forward.16} parent=39 // pred_region
        %p292 = scmp.lt.s32.totalorder %s15, 1
        %s293 = scalar_select %p292, %s15, 1
        %s294 = smul.addr %s293, 4
        %s295 = scalar_lea.vmem %s1, %s294
      $region48: #{transformer_forward.16} parent=39 // pred_fallthru
        _
      // Predicated region
      $region49: #{transformer_forward.16} parent=39 // pred_check
        %p296 = pneg %p87
      $region50: #{transformer_forward.16} parent=39 // pred_check_branch
        %298 = sbr.rel (%p296) target = $region52
      $region51: #{transformer_forward.16} parent=39 // pred_region
        %p299 = scmp.lt.s32.totalorder %s15, 1
        %s300 = scalar_select %p299, %s15, 1
        %s301 = scalar_lea.vmem %s2, %s300
      $region52: #{transformer_forward.16} parent=39 // pred_fallthru
        _
    $region40: #{transformer_forward.16} parent=5 // pred_fallthru
      _
    %p302 = scmp.le.s32.totalorder 1, %s15
    %p303 = scmp.lt.s32.totalorder %s15, 3
    %p304 = pnand %p302, %p303
    %p305 = pneg %p304
    // Predicated region
    $region53: #{transformer_forward.16} parent=5 // pred_check
      _
    $region54: #{transformer_forward.16} parent=5 // pred_check_branch
      %307 = sbr.rel (%p304) target = $region56
    $region55: #{transformer_forward.16} parent=5 // pred_region
      %s308 = ssub.s32 %s15, 1
      %p309 = scmp.lt.s32.totalorder %s20, 1
      %s310 = scalar_select %p309, %s20, 1
      %s311 = smul.addr %s310, 4
      %s312 = scalar_lea.vmem %s0, %s311
      %p313 = pneg %p41
      %p314 = pneg %p38
      %p315 = scmp.lt.s32.totalorder %s20, 1
      %s316 = scalar_select %p315, %s20, 1
      %s317 = smul.addr %s316, 4
      %s318 = scalar_lea.vmem %s1, %s317
      %p319 = pneg %p67
      %p320 = pneg %p64
      %p321 = scmp.lt.s32.totalorder %s20, 1
      %s322 = scalar_select %p321, %s20, 1
      %s323 = scalar_lea.vmem %s2, %s322
      %p324 = pneg %p93
      %p325 = pneg %p90
      %p326 = pneg %p114
      %p327 = pneg %p111
      %p328 = pneg %p135
      %p329 = pneg %p132
      %p330 = pneg %p156
      %p331 = pneg %p153
      %p332 = pneg %p177
      %p333 = pneg %p174
      %p334 = pneg %p198
      %p335 = pneg %p195
      %p336 = pneg %p219
      %p337 = pneg %p216
      %p338 = pneg %p245
      %p339 = pneg %p242
      %p340 = scmp.lt.s32.totalorder %s20, 1
      %s341 = scalar_select %p340, %s20, 1
      %s342 = smul.addr %s341, 4
      %s343 = scalar_lea.vmem %s9, %s342
      %p344 = scmp.lt.s32.totalorder %s20, 1
      %s345 = scalar_select %p344, %s20, 1
      %s346 = smul.addr %s345, 4
      %s347 = scalar_lea.vmem %s0, %s346
      %p348 = scmp.lt.s32.totalorder %s20, 1
      %s349 = scalar_select %p348, %s20, 1
      %s350 = smul.addr %s349, 4
      %s351 = scalar_lea.vmem %s1, %s350
      %p352 = scmp.lt.s32.totalorder %s20, 1
      %s353 = scalar_select %p352, %s20, 1
      %s354 = scalar_lea.vmem %s2, %s353
      %p355 = scmp.lt.s32.totalorder %s20, 1
      %s356 = scalar_select %p355, %s20, 1
      %s357 = smul.addr %s356, 4
      %s358 = scalar_lea.vmem %s9, %s357
      %v360 = vld [vmem:[%s347] sm:$0xf]
      %v361 = vld [vmem:[%s351] sm:$0xf]
      %v362 = vld [vmem:[%s3] sm:$0xf]
      %v363 = vld [vmem:[%s3 + $0x4] sm:$0xf]
      %v364 = vld [vmem:[%s3 + $0x8] sm:$0xf]
      %v365 = vld [vmem:[%s3 + $0xc] sm:$0xf]
      %v366 = vld [vmem:[%s4] sm:$0x1]
      %v368 = vlaneseq
      %v369 = vshrl.u32 %v368, 7
      %v370 = vsub.s32 0, %v369
      %v371 = vrot.slane %v366, %v370
      %v377 = vunpack.c.l.b16 %v362
      %v378 = vunpack.c.l.b16 %v363
      %v379 = vunpack.c.l.b16 %v364
      %v380 = vunpack.c.l.b16 %v365
      %v381 = vpack.c.b16 %v378, %v377
      %v382 = vpack.c.b16 %v380, %v379
      %vm385 = vcmask 261120
      %v387 = vsel %vm385, %v360, 0
      %389 = vmatprep.subr.bf16.mxu0 0
      %390 = vmatpush1.bf16.msra.mxu0 %v381
      %391 = vmatprep.subr.bf16.mxu0 0
      %392 = vmatpush1.bf16.msra.mxu0 %v382
      %393 = vmatprep.subr.bf16.mxu0 0
      %394 = vmatpush1.bf16.msra.mxu0 0
      %395 = vmatprep.subr.bf16.mxu0 0
      %396 = vmatpush1.bf16.msra.mxu0 0
      %397 = vmatprep.subr.bf16.mxu0 0
      %398 = vmatpush1.bf16.msra.mxu0 0
      %399 = vmatprep.subr.bf16.mxu0 0
      %400 = vmatpush1.bf16.msra.mxu0 0
      %401 = vmatprep.subr.bf16.mxu0 0
      %402 = vmatpush1.bf16.msra.mxu0 0
      %403 = vmatprep.subr.bf16.mxu0 0
      %404 = vmatpush1.bf16.msra.mxu0 0
      %405 = vmatprep.subr.bf16.mxu0 0
      %406 = vmatpush1.bf16.msra.mxu0 0
      %407 = vmatprep.subr.bf16.mxu0 0
      %408 = vmatpush1.bf16.msra.mxu0 0
      %409 = vmatprep.subr.bf16.mxu0 0
      %410 = vmatpush1.bf16.msra.mxu0 0
      %411 = vmatprep.subr.bf16.mxu0 0
      %412 = vmatpush1.bf16.msra.mxu0 0
      %413 = vmatprep.subr.bf16.mxu0 0
      %414 = vmatpush1.bf16.msra.mxu0 0
      %415 = vmatprep.subr.bf16.mxu0 0
      %416 = vmatpush1.bf16.msra.mxu0 0
      %417 = vmatprep.subr.bf16.mxu0 0
      %418 = vmatpush1.bf16.msra.mxu0 0
      %419 = vmatprep.subr.bf16.mxu0 0
      %420 = vmatpush1.bf16.msra.mxu0 0
      %421 = vmatprep.mubr.bf16.mxu0 0
      %422 = vmatmul.mubr.bf16.gmra.mrb[0].mxu0 %v387
      %v423 = vpop.f32.mrb[0].mxu0
      %v424 = vadd.f32 %v371, %v423
      %v425 = vpop.f32.mrb[0].mxu0
      %v426 = vpop.f32.mrb[0].mxu0
      %v427 = vpop.f32.mrb[0].mxu0
      %428 = vdwg.mxu0
      %429 = vrot.lane.b32.xlu0 %v381, 96
      %v430 = vpop.permute.xlu0 %429
      %431 = vrot.lane.b32.xlu0 %v382, 96
      %v432 = vpop.permute.xlu0 %431
      %435 = vrot.lane.b32.xlu0 %v371, 96
      %v436 = vpop.permute.xlu0 %435
      %v439 = vsel %vm385, %v361, 0
      %441 = vmatprep.subr.bf16.mxu0 0
      %442 = vmatpush1.bf16.msra.mxu0 %v430
      %443 = vmatprep.subr.bf16.mxu0 0
      %444 = vmatpush1.bf16.msra.mxu0 %v432
      %445 = vmatprep.subr.bf16.mxu0 0
      %446 = vmatpush1.bf16.msra.mxu0 0
      %447 = vmatprep.subr.bf16.mxu0 0
      %448 = vmatpush1.bf16.msra.mxu0 0
      %449 = vmatprep.subr.bf16.mxu0 0
      %450 = vmatpush1.bf16.msra.mxu0 0
      %451 = vmatprep.subr.bf16.mxu0 0
      %452 = vmatpush1.bf16.msra.mxu0 0
      %453 = vmatprep.subr.bf16.mxu0 0
      %454 = vmatpush1.bf16.msra.mxu0 0
      %455 = vmatprep.subr.bf16.mxu0 0
      %456 = vmatpush1.bf16.msra.mxu0 0
      %457 = vmatprep.subr.bf16.mxu0 0
      %458 = vmatpush1.bf16.msra.mxu0 0
      %459 = vmatprep.subr.bf16.mxu0 0
      %460 = vmatpush1.bf16.msra.mxu0 0
      %461 = vmatprep.subr.bf16.mxu0 0
      %462 = vmatpush1.bf16.msra.mxu0 0
      %463 = vmatprep.subr.bf16.mxu0 0
      %464 = vmatpush1.bf16.msra.mxu0 0
      %465 = vmatprep.subr.bf16.mxu0 0
      %466 = vmatpush1.bf16.msra.mxu0 0
      %467 = vmatprep.subr.bf16.mxu0 0
      %468 = vmatpush1.bf16.msra.mxu0 0
      %469 = vmatprep.subr.bf16.mxu0 0
      %470 = vmatpush1.bf16.msra.mxu0 0
      %471 = vmatprep.subr.bf16.mxu0 0
      %472 = vmatpush1.bf16.msra.mxu0 0
      %473 = vmatprep.mubr.bf16.mxu0 0
      %474 = vmatmul.mubr.bf16.gmra.mrb[0].mxu0 %v439
      %v475 = vpop.f32.mrb[0].mxu0
      %v476 = vadd.f32 %v436, %v475
      %v477 = vpop.f32.mrb[0].mxu0
      %v478 = vpop.f32.mrb[0].mxu0
      %v479 = vpop.f32.mrb[0].mxu0
      %480 = vdwg.mxu0
      %v481 = vld [vmem:[%s354] sm:$0x1]
      %v483 = vlaneseq
      %v484 = vshrl.u32 %v483, 7
      %v485 = vsub.s32 0, %v484
      %v486 = vrot.slane %v481, %v485
      %vm488 = vcmask 64512
      %v490 = vsel %vm488, %v424, 0
      %v493 = vsel %vm488, %v476, 0
      %495 = vmatprep.subr.mxu0 0.0
      %496 = vmatpush1.xpose.msra.mxu0 %v493
      %497 = vmatprep.subr.mxu0 0.0
      %498 = vmatpush1.xpose.msra.mxu0 0.0
      %499 = vmatprep.subr.mxu0 0.0
      %500 = vmatpush1.xpose.msra.mxu0 0.0
      %501 = vmatprep.subr.mxu0 0.0
      %502 = vmatpush1.xpose.msra.mxu0 0.0
      %503 = vmatprep.subr.mxu0 0.0
      %504 = vmatpush1.xpose.msra.mxu0 0.0
      %505 = vmatprep.subr.mxu0 0.0
      %506 = vmatpush1.xpose.msra.mxu0 0.0
      %507 = vmatprep.subr.mxu0 0.0
      %508 = vmatpush1.xpose.msra.mxu0 0.0
      %509 = vmatprep.subr.mxu0 0.0
      %510 = vmatpush1.xpose.msra.mxu0 0.0
      %511 = vmatprep.subr.mxu0 0.0
      %512 = vmatpush1.xpose.msra.mxu0 0.0
      %513 = vmatprep.subr.mxu0 0.0
      %514 = vmatpush1.xpose.msra.mxu0 0.0
      %515 = vmatprep.subr.mxu0 0.0
      %516 = vmatpush1.xpose.msra.mxu0 0.0
      %517 = vmatprep.subr.mxu0 0.0
      %518 = vmatpush1.xpose.msra.mxu0 0.0
      %519 = vmatprep.subr.mxu0 0.0
      %520 = vmatpush1.xpose.msra.mxu0 0.0
      %521 = vmatprep.subr.mxu0 0.0
      %522 = vmatpush1.xpose.msra.mxu0 0.0
      %523 = vmatprep.subr.mxu0 0.0
      %524 = vmatpush1.xpose.msra.mxu0 0.0
      %525 = vmatprep.subr.mxu0 0.0
      %526 = vmatpush1.xpose.msra.mxu0 0.0
      %527 = vmatprep.subr.mxu0 0.0
      %528 = vmatpush1.xpose.msra.mxu0 0.0
      %529 = vmatprep.subr.mxu0 0.0
      %530 = vmatpush1.xpose.msra.mxu0 0.0
      %531 = vmatprep.subr.mxu0 0.0
      %532 = vmatpush1.xpose.msra.mxu0 0.0
      %533 = vmatprep.subr.mxu0 0.0
      %534 = vmatpush1.xpose.msra.mxu0 0.0
      %535 = vmatprep.subr.mxu0 0.0
      %536 = vmatpush1.xpose.msra.mxu0 0.0
      %537 = vmatprep.subr.mxu0 0.0
      %538 = vmatpush1.xpose.msra.mxu0 0.0
      %539 = vmatprep.subr.mxu0 0.0
      %540 = vmatpush1.xpose.msra.mxu0 0.0
      %541 = vmatprep.subr.mxu0 0.0
      %542 = vmatpush1.xpose.msra.mxu0 0.0
      %543 = vmatprep.subr.mxu0 0.0
      %544 = vmatpush1.xpose.msra.mxu0 0.0
      %545 = vmatprep.subr.mxu0 0.0
      %546 = vmatpush1.xpose.msra.mxu0 0.0
      %547 = vmatprep.subr.mxu0 0.0
      %548 = vmatpush1.xpose.msra.mxu0 0.0
      %549 = vmatprep.subr.mxu0 0.0
      %550 = vmatpush1.xpose.msra.mxu0 0.0
      %551 = vmatprep.subr.mxu0 0.0
      %552 = vmatpush1.xpose.msra.mxu0 0.0
      %553 = vmatprep.subr.mxu0 0.0
      %554 = vmatpush1.xpose.msra.mxu0 0.0
      %555 = vmatprep.subr.mxu0 0.0
      %556 = vmatpush1.xpose.msra.mxu0 0.0
      %557 = vmatprep.subr.mxu0 0.0
      %558 = vmatpush1.xpose.msra.mxu0 0.0
      %559 = vmatprep.mubr.f32.mxu0 0.0
      %560 = vmatmul.mubr.f32.gmra.mrb[0].mxu0 %v490
      %v561 = vpop.f32.mrb[0].mxu0
      %v562 = vadd.f32 %v486, %v561
      %v563 = vpop.f32.mrb[0].mxu0
      %564 = vdwg.mxu0
      %v565 = vsel %vm488, %v562, -inf
      %566 = vmax.xlane.f32.xlu0 %v565
      %v567 = vpop.xlane.xlu0 %566
      %v568 = vsub.f32 %v562, %v567
      %v569 = vmul.f32 %v568, 1.442695
      %v570 = vpow.pop %v569
      %v571 = vsel %vm488, %v570, 0.0
      %572 = vadd.xlane.f32.xlu0 %v571
      %v573 = vpop.xlane.xlu0 %572
      %v574 = vrcp.pop %v573
      %v575 = vmul.f32 %v570, %v574
      %576 = vrot.lane.b32.xlu0 %v476, 96
      %v577 = vpop.permute.xlu0 %576
      %v580 = vsel %vm488, %v575, 0
      %582 = vmatprep.subr.mxu0 0.0
      %583 = vmatpush1.msra.mxu0 %v577
      %584 = vmatprep.subr.mxu0 0.0
      %585 = vmatpush1.msra.mxu0 0.0
      %586 = vmatprep.subr.mxu0 0.0
      %587 = vmatpush1.msra.mxu0 0.0
      %588 = vmatprep.subr.mxu0 0.0
      %589 = vmatpush1.msra.mxu0 0.0
      %590 = vmatprep.subr.mxu0 0.0
      %591 = vmatpush1.msra.mxu0 0.0
      %592 = vmatprep.subr.mxu0 0.0
      %593 = vmatpush1.msra.mxu0 0.0
      %594 = vmatprep.subr.mxu0 0.0
      %595 = vmatpush1.msra.mxu0 0.0
      %596 = vmatprep.subr.mxu0 0.0
      %597 = vmatpush1.msra.mxu0 0.0
      %598 = vmatprep.subr.mxu0 0.0
      %599 = vmatpush1.msra.mxu0 0.0
      %600 = vmatprep.subr.mxu0 0.0
      %601 = vmatpush1.msra.mxu0 0.0
      %602 = vmatprep.subr.mxu0 0.0
      %603 = vmatpush1.msra.mxu0 0.0
      %604 = vmatprep.subr.mxu0 0.0
      %605 = vmatpush1.msra.mxu0 0.0
      %606 = vmatprep.subr.mxu0 0.0
      %607 = vmatpush1.msra.mxu0 0.0
      %608 = vmatprep.subr.mxu0 0.0
      %609 = vmatpush1.msra.mxu0 0.0
      %610 = vmatprep.subr.mxu0 0.0
      %611 = vmatpush1.msra.mxu0 0.0
      %612 = vmatprep.subr.mxu0 0.0
      %613 = vmatpush1.msra.mxu0 0.0
      %614 = vmatprep.subr.mxu0 0.0
      %615 = vmatpush1.msra.mxu0 0.0
      %616 = vmatprep.subr.mxu0 0.0
      %617 = vmatpush1.msra.mxu0 0.0
      %618 = vmatprep.subr.mxu0 0.0
      %619 = vmatpush1.msra.mxu0 0.0
      %620 = vmatprep.subr.mxu0 0.0
      %621 = vmatpush1.msra.mxu0 0.0
      %622 = vmatprep.subr.mxu0 0.0
      %623 = vmatpush1.msra.mxu0 0.0
      %624 = vmatprep.subr.mxu0 0.0
      %625 = vmatpush1.msra.mxu0 0.0
      %626 = vmatprep.subr.mxu0 0.0
      %627 = vmatpush1.msra.mxu0 0.0
      %628 = vmatprep.subr.mxu0 0.0
      %629 = vmatpush1.msra.mxu0 0.0
      %630 = vmatprep.subr.mxu0 0.0
      %631 = vmatpush1.msra.mxu0 0.0
      %632 = vmatprep.subr.mxu0 0.0
      %633 = vmatpush1.msra.mxu0 0.0
      %634 = vmatprep.subr.mxu0 0.0
      %635 = vmatpush1.msra.mxu0 0.0
      %636 = vmatprep.subr.mxu0 0.0
      %637 = vmatpush1.msra.mxu0 0.0
      %638 = vmatprep.subr.mxu0 0.0
      %639 = vmatpush1.msra.mxu0 0.0
      %640 = vmatprep.subr.mxu0 0.0
      %641 = vmatpush1.msra.mxu0 0.0
      %642 = vmatprep.subr.mxu0 0.0
      %643 = vmatpush1.msra.mxu0 0.0
      %644 = vmatprep.subr.mxu0 0.0
      %645 = vmatpush1.msra.mxu0 0.0
      %646 = vmatprep.mubr.f32.mxu0 0.0
      %647 = vmatmul.mubr.f32.gmra.mrb[0].mxu0 %v580
      %v648 = vpop.f32.mrb[0].mxu0
      %v649 = vadd.f32 0.0, %v648
      %v650 = vpop.f32.mrb[0].mxu0
      %651 = vdwg.mxu0
      %652 = vrot.lane.b32.xlu0 %v424, 120
      %v653 = vpop.permute.xlu0 %652
      %654 = vrot.lane.b32.xlu0 %v476, 120
      %v655 = vpop.permute.xlu0 %654
      %v656 = vsel %vm488, %v653, 0
      %v658 = vsel %vm488, %v655, 0
      %660 = vmatprep.subr.mxu0 0.0
      %661 = vmatpush1.xpose.msra.mxu0 %v658
      %662 = vmatprep.subr.mxu0 0.0
      %663 = vmatpush1.xpose.msra.mxu0 0.0
      %664 = vmatprep.subr.mxu0 0.0
      %665 = vmatpush1.xpose.msra.mxu0 0.0
      %666 = vmatprep.subr.mxu0 0.0
      %667 = vmatpush1.xpose.msra.mxu0 0.0
      %668 = vmatprep.subr.mxu0 0.0
      %669 = vmatpush1.xpose.msra.mxu0 0.0
      %670 = vmatprep.subr.mxu0 0.0
      %671 = vmatpush1.xpose.msra.mxu0 0.0
      %672 = vmatprep.subr.mxu0 0.0
      %673 = vmatpush1.xpose.msra.mxu0 0.0
      %674 = vmatprep.subr.mxu0 0.0
      %675 = vmatpush1.xpose.msra.mxu0 0.0
      %676 = vmatprep.subr.mxu0 0.0
      %677 = vmatpush1.xpose.msra.mxu0 0.0
      %678 = vmatprep.subr.mxu0 0.0
      %679 = vmatpush1.xpose.msra.mxu0 0.0
      %680 = vmatprep.subr.mxu0 0.0
      %681 = vmatpush1.xpose.msra.mxu0 0.0
      %682 = vmatprep.subr.mxu0 0.0
      %683 = vmatpush1.xpose.msra.mxu0 0.0
      %684 = vmatprep.subr.mxu0 0.0
      %685 = vmatpush1.xpose.msra.mxu0 0.0
      %686 = vmatprep.subr.mxu0 0.0
      %687 = vmatpush1.xpose.msra.mxu0 0.0
      %688 = vmatprep.subr.mxu0 0.0
      %689 = vmatpush1.xpose.msra.mxu0 0.0
      %690 = vmatprep.subr.mxu0 0.0
      %691 = vmatpush1.xpose.msra.mxu0 0.0
      %692 = vmatprep.subr.mxu0 0.0
      %693 = vmatpush1.xpose.msra.mxu0 0.0
      %694 = vmatprep.subr.mxu0 0.0
      %695 = vmatpush1.xpose.msra.mxu0 0.0
      %696 = vmatprep.subr.mxu0 0.0
      %697 = vmatpush1.xpose.msra.mxu0 0.0
      %698 = vmatprep.subr.mxu0 0.0
      %699 = vmatpush1.xpose.msra.mxu0 0.0
      %700 = vmatprep.subr.mxu0 0.0
      %701 = vmatpush1.xpose.msra.mxu0 0.0
      %702 = vmatprep.subr.mxu0 0.0
      %703 = vmatpush1.xpose.msra.mxu0 0.0
      %704 = vmatprep.subr.mxu0 0.0
      %705 = vmatpush1.xpose.msra.mxu0 0.0
      %706 = vmatprep.subr.mxu0 0.0
      %707 = vmatpush1.xpose.msra.mxu0 0.0
      %708 = vmatprep.subr.mxu0 0.0
      %709 = vmatpush1.xpose.msra.mxu0 0.0
      %710 = vmatprep.subr.mxu0 0.0
      %711 = vmatpush1.xpose.msra.mxu0 0.0
      %712 = vmatprep.subr.mxu0 0.0
      %713 = vmatpush1.xpose.msra.mxu0 0.0
      %714 = vmatprep.subr.mxu0 0.0
      %715 = vmatpush1.xpose.msra.mxu0 0.0
      %716 = vmatprep.subr.mxu0 0.0
      %717 = vmatpush1.xpose.msra.mxu0 0.0
      %718 = vmatprep.subr.mxu0 0.0
      %719 = vmatpush1.xpose.msra.mxu0 0.0
      %720 = vmatprep.subr.mxu0 0.0
      %721 = vmatpush1.xpose.msra.mxu0 0.0
      %722 = vmatprep.subr.mxu0 0.0
      %723 = vmatpush1.xpose.msra.mxu0 0.0
      %724 = vmatprep.mubr.f32.mxu0 0.0
      %725 = vmatmul.mubr.f32.gmra.mrb[0].mxu0 %v656
      %v726 = vpop.f32.mrb[0].mxu0
      %v727 = vadd.f32 %v486, %v726
      %v728 = vpop.f32.mrb[0].mxu0
      %729 = vdwg.mxu0
      %v730 = vsel %vm488, %v727, -inf
      %731 = vmax.xlane.f32.xlu0 %v730
      %v732 = vpop.xlane.xlu0 %731
      %v733 = vsub.f32 %v727, %v732
      %v734 = vmul.f32 %v733, 1.442695
      %v735 = vpow.pop %v734
      %v736 = vsel %vm488, %v735, 0.0
      %737 = vadd.xlane.f32.xlu0 %v736
      %v738 = vpop.xlane.xlu0 %737
      %v739 = vrcp.pop %v738
      %v740 = vmul.f32 %v735, %v739
      %741 = vrot.lane.b32.xlu0 %v476, 88
      %v742 = vpop.permute.xlu0 %741
      %v745 = vsel %vm488, %v740, 0
      %747 = vmatprep.subr.mxu0 0.0
      %748 = vmatpush1.msra.mxu0 %v742
      %749 = vmatprep.subr.mxu0 0.0
      %750 = vmatpush1.msra.mxu0 0.0
      %751 = vmatprep.subr.mxu0 0.0
      %752 = vmatpush1.msra.mxu0 0.0
      %753 = vmatprep.subr.mxu0 0.0
      %754 = vmatpush1.msra.mxu0 0.0
      %755 = vmatprep.subr.mxu0 0.0
      %756 = vmatpush1.msra.mxu0 0.0
      %757 = vmatprep.subr.mxu0 0.0
      %758 = vmatpush1.msra.mxu0 0.0
      %759 = vmatprep.subr.mxu0 0.0
      %760 = vmatpush1.msra.mxu0 0.0
      %761 = vmatprep.subr.mxu0 0.0
      %762 = vmatpush1.msra.mxu0 0.0
      %763 = vmatprep.subr.mxu0 0.0
      %764 = vmatpush1.msra.mxu0 0.0
      %765 = vmatprep.subr.mxu0 0.0
      %766 = vmatpush1.msra.mxu0 0.0
      %767 = vmatprep.subr.mxu0 0.0
      %768 = vmatpush1.msra.mxu0 0.0
      %769 = vmatprep.subr.mxu0 0.0
      %770 = vmatpush1.msra.mxu0 0.0
      %771 = vmatprep.subr.mxu0 0.0
      %772 = vmatpush1.msra.mxu0 0.0
      %773 = vmatprep.subr.mxu0 0.0
      %774 = vmatpush1.msra.mxu0 0.0
      %775 = vmatprep.subr.mxu0 0.0
      %776 = vmatpush1.msra.mxu0 0.0
      %777 = vmatprep.subr.mxu0 0.0
      %778 = vmatpush1.msra.mxu0 0.0
      %779 = vmatprep.subr.mxu0 0.0
      %780 = vmatpush1.msra.mxu0 0.0
      %781 = vmatprep.subr.mxu0 0.0
      %782 = vmatpush1.msra.mxu0 0.0
      %783 = vmatprep.subr.mxu0 0.0
      %784 = vmatpush1.msra.mxu0 0.0
      %785 = vmatprep.subr.mxu0 0.0
      %786 = vmatpush1.msra.mxu0 0.0
      %787 = vmatprep.subr.mxu0 0.0
      %788 = vmatpush1.msra.mxu0 0.0
      %789 = vmatprep.subr.mxu0 0.0
      %790 = vmatpush1.msra.mxu0 0.0
      %791 = vmatprep.subr.mxu0 0.0
      %792 = vmatpush1.msra.mxu0 0.0
      %793 = vmatprep.subr.mxu0 0.0
      %794 = vmatpush1.msra.mxu0 0.0
      %795 = vmatprep.subr.mxu0 0.0
      %796 = vmatpush1.msra.mxu0 0.0
      %797 = vmatprep.subr.mxu0 0.0
      %798 = vmatpush1.msra.mxu0 0.0
      %799 = vmatprep.subr.mxu0 0.0
      %800 = vmatpush1.msra.mxu0 0.0
      %801 = vmatprep.subr.mxu0 0.0
      %802 = vmatpush1.msra.mxu0 0.0
      %803 = vmatprep.subr.mxu0 0.0
      %804 = vmatpush1.msra.mxu0 0.0
      %805 = vmatprep.subr.mxu0 0.0
      %806 = vmatpush1.msra.mxu0 0.0
      %807 = vmatprep.subr.mxu0 0.0
      %808 = vmatpush1.msra.mxu0 0.0
      %809 = vmatprep.subr.mxu0 0.0
      %810 = vmatpush1.msra.mxu0 0.0
      %811 = vmatprep.mubr.f32.mxu0 0.0
      %812 = vmatmul.mubr.f32.gmra.mrb[0].mxu0 %v745
      %v813 = vpop.f32.mrb[0].mxu0
      %v814 = vadd.f32 0.0, %v813
      %v815 = vpop.f32.mrb[0].mxu0
      %816 = vdwg.mxu0
      %817 = vrot.lane.b32.xlu0 %v424, 112
      %v818 = vpop.permute.xlu0 %817
      %819 = vrot.lane.b32.xlu0 %v476, 112
      %v820 = vpop.permute.xlu0 %819
      %v821 = vsel %vm488, %v818, 0
      %v823 = vsel %vm488, %v820, 0
      %825 = vmatprep.subr.mxu0 0.0
      %826 = vmatpush1.xpose.msra.mxu0 %v823
      %827 = vmatprep.subr.mxu0 0.0
      %828 = vmatpush1.xpose.msra.mxu0 0.0
      %829 = vmatprep.subr.mxu0 0.0
      %830 = vmatpush1.xpose.msra.mxu0 0.0
      %831 = vmatprep.subr.mxu0 0.0
      %832 = vmatpush1.xpose.msra.mxu0 0.0
      %833 = vmatprep.subr.mxu0 0.0
      %834 = vmatpush1.xpose.msra.mxu0 0.0
      %835 = vmatprep.subr.mxu0 0.0
      %836 = vmatpush1.xpose.msra.mxu0 0.0
      %837 = vmatprep.subr.mxu0 0.0
      %838 = vmatpush1.xpose.msra.mxu0 0.0
      %839 = vmatprep.subr.mxu0 0.0
      %840 = vmatpush1.xpose.msra.mxu0 0.0
      %841 = vmatprep.subr.mxu0 0.0
      %842 = vmatpush1.xpose.msra.mxu0 0.0
      %843 = vmatprep.subr.mxu0 0.0
      %844 = vmatpush1.xpose.msra.mxu0 0.0
      %845 = vmatprep.subr.mxu0 0.0
      %846 = vmatpush1.xpose.msra.mxu0 0.0
      %847 = vmatprep.subr.mxu0 0.0
      %848 = vmatpush1.xpose.msra.mxu0 0.0
      %849 = vmatprep.subr.mxu0 0.0
      %850 = vmatpush1.xpose.msra.mxu0 0.0
      %851 = vmatprep.subr.mxu0 0.0
      %852 = vmatpush1.xpose.msra.mxu0 0.0
      %853 = vmatprep.subr.mxu0 0.0
      %854 = vmatpush1.xpose.msra.mxu0 0.0
      %855 = vmatprep.subr.mxu0 0.0
      %856 = vmatpush1.xpose.msra.mxu0 0.0
      %857 = vmatprep.subr.mxu0 0.0
      %858 = vmatpush1.xpose.msra.mxu0 0.0
      %859 = vmatprep.subr.mxu0 0.0
      %860 = vmatpush1.xpose.msra.mxu0 0.0
      %861 = vmatprep.subr.mxu0 0.0
      %862 = vmatpush1.xpose.msra.mxu0 0.0
      %863 = vmatprep.subr.mxu0 0.0
      %864 = vmatpush1.xpose.msra.mxu0 0.0
      %865 = vmatprep.subr.mxu0 0.0
      %866 = vmatpush1.xpose.msra.mxu0 0.0
      %867 = vmatprep.subr.mxu0 0.0
      %868 = vmatpush1.xpose.msra.mxu0 0.0
      %869 = vmatprep.subr.mxu0 0.0
      %870 = vmatpush1.xpose.msra.mxu0 0.0
      %871 = vmatprep.subr.mxu0 0.0
      %872 = vmatpush1.xpose.msra.mxu0 0.0
      %873 = vmatprep.subr.mxu0 0.0
      %874 = vmatpush1.xpose.msra.mxu0 0.0
      %875 = vmatprep.subr.mxu0 0.0
      %876 = vmatpush1.xpose.msra.mxu0 0.0
      %877 = vmatprep.subr.mxu0 0.0
      %878 = vmatpush1.xpose.msra.mxu0 0.0
      %879 = vmatprep.subr.mxu0 0.0
      %880 = vmatpush1.xpose.msra.mxu0 0.0
      %881 = vmatprep.subr.mxu0 0.0
      %882 = vmatpush1.xpose.msra.mxu0 0.0
      %883 = vmatprep.subr.mxu0 0.0
      %884 = vmatpush1.xpose.msra.mxu0 0.0
      %885 = vmatprep.subr.mxu0 0.0
      %886 = vmatpush1.xpose.msra.mxu0 0.0
      %887 = vmatprep.subr.mxu0 0.0
      %888 = vmatpush1.xpose.msra.mxu0 0.0
      %889 = vmatprep.mubr.f32.mxu0 0.0
      %890 = vmatmul.mubr.f32.gmra.mrb[0].mxu0 %v821
      %v891 = vpop.f32.mrb[0].mxu0
      %v892 = vadd.f32 %v486, %v891
      %v893 = vpop.f32.mrb[0].mxu0
      %894 = vdwg.mxu0
      %v895 = vsel %vm488, %v892, -inf
      %896 = vmax.xlane.f32.xlu0 %v895
      %v897 = vpop.xlane.xlu0 %896
      %v898 = vsub.f32 %v892, %v897
      %v899 = vmul.f32 %v898, 1.442695
      %v900 = vpow.pop %v899
      %v901 = vsel %vm488, %v900, 0.0
      %902 = vadd.xlane.f32.xlu0 %v901
      %v903 = vpop.xlane.xlu0 %902
      %v904 = vrcp.pop %v903
      %v905 = vmul.f32 %v900, %v904
      %906 = vrot.lane.b32.xlu0 %v476, 80
      %v907 = vpop.permute.xlu0 %906
      %v910 = vsel %vm488, %v905, 0
      %912 = vmatprep.subr.mxu0 0.0
      %913 = vmatpush1.msra.mxu0 %v907
      %914 = vmatprep.subr.mxu0 0.0
      %915 = vmatpush1.msra.mxu0 0.0
      %916 = vmatprep.subr.mxu0 0.0
      %917 = vmatpush1.msra.mxu0 0.0
      %918 = vmatprep.subr.mxu0 0.0
      %919 = vmatpush1.msra.mxu0 0.0
      %920 = vmatprep.subr.mxu0 0.0
      %921 = vmatpush1.msra.mxu0 0.0
      %922 = vmatprep.subr.mxu0 0.0
      %923 = vmatpush1.msra.mxu0 0.0
      %924 = vmatprep.subr.mxu0 0.0
      %925 = vmatpush1.msra.mxu0 0.0
      %926 = vmatprep.subr.mxu0 0.0
      %927 = vmatpush1.msra.mxu0 0.0
      %928 = vmatprep.subr.mxu0 0.0
      %929 = vmatpush1.msra.mxu0 0.0
      %930 = vmatprep.subr.mxu0 0.0
      %931 = vmatpush1.msra.mxu0 0.0
      %932 = vmatprep.subr.mxu0 0.0
      %933 = vmatpush1.msra.mxu0 0.0
      %934 = vmatprep.subr.mxu0 0.0
      %935 = vmatpush1.msra.mxu0 0.0
      %936 = vmatprep.subr.mxu0 0.0
      %937 = vmatpush1.msra.mxu0 0.0
      %938 = vmatprep.subr.mxu0 0.0
      %939 = vmatpush1.msra.mxu0 0.0
      %940 = vmatprep.subr.mxu0 0.0
      %941 = vmatpush1.msra.mxu0 0.0
      %942 = vmatprep.subr.mxu0 0.0
      %943 = vmatpush1.msra.mxu0 0.0
      %944 = vmatprep.subr.mxu0 0.0
      %945 = vmatpush1.msra.mxu0 0.0
      %946 = vmatprep.subr.mxu0 0.0
      %947 = vmatpush1.msra.mxu0 0.0
      %948 = vmatprep.subr.mxu0 0.0
      %949 = vmatpush1.msra.mxu0 0.0
      %950 = vmatprep.subr.mxu0 0.0
      %951 = vmatpush1.msra.mxu0 0.0
      %952 = vmatprep.subr.mxu0 0.0
      %953 = vmatpush1.msra.mxu0 0.0
      %954 = vmatprep.subr.mxu0 0.0
      %955 = vmatpush1.msra.mxu0 0.0
      %956 = vmatprep.subr.mxu0 0.0
      %957 = vmatpush1.msra.mxu0 0.0
      %958 = vmatprep.subr.mxu0 0.0
      %959 = vmatpush1.msra.mxu0 0.0
      %960 = vmatprep.subr.mxu0 0.0
      %961 = vmatpush1.msra.mxu0 0.0
      %962 = vmatprep.subr.mxu0 0.0
      %963 = vmatpush1.msra.mxu0 0.0
      %964 = vmatprep.subr.mxu0 0.0
      %965 = vmatpush1.msra.mxu0 0.0
      %966 = vmatprep.subr.mxu0 0.0
      %967 = vmatpush1.msra.mxu0 0.0
      %968 = vmatprep.subr.mxu0 0.0
      %969 = vmatpush1.msra.mxu0 0.0
      %970 = vmatprep.subr.mxu0 0.0
      %971 = vmatpush1.msra.mxu0 0.0
      %972 = vmatprep.subr.mxu0 0.0
      %973 = vmatpush1.msra.mxu0 0.0
      %974 = vmatprep.subr.mxu0 0.0
      %975 = vmatpush1.msra.mxu0 0.0
      %976 = vmatprep.mubr.f32.mxu0 0.0
      %977 = vmatmul.mubr.f32.gmra.mrb[0].mxu0 %v910
      %v978 = vpop.f32.mrb[0].mxu0
      %v979 = vadd.f32 0.0, %v978
      %v980 = vpop.f32.mrb[0].mxu0
      %981 = vdwg.mxu0
      %982 = vrot.lane.b32.xlu0 %v424, 104
      %v983 = vpop.permute.xlu0 %982
      %984 = vrot.lane.b32.xlu0 %v476, 104
      %v985 = vpop.permute.xlu0 %984
      %v986 = vsel %vm488, %v983, 0
      %v988 = vsel %vm488, %v985, 0
      %990 = vmatprep.subr.mxu0 0.0
      %991 = vmatpush1.xpose.msra.mxu0 %v988
      %992 = vmatprep.subr.mxu0 0.0
      %993 = vmatpush1.xpose.msra.mxu0 0.0
      %994 = vmatprep.subr.mxu0 0.0
      %995 = vmatpush1.xpose.msra.mxu0 0.0
      %996 = vmatprep.subr.mxu0 0.0
      %997 = vmatpush1.xpose.msra.mxu0 0.0
      %998 = vmatprep.subr.mxu0 0.0
      %999 = vmatpush1.xpose.msra.mxu0 0.0
      %1000 = vmatprep.subr.mxu0 0.0
      %1001 = vmatpush1.xpose.msra.mxu0 0.0
      %1002 = vmatprep.subr.mxu0 0.0
      %1003 = vmatpush1.xpose.msra.mxu0 0.0
      %1004 = vmatprep.subr.mxu0 0.0
      %1005 = vmatpush1.xpose.msra.mxu0 0.0
      %1006 = vmatprep.subr.mxu0 0.0
      %1007 = vmatpush1.xpose.msra.mxu0 0.0
      %1008 = vmatprep.subr.mxu0 0.0
      %1009 = vmatpush1.xpose.msra.mxu0 0.0
      %1010 = vmatprep.subr.mxu0 0.0
      %1011 = vmatpush1.xpose.msra.mxu0 0.0
      %1012 = vmatprep.subr.mxu0 0.0
      %1013 = vmatpush1.xpose.msra.mxu0 0.0
      %1014 = vmatprep.subr.mxu0 0.0
      %1015 = vmatpush1.xpose.msra.mxu0 0.0
      %1016 = vmatprep.subr.mxu0 0.0
      %1017 = vmatpush1.xpose.msra.mxu0 0.0
      %1018 = vmatprep.subr.mxu0 0.0
      %1019 = vmatpush1.xpose.msra.mxu0 0.0
      %1020 = vmatprep.subr.mxu0 0.0
      %1021 = vmatpush1.xpose.msra.mxu0 0.0
      %1022 = vmatprep.subr.mxu0 0.0
      %1023 = vmatpush1.xpose.msra.mxu0 0.0
      %1024 = vmatprep.subr.mxu0 0.0
      %1025 = vmatpush1.xpose.msra.mxu0 0.0
      %1026 = vmatprep.subr.mxu0 0.0
      %1027 = vmatpush1.xpose.msra.mxu0 0.0
      %1028 = vmatprep.subr.mxu0 0.0
      %1029 = vmatpush1.xpose.msra.mxu0 0.0
      %1030 = vmatprep.subr.mxu0 0.0
      %1031 = vmatpush1.xpose.msra.mxu0 0.0
      %1032 = vmatprep.subr.mxu0 0.0
      %1033 = vmatpush1.xpose.msra.mxu0 0.0
      %1034 = vmatprep.subr.mxu0 0.0
      %1035 = vmatpush1.xpose.msra.mxu0 0.0
      %1036 = vmatprep.subr.mxu0 0.0
      %1037 = vmatpush1.xpose.msra.mxu0 0.0
      %1038 = vmatprep.subr.mxu0 0.0
      %1039 = vmatpush1.xpose.msra.mxu0 0.0
      %1040 = vmatprep.subr.mxu0 0.0
      %1041 = vmatpush1.xpose.msra.mxu0 0.0
      %1042 = vmatprep.subr.mxu0 0.0
      %1043 = vmatpush1.xpose.msra.mxu0 0.0
      %1044 = vmatprep.subr.mxu0 0.0
      %1045 = vmatpush1.xpose.msra.mxu0 0.0
      %1046 = vmatprep.subr.mxu0 0.0
      %1047 = vmatpush1.xpose.msra.mxu0 0.0
      %1048 = vmatprep.subr.mxu0 0.0
      %1049 = vmatpush1.xpose.msra.mxu0 0.0
      %1050 = vmatprep.subr.mxu0 0.0
      %1051 = vmatpush1.xpose.msra.mxu0 0.0
      %1052 = vmatprep.subr.mxu0 0.0
      %1053 = vmatpush1.xpose.msra.mxu0 0.0
      %1054 = vmatprep.mubr.f32.mxu0 0.0
      %1055 = vmatmul.mubr.f32.gmra.mrb[0].mxu0 %v986
      %v1056 = vpop.f32.mrb[0].mxu0
      %v1057 = vadd.f32 %v486, %v1056
      %v1058 = vpop.f32.mrb[0].mxu0
      %1059 = vdwg.mxu0
      %v1060 = vsel %vm488, %v1057, -inf
      %1061 = vmax.xlane.f32.xlu0 %v1060
      %v1062 = vpop.xlane.xlu0 %1061
      %v1063 = vsub.f32 %v1057, %v1062
      %v1064 = vmul.f32 %v1063, 1.442695
      %v1065 = vpow.pop %v1064
      %v1066 = vsel %vm488, %v1065, 0.0
      %1067 = vadd.xlane.f32.xlu0 %v1066
      %v1068 = vpop.xlane.xlu0 %1067
      %v1069 = vrcp.pop %v1068
      %v1070 = vmul.f32 %v1065, %v1069
      %1071 = vrot.lane.b32.xlu0 %v476, 72
      %v1072 = vpop.permute.xlu0 %1071
      %v1075 = vsel %vm488, %v1070, 0
      %1077 = vmatprep.subr.mxu0 0.0
      %1078 = vmatpush1.msra.mxu0 %v1072
      %1079 = vmatprep.subr.mxu0 0.0
      %1080 = vmatpush1.msra.mxu0 0.0
      %1081 = vmatprep.subr.mxu0 0.0
      %1082 = vmatpush1.msra.mxu0 0.0
      %1083 = vmatprep.subr.mxu0 0.0
      %1084 = vmatpush1.msra.mxu0 0.0
      %1085 = vmatprep.subr.mxu0 0.0
      %1086 = vmatpush1.msra.mxu0 0.0
      %1087 = vmatprep.subr.mxu0 0.0
      %1088 = vmatpush1.msra.mxu0 0.0
      %1089 = vmatprep.subr.mxu0 0.0
      %1090 = vmatpush1.msra.mxu0 0.0
      %1091 = vmatprep.subr.mxu0 0.0
      %1092 = vmatpush1.msra.mxu0 0.0
      %1093 = vmatprep.subr.mxu0 0.0
      %1094 = vmatpush1.msra.mxu0 0.0
      %1095 = vmatprep.subr.mxu0 0.0
      %1096 = vmatpush1.msra.mxu0 0.0
      %1097 = vmatprep.subr.mxu0 0.0
      %1098 = vmatpush1.msra.mxu0 0.0
      %1099 = vmatprep.subr.mxu0 0.0
      %1100 = vmatpush1.msra.mxu0 0.0
      %1101 = vmatprep.subr.mxu0 0.0
      %1102 = vmatpush1.msra.mxu0 0.0
      %1103 = vmatprep.subr.mxu0 0.0
      %1104 = vmatpush1.msra.mxu0 0.0
      %1105 = vmatprep.subr.mxu0 0.0
      %1106 = vmatpush1.msra.mxu0 0.0
      %1107 = vmatprep.subr.mxu0 0.0
      %1108 = vmatpush1.msra.mxu0 0.0
      %1109 = vmatprep.subr.mxu0 0.0
      %1110 = vmatpush1.msra.mxu0 0.0
      %1111 = vmatprep.subr.mxu0 0.0
      %1112 = vmatpush1.msra.mxu0 0.0
      %1113 = vmatprep.subr.mxu0 0.0
      %1114 = vmatpush1.msra.mxu0 0.0
      %1115 = vmatprep.subr.mxu0 0.0
      %1116 = vmatpush1.msra.mxu0 0.0
      %1117 = vmatprep.subr.mxu0 0.0
      %1118 = vmatpush1.msra.mxu0 0.0
      %1119 = vmatprep.subr.mxu0 0.0
      %1120 = vmatpush1.msra.mxu0 0.0
      %1121 = vmatprep.subr.mxu0 0.0
      %1122 = vmatpush1.msra.mxu0 0.0
      %1123 = vmatprep.subr.mxu0 0.0
      %1124 = vmatpush1.msra.mxu0 0.0
      %1125 = vmatprep.subr.mxu0 0.0
      %1126 = vmatpush1.msra.mxu0 0.0
      %1127 = vmatprep.subr.mxu0 0.0
      %1128 = vmatpush1.msra.mxu0 0.0
      %1129 = vmatprep.subr.mxu0 0.0
      %1130 = vmatpush1.msra.mxu0 0.0
      %1131 = vmatprep.subr.mxu0 0.0
      %1132 = vmatpush1.msra.mxu0 0.0
      %1133 = vmatprep.subr.mxu0 0.0
      %1134 = vmatpush1.msra.mxu0 0.0
      %1135 = vmatprep.subr.mxu0 0.0
      %1136 = vmatpush1.msra.mxu0 0.0
      %1137 = vmatprep.subr.mxu0 0.0
      %1138 = vmatpush1.msra.mxu0 0.0
      %1139 = vmatprep.subr.mxu0 0.0
      %1140 = vmatpush1.msra.mxu0 0.0
      %1141 = vmatprep.mubr.f32.mxu0 0.0
      %1142 = vmatmul.mubr.f32.gmra.mrb[0].mxu0 %v1075
      %v1143 = vpop.f32.mrb[0].mxu0
      %v1144 = vadd.f32 0.0, %v1143
      %v1145 = vpop.f32.mrb[0].mxu0
      %1146 = vdwg.mxu0
      %1148 = vrot.lane.b32.xlu0 %v814, 8
      %v1149 = vpop.permute.xlu0 %1148
      %1152 = vrot.lane.b32.xlu0 %v979, 16
      %v1153 = vpop.permute.xlu0 %1152
      %1156 = vrot.lane.b32.xlu0 %v1144, 24
      %v1157 = vpop.permute.xlu0 %1156
      %v1159 = vsel %vm488, %v649, %v1149
      %vm1160 = vcmask 130048
      %v1161 = vsel %vm1160, %v1159, %v1153
      %vm1162 = vcmask 195584
      %v1163 = vsel %vm1162, %v1161, %v1157
      %v1164 = vpack.c.bf16 %v1163, %v1163
      %v1165 = vld [vmem:[%s5] sm:$0xf]
      %v1166 = vld [vmem:[%s5 + $0x4] sm:$0xf]
      %v1167 = vld [vmem:[%s5 + $0x8] sm:$0xf]
      %v1168 = vld [vmem:[%s5 + $0xc] sm:$0xf]
      %v1169 = vld [vmem:[%s6] sm:$0x1]
      %v1171 = vlaneseq
      %v1172 = vshrl.u32 %v1171, 7
      %v1173 = vsub.s32 0, %v1172
      %v1174 = vrot.slane %v1169, %v1173
      %v1180 = vunpack.c.l.b16 %v1165
      %v1181 = vunpack.c.l.b16 %v1166
      %v1182 = vunpack.c.l.b16 %v1167
      %v1183 = vunpack.c.l.b16 %v1168
      %v1184 = vpack.c.b16 %v1181, %v1180
      %v1185 = vpack.c.b16 %v1183, %v1182
      %v1189 = vsel %vm385, %v1164, 0
      %1191 = vmatprep.subr.bf16.mxu0 0
      %1192 = vmatpush1.bf16.msra.mxu0 %v1184
      %1193 = vmatprep.subr.bf16.mxu0 0
      %1194 = vmatpush1.bf16.msra.mxu0 %v1185
      %1195 = vmatprep.subr.bf16.mxu0 0
      %1196 = vmatpush1.bf16.msra.mxu0 0
      %1197 = vmatprep.subr.bf16.mxu0 0
      %1198 = vmatpush1.bf16.msra.mxu0 0
      %1199 = vmatprep.subr.bf16.mxu0 0
      %1200 = vmatpush1.bf16.msra.mxu0 0
      %1201 = vmatprep.subr.bf16.mxu0 0
      %1202 = vmatpush1.bf16.msra.mxu0 0
      %1203 = vmatprep.subr.bf16.mxu0 0
      %1204 = vmatpush1.bf16.msra.mxu0 0
      %1205 = vmatprep.subr.bf16.mxu0 0
      %1206 = vmatpush1.bf16.msra.mxu0 0
      %1207 = vmatprep.subr.bf16.mxu0 0
      %1208 = vmatpush1.bf16.msra.mxu0 0
      %1209 = vmatprep.subr.bf16.mxu0 0
      %1210 = vmatpush1.bf16.msra.mxu0 0
      %1211 = vmatprep.subr.bf16.mxu0 0
      %1212 = vmatpush1.bf16.msra.mxu0 0
      %1213 = vmatprep.subr.bf16.mxu0 0
      %1214 = vmatpush1.bf16.msra.mxu0 0
      %1215 = vmatprep.subr.bf16.mxu0 0
      %1216 = vmatpush1.bf16.msra.mxu0 0
      %1217 = vmatprep.subr.bf16.mxu0 0
      %1218 = vmatpush1.bf16.msra.mxu0 0
      %1219 = vmatprep.subr.bf16.mxu0 0
      %1220 = vmatpush1.bf16.msra.mxu0 0
      %1221 = vmatprep.subr.bf16.mxu0 0
      %1222 = vmatpush1.bf16.msra.mxu0 0
      %1223 = vmatprep.mubr.bf16.mxu0 0
      %1224 = vmatmul.mubr.bf16.gmra.mrb[0].mxu0 %v1189
      %v1225 = vpop.f32.mrb[0].mxu0
      %v1226 = vadd.f32 %v1174, %v1225
      %v1227 = vpop.f32.mrb[0].mxu0
      %v1228 = vpop.f32.mrb[0].mxu0
      %v1229 = vpop.f32.mrb[0].mxu0
      %1230 = vdwg.mxu0
      %v1231 = vunpack.c.l.bf16 %v360
      %v1232 = vadd.f32 %v1231, %v1226
      %v1233 = vsel %vm385, %v1232, 0.0
      %1234 = vadd.xlane.f32.xlu0 %v1233
      %v1235 = vpop.xlane.xlu0 %1234
      %v1236 = vrcp.pop 32.0
      %v1237 = vmul.f32 %v1235, %v1236
      %v1238 = vsub.f32 %v1232, %v1237
      %v1239 = vmul.f32 %v1238, %v1238
      %v1240 = vsel %vm385, %v1239, 0.0
      %1241 = vadd.xlane.f32.xlu0 %v1240
      %v1242 = vpop.xlane.xlu0 %1241
      %v1243 = vmul.f32 %v1242, %v1236
      %v1244 = vadd.f32 %v1243, 1e-05
      %v1245 = vrsqrt.pop %v1244
      %v1246 = vmul.f32 %v1238, %v1245
      %v1247 = vld [vmem:[%s7] sm:$0x1]
      %v1249 = vlaneseq
      %v1250 = vshrl.u32 %v1249, 7
      %v1251 = vsub.s32 0, %v1250
      %v1252 = vrot.slane %v1247, %v1251
      %v1254 = vmul.f32 %v1246, %v1252
      %v1255 = vld [vmem:[%s8] sm:$0x1]
      %v1257 = vlaneseq
      %v1258 = vshrl.u32 %v1257, 7
      %v1259 = vsub.s32 0, %v1258
      %v1260 = vrot.slane %v1255, %v1259
      %v1262 = vadd.f32 %v1254, %v1260
      %v1263 = vpack.c.bf16 %v1262, %v1262
      %vm1264 = vcmask 257024
      %1265 = vst.msk [vmem:[%s358] sm:$0xf] %vm1264, %v1263
      %p1266 = scmp.lt.s32.totalorder %s20, 1
      %s1267 = scalar_select %p1266, %s20, 1
      %s1268 = smul.addr %s1267, 4
      %s1269 = scalar_lea.vmem %s9, %s1268
      // Predicated region
      $region57: #{transformer_forward.16} parent=55 // pred_check
        %p1270 = pneg %p242
      $region58: #{transformer_forward.16} parent=55 // pred_check_branch
        %1272 = sbr.rel (%p1270) target = $region60
      $region59: #{transformer_forward.16} parent=55 // pred_region
        _
      $region60: #{transformer_forward.16} parent=55 // pred_fallthru
        _
    $region56: #{transformer_forward.16} parent=5 // pred_fallthru
      _
    %p1273 = scmp.le.s32.totalorder 2, %s15
    // Predicated region
    $region61: #{transformer_forward.16} parent=5 // pred_check
      %p1274 = pneg %p1273
    $region62: #{transformer_forward.16} parent=5 // pred_check_branch
      %1276 = sbr.rel (%p1274) target = $region64
    $region63: #{transformer_forward.16} parent=5 // pred_region
      %s1277 = ssub.s32 %s15, 2
      // Predicated region
      $region65: #{transformer_forward.16} parent=63 // pred_check
        %p1278 = pneg %p248
      $region66: #{transformer_forward.16} parent=63 // pred_check_branch
        %1280 = sbr.rel (%p1278) target = $region68
      $region67: #{transformer_forward.16} parent=63 // pred_region
        %p1281 = scmp.lt.s32.totalorder %s21, 1
        %s1282 = scalar_select %p1281, %s21, 1
        %s1283 = smul.addr %s1282, 4
        %s1284 = scalar_lea.vmem %s9, %s1283
      $region68: #{transformer_forward.16} parent=63 // pred_fallthru
        _
    $region64: #{transformer_forward.16} parent=5 // pred_fallthru
      _
  $region6: #{transformer_forward.16} parent=0 // loop_footer
    %s19 = sadd.s32 1, %s15
  $region7: #{transformer_forward.16} parent=0 // loop_footer_branch
    %14 = sbr.rel target = $region3
  $region8: #{transformer_forward.16} parent=0 // loop_exit
    _

// kernel: transformer_forward.21
$region0: #{transformer_forward.21}
  #allocation0 [shape = 'u32[]', space=smem, size = 0x4, offset = 0x4, fixed_abs, tag = 'smem constant byte address 0x4 - core index']
  #allocation1 [shape = 'u32[144,128]{1,0:T(1,128)}', space=vmem, size = 0x12000, scoped, tag = 'internal scratch']
  %s0 = inlined_call_operand.vmem [shape: bf16[2,8,32], index: 0, kind: input, shape index: {}]
  %s1 = inlined_call_operand.vmem [shape: bf16[32,128], index: 1, kind: input, shape index: {}]
  %s2 = inlined_call_operand.vmem [shape: f32[1,128], index: 2, kind: input, shape index: {}]
  %s3 = inlined_call_operand.hbm [shape: f32[2,8,128], index: 3, kind: output, shape index: {}]
  %s4 = sld [smem:[#allocation0]]
  $region45: #{transformer_forward.21} parent=0
    _
  %s6 = ssub.s32 1, %s4
  %s7 = scalar_select 0, %s6, %s4
  $region1: #{transformer_forward.21} parent=0
    #allocation2 [shape = 'u8[8192]{0}', space=vmem, size = 0x2000, scoped, tag = 'output window, operand 0']
    #allocation3 [shape = 's32[2]{0}', space=sflag, size = 0x8, scoped, tag = 'scoped memory for transformer_forward.21']
    %8 = vsyncpa [#allocation3], 0
    %s9 = scalar_lea.sflag [#allocation3], 1
    %10 = vsyncpa %s9, 0
    loop: start=0, step=1, limit=4
    $region2: #{transformer_forward.21} parent=1 // loop_pre_header
      _
    $region3: #{transformer_forward.21} parent=1 // loop_header
      %s12 = sphi 0, %s16
      %p13 = scmp.ge.s32.totalorder %s12, 4
      %s22 = sphi 0, %s24
      %s25 = sphi 0, %s22
      %s26 = sphi 0, %s25
      %s42 = sphi 0, %s26
      %s46 = sphi 0, %s46
      %s48 = sphi 0, %s46
      %s49 = sphi 0, %s48
      %s63 = sphi 0, %s49
      %s67 = sphi 0, %s67
      %s69 = sphi 0, %s67
      %s70 = sphi 0, %s69
      %s84 = sphi 0, %s70
      %s90 = sphi 0, %s92
      %s93 = sphi 0, %s90
      %s94 = sphi 0, %s93
      %s110 = sphi 0, %s94
    $region4: #{transformer_forward.21} parent=1 // loop_header_branch
      %15 = sbr.rel (%p13) target = $region8
    $region5: #{transformer_forward.21} parent=1 // loop_body
      %s17 = ssub.s32 %s12, 1
      %s18 = ssub.s32 %s12, 2
      %s19 = sadd.s32 %s12, 1
      %s20 = ssub.s32 %s12, %s19
      %p21 = scmp.eq.s32.totalorder %s20, 0
      %s23 = sadd.s32 %s22, 1
      %s24 = scalar_select %p21, %s22, %s23
      %p27 = pneg %p21
      %p28 = scmp.eq.s32.totalorder %s12, 1
      %p29 = por %p27, %p28
      %p30 = scmp.ne.s32.totalorder %s22, %s25
      %p31 = scmp.eq.s32.totalorder %s12, 0
      %p32 = por %p30, %p31
      %p33 = scmp.ne.s32.totalorder %s22, %s25
      %p34 = scmp.eq.s32.totalorder %s17, 1
      %p35 = por %p33, %p34
      %p36 = scmp.ne.s32.totalorder %s25, %s26
      %p37 = scmp.eq.s32.totalorder %s17, 0
      %p38 = por %p36, %p37
      %p39 = scmp.ne.s32.totalorder %s25, %s26
      %p40 = scmp.eq.s32.totalorder %s18, 1
      %p41 = por %p39, %p40
      %p43 = scmp.ne.s32.totalorder %s26, %s42
      %p44 = scmp.eq.s32.totalorder %s18, 0
      %p45 = por %p43, %p44
      %s47 = sadd.s32 %s46, 1
      %p50 = scmp.eq.s32.totalorder %s12, 1
      %p51 = scmp.ne.s32.totalorder %s46, %s48
      %p52 = scmp.eq.s32.totalorder %s12, 0
      %p53 = por %p51, %p52
      %p54 = scmp.ne.s32.totalorder %s46, %s48
      %p55 = scmp.eq.s32.totalorder %s17, 1
      %p56 = por %p54, %p55
      %p57 = scmp.ne.s32.totalorder %s48, %s49
      %p58 = scmp.eq.s32.totalorder %s17, 0
      %p59 = por %p57, %p58
      %p60 = scmp.ne.s32.totalorder %s48, %s49
      %p61 = scmp.eq.s32.totalorder %s18, 1
      %p62 = por %p60, %p61
      %p64 = scmp.ne.s32.totalorder %s49, %s63
      %p65 = scmp.eq.s32.totalorder %s18, 0
      %p66 = por %p64, %p65
      %s68 = sadd.s32 %s67, 1
      %p71 = scmp.eq.s32.totalorder %s12, 1
      %p72 = scmp.ne.s32.totalorder %s67, %s69
      %p73 = scmp.eq.s32.totalorder %s12, 0
      %p74 = por %p72, %p73
      %p75 = scmp.ne.s32.totalorder %s67, %s69
      %p76 = scmp.eq.s32.totalorder %s17, 1
      %p77 = por %p75, %p76
      %p78 = scmp.ne.s32.totalorder %s69, %s70
      %p79 = scmp.eq.s32.totalorder %s17, 0
      %p80 = por %p78, %p79
      %p81 = scmp.ne.s32.totalorder %s69, %s70
      %p82 = scmp.eq.s32.totalorder %s18, 1
      %p83 = por %p81, %p82
      %p85 = scmp.ne.s32.totalorder %s70, %s84
      %p86 = scmp.eq.s32.totalorder %s18, 0
      %p87 = por %p85, %p86
      %s88 = ssub.s32 %s12, %s19
      %p89 = scmp.eq.s32.totalorder %s88, 0
      %s91 = sadd.s32 %s90, 1
      %s92 = scalar_select %p89, %s90, %s91
      %p95 = pneg %p89
      %p96 = scmp.eq.s32.totalorder %s12, 1
      %p97 = por %p95, %p96
      %p98 = scmp.ne.s32.totalorder %s90, %s93
      %p99 = scmp.eq.s32.totalorder %s12, 0
      %p100 = por %p98, %p99
      %p101 = scmp.ne.s32.totalorder %s90, %s93
      %p102 = scmp.eq.s32.totalorder %s17, 1
      %p103 = por %p101, %p102
      %p104 = scmp.ne.s32.totalorder %s93, %s94
      %p105 = scmp.eq.s32.totalorder %s17, 0
      %p106 = por %p104, %p105
      %p107 = scmp.ne.s32.totalorder %s93, %s94
      %p108 = scmp.eq.s32.totalorder %s18, 1
      %p109 = por %p107, %p108
      %p111 = scmp.ne.s32.totalorder %s94, %s110
      %p112 = scmp.eq.s32.totalorder %s18, 0
      %p113 = por %p111, %p112
      %p114 = scmp.le.s32.totalorder 1, %s12
      %p115 = scmp.lt.s32.totalorder %s12, 3
      %p116 = pnand %p114, %p115
      %p117 = pneg %p116
      // Predicated region
      $region9: #{transformer_forward.21} parent=5 // pred_check
        _
      $region10: #{transformer_forward.21} parent=5 // pred_check_branch
        %119 = sbr.rel (%p116) target = $region12
      $region11: #{transformer_forward.21} parent=5 // pred_region
        %s120 = ssub.s32 %s12, 1
        // Predicated region
        $region13: #{transformer_forward.21} parent=11 // pred_check
          %p121 = pneg %p59
        $region14: #{transformer_forward.21} parent=11 // pred_check_branch
          %123 = sbr.rel (%p121) target = $region16
        $region15: #{transformer_forward.21} parent=11 // pred_region
          _
        $region16: #{transformer_forward.21} parent=11 // pred_fallthru
          _
        // Predicated region
        $region17: #{transformer_forward.21} parent=11 // pred_check
          %p124 = pneg %p80
        $region18: #{transformer_forward.21} parent=11 // pred_check_branch
          %126 = sbr.rel (%p124) target = $region20
        $region19: #{transformer_forward.21} parent=11 // pred_region
          _
        $region20: #{transformer_forward.21} parent=11 // pred_fallthru
          _
      $region12: #{transformer_forward.21} parent=5 // pred_fallthru
        _
      %p127 = scmp.lt.s32.totalorder %s12, 2
      // Predicated region
      $region21: #{transformer_forward.21} parent=5 // pred_check
        %p128 = pneg %p127
      $region22: #{transformer_forward.21} parent=5 // pred_check_branch
        %130 = sbr.rel (%p128) target = $region24
      $region23: #{transformer_forward.21} parent=5 // pred_region
        // Predicated region
        $region25: #{transformer_forward.21} parent=23 // pred_check
          %p131 = pneg %p32
        $region26: #{transformer_forward.21} parent=23 // pred_check_branch
          %133 = sbr.rel (%p131) target = $region28
        $region27: #{transformer_forward.21} parent=23 // pred_region
          %p134 = scmp.lt.s32.totalorder %s12, 1
          %s135 = scalar_select %p134, %s12, 1
          %s136 = smul.addr %s135, 4
          %s137 = scalar_lea.vmem %s0, %s136
        $region28: #{transformer_forward.21} parent=23 // pred_fallthru
          _
      $region24: #{transformer_forward.21} parent=5 // pred_fallthru
        _
      %p138 = scmp.le.s32.totalorder 1, %s12
      %p139 = scmp.lt.s32.totalorder %s12, 3
      %p140 = pnand %p138, %p139
      %p141 = pneg %p140
      // Predicated region
      $region29: #{transformer_forward.21} parent=5 // pred_check
        _
      $region30: #{transformer_forward.21} parent=5 // pred_check_branch
        %143 = sbr.rel (%p140) target = $region32
      $region31: #{transformer_forward.21} parent=5 // pred_region
        %s144 = ssub.s32 %s12, 1
        %p145 = scmp.lt.s32.totalorder %s17, 1
        %s146 = scalar_select %p145, %s17, 1
        %s147 = smul.addr %s146, 4
        %s148 = scalar_lea.vmem %s0, %s147
        %p149 = pneg %p38
        %p150 = pneg %p35
        %p151 = pneg %p59
        %p152 = pneg %p56
        %p153 = pneg %p80
        %p154 = pneg %p77
        %p155 = pneg %p106
        %p156 = pneg %p103
        %s157 = sand.u32 %s93, 1
        %s158 = scalar_lea.sflag [#allocation3], %s157
        %s159 = sand.u32 %s93, 1
        %s160 = smul.addr %s159, 8
        %s161 = scalar_lea.vmem [#allocation2], %s160
        %p162 = scmp.lt.s32.totalorder %s17, 1
        %s163 = scalar_select %p162, %s17, 1
        %s164 = smul.addr %s163, 4
        %s165 = scalar_lea.vmem %s0, %s164
        %v167 = vld [vmem:[%s165] sm:$0xf]
        %v168 = vld [vmem:[%s1] sm:$0xf]
        %v169 = vld [vmem:[%s1 + $0x4] sm:$0xf]
        %v170 = vld [vmem:[%s1 + $0x8] sm:$0xf]
        %v171 = vld [vmem:[%s1 + $0xc] sm:$0xf]
        %v172 = vld [vmem:[%s2] sm:$0x1]
        %v174 = vlaneseq
        %v175 = vshrl.u32 %v174, 7
        %v176 = vsub.s32 0, %v175
        %v177 = vrot.slane %v172, %v176
        %v183 = vunpack.c.l.b16 %v168
        %v184 = vunpack.c.l.b16 %v169
        %v185 = vunpack.c.l.b16 %v170
        %v186 = vunpack.c.l.b16 %v171
        %v187 = vpack.c.b16 %v184, %v183
        %v188 = vpack.c.b16 %v186, %v185
        %vm191 = vcmask 261120
        %v193 = vsel %vm191, %v167, 0
        %195 = vmatprep.subr.bf16.mxu0 0
        %196 = vmatpush1.bf16.msra.mxu0 %v187
        %197 = vmatprep.subr.bf16.mxu0 0
        %198 = vmatpush1.bf16.msra.mxu0 %v188
        %199 = vmatprep.subr.bf16.mxu0 0
        %200 = vmatpush1.bf16.msra.mxu0 0
        %201 = vmatprep.subr.bf16.mxu0 0
        %202 = vmatpush1.bf16.msra.mxu0 0
        %203 = vmatprep.subr.bf16.mxu0 0
        %204 = vmatpush1.bf16.msra.mxu0 0
        %205 = vmatprep.subr.bf16.mxu0 0
        %206 = vmatpush1.bf16.msra.mxu0 0
        %207 = vmatprep.subr.bf16.mxu0 0
        %208 = vmatpush1.bf16.msra.mxu0 0
        %209 = vmatprep.subr.bf16.mxu0 0
        %210 = vmatpush1.bf16.msra.mxu0 0
        %211 = vmatprep.subr.bf16.mxu0 0
        %212 = vmatpush1.bf16.msra.mxu0 0
        %213 = vmatprep.subr.bf16.mxu0 0
        %214 = vmatpush1.bf16.msra.mxu0 0
        %215 = vmatprep.subr.bf16.mxu0 0
        %216 = vmatpush1.bf16.msra.mxu0 0
        %217 = vmatprep.subr.bf16.mxu0 0
        %218 = vmatpush1.bf16.msra.mxu0 0
        %219 = vmatprep.subr.bf16.mxu0 0
        %220 = vmatpush1.bf16.msra.mxu0 0
        %221 = vmatprep.subr.bf16.mxu0 0
        %222 = vmatpush1.bf16.msra.mxu0 0
        %223 = vmatprep.subr.bf16.mxu0 0
        %224 = vmatpush1.bf16.msra.mxu0 0
        %225 = vmatprep.subr.bf16.mxu0 0
        %226 = vmatpush1.bf16.msra.mxu0 0
        %227 = vmatprep.mubr.bf16.mxu0 0
        %228 = vmatmul.mubr.bf16.gmra.mrb[0].mxu0 %v193
        %v229 = vpop.f32.mrb[0].mxu0
        %v230 = vadd.f32 %v177, %v229
        %v231 = vpop.f32.mrb[0].mxu0
        %v232 = vpop.f32.mrb[0].mxu0
        %v233 = vpop.f32.mrb[0].mxu0
        %234 = vdwg.mxu0
        %235 = vmax.xlane.f32.xlu0 %v230
        %v236 = vpop.xlane.xlu0 %235
        %v237 = vsub.f32 %v230, %v236
        %v238 = vmul.f32 %v237, 1.442695
        %v239 = vpow.pop %v238
        %240 = vadd.xlane.f32.xlu0 %v239
        %v241 = vpop.xlane.xlu0 %240
        %v242 = vrcp.pop %v241
        %v243 = vmul.f32 %v239, %v242
        %244 = vst [vmem:[%s161] sm:$0xff] %v243
        %s245 = sand.u32 %s93, 1
        %s246 = scalar_lea.sflag [#allocation3], %s245
        %s247 = sand.u32 %s93, 1
        %s248 = smul.addr %s247, 8
        %s249 = scalar_lea.vmem [#allocation2], %s248
        // Predicated region
        $region33: #{transformer_forward.21} parent=31 // pred_check
          %p250 = pneg %p103
        $region34: #{transformer_forward.21} parent=31 // pred_check_branch
          %252 = sbr.rel (%p250) target = $region36
        $region35: #{transformer_forward.21} parent=31 // pred_region
          %s254 = ssub.s32 128, 128
          %255 = vsyncadd %s246, %s254
          %s256 = smul.addr %s17, 128
          %s257 = scalar_lea.hbm %s3, %s256
          %s259 = sshll.u32 %s249, 4
          %s260 = int_to_ptr.vmem [resolvable:$true] %s259
          %262 = dma.vmem_to_hbm [thread:$0]  %s260, 128, %s257, %s246
        $region36: #{transformer_forward.21} parent=31 // pred_fallthru
          _
      $region32: #{transformer_forward.21} parent=5 // pred_fallthru
        _
      %p263 = scmp.le.s32.totalorder 2, %s12
      // Predicated region
      $region37: #{transformer_forward.21} parent=5 // pred_check
        %p264 = pneg %p263
      $region38: #{transformer_forward.21} parent=5 // pred_check_branch
        %266 = sbr.rel (%p264) target = $region40
      $region39: #{transformer_forward.21} parent=5 // pred_region
        %s267 = ssub.s32 %s12, 2
        // Predicated region
        $region41: #{transformer_forward.21} parent=39 // pred_check
          %p268 = pneg %p109
        $region42: #{transformer_forward.21} parent=39 // pred_check_branch
          %270 = sbr.rel (%p268) target = $region44
        $region43: #{transformer_forward.21} parent=39 // pred_region
          %s271 = sand.u32 %s94, 1
          %s272 = scalar_lea.sflag [#allocation3], %s271
          %s273 = sand.u32 %s94, 1
          %s274 = smul.addr %s273, 8
          %s275 = scalar_lea.vmem [#allocation2], %s274
          %276 = dma.done %s272, 128
        $region44: #{transformer_forward.21} parent=39 // pred_fallthru
          _
      $region40: #{transformer_forward.21} parent=5 // pred_fallthru
        _
    $region6: #{transformer_forward.21} parent=1 // loop_footer
      %s16 = sadd.s32 1, %s12
    $region7: #{transformer_forward.21} parent=1 // loop_footer_branch
      %11 = sbr.rel target = $region3
    $region8: #{transformer_forward.21} parent=1 // loop_exit
      _
    %277 = vsyncpa [#allocation3], 1
    %s278 = scalar_lea.sflag [#allocation3], 1
    %279 = vsyncpa %s278, 1

</llo_original>
